<compile_context>
chip_gen: v7x
topology: tpu7x:2x2x1
jax: 0.10.0
libtpu: 0.0.40
codegen_flags: <defaults>
</compile_context>

<pallas_src>
import jax
import jax.numpy as jnp
from jax import lax
from jax.experimental import pallas as pl
from jax.experimental.pallas import tpu as pltpu

BN_EPS = 1e-5


# ---------------------------------------------------------------------------
# Fused MBConv kernel
# ---------------------------------------------------------------------------
def _make_mbconv_kernel(H, W, stride, has_expand, use_residual):
    Ho = (H - 1) // stride + 1
    Wo = (W - 1) // stride + 1

    def kernel(x_ref, we_ref, be_ref, dw_ref, bd_ref,
               ws1_ref, ws2_ref, wp_ref, bp_ref, o_ref, pad_ref):
        # x_ref:   (1, H*W, C1)   one batch element, NHWC-flattened
        # we_ref:  (C1, Ce)       expand 1x1 weight (BN1 folded)   be_ref: (1, Ce)
        # dw_ref:  (9, Ce)        depthwise 3x3 taps (BN2 folded)  bd_ref: (1, Ce)
        # ws1_ref: (Ce, Cse)      ws2_ref: (Cse, Ce)  SE FC weights
        # wp_ref:  (Ce, C2)       project 1x1 weight (BN3 folded)  bp_ref: (1, C2)
        # o_ref:   (1, Ho*Wo, C2)
        # pad_ref: (H+2, W+2, Ce) fp32 VMEM scratch (zero-padded depthwise input)
        x = x_ref[0]                                            # (H*W, C1)

        # ---- expand 1x1 conv (+ folded BN) + SiLU -------------------------
        if has_expand:
            h = jnp.dot(x, we_ref[...], preferred_element_type=jnp.float32)
            h = h + be_ref[...]
            h = h * jax.nn.sigmoid(h)                           # SiLU
        else:
            h = x.astype(jnp.float32)
        ce = h.shape[-1]

        # ---- depthwise 3x3 conv, stride `stride`, padding 1 (+BN) + SiLU --
        pad_ref[...] = jnp.zeros(pad_ref.shape, pad_ref.dtype)
        pad_ref[1:H + 1, 1:W + 1, :] = h.reshape(H, W, ce)
        hp = pad_ref[...]                                       # (H+2, W+2, Ce)
        dww = dw_ref[...]                                       # (9, Ce)
        hsp = (Ho - 1) * stride + 1
        wsp = (Wo - 1) * stride + 1
        acc = jnp.zeros((Ho, Wo, ce), jnp.float32)
        for kh in range(3):
            for kw in range(3):
                patch = hp[kh:kh + hsp, kw:kw + wsp, :]
                if stride > 1:                                  # demo uses stride=1
                    patch = patch[::stride, ::stride, :]
                acc = acc + patch * dww[kh * 3 + kw:kh * 3 + kw + 1, :]
        d = acc + bd_ref[...]
        d = d * jax.nn.sigmoid(d)                               # SiLU
        d2 = d.reshape(Ho * Wo, ce)

        # ---- Squeeze-Excitation (fp32 only on the tiny (1, Ce) path) ------
        pooled = jnp.sum(d2, axis=0, keepdims=True) * (1.0 / (Ho * Wo))
        s = jnp.dot(pooled, ws1_ref[...], preferred_element_type=jnp.float32)
        s = s * jax.nn.sigmoid(s)                               # SiLU
        s = jnp.dot(s, ws2_ref[...], preferred_element_type=jnp.float32)
        s = jax.nn.sigmoid(s)                                   # (1, Ce)
        d2 = d2 * s                                             # channel-wise scale

        # ---- project 1x1 conv (+ folded BN) -------------------------------
        out = jnp.dot(d2, wp_ref[...], preferred_element_type=jnp.float32)
        out = out + bp_ref[...]                                 # (Ho*Wo, C2)

        # TODO(synk): Dropout2d is the identity in eval mode; training-mode
        # channel dropout is not implemented in-kernel.
        if use_residual:
            out = out + x.astype(jnp.float32)
        o_ref[0] = out.astype(o_ref.dtype)

    return kernel, Ho, Wo


def mbconv_pallas(x_nchw, fp, *, stride, has_expand, use_residual):
    """One fused MBConv block. x_nchw: (B, C1, H, W). fp: folded params."""
    B, C1, H, W = x_nchw.shape
    ce, C2 = fp['wp'].shape
    kernel, Ho, Wo = _make_mbconv_kernel(H, W, stride, has_expand, use_residual)
    HW, HWo = H * W, Ho * Wo

    # NCHW -> (B, H*W, C): channels on the lane axis.
    x = jnp.transpose(x_nchw, (0, 2, 3, 1)).reshape(B, HW, C1)

    weights = (fp['we'], fp['be'], fp['dw'], fp['bd'],
               fp['ws1'], fp['ws2'], fp['wp'], fp['bp'])

    # Explicit VMEM budget: double-buffered I/O blocks + resident weights +
    # padded depthwise scratch + fp32 temporaries, with margin.
    itemsize = jnp.dtype(x_nchw.dtype).itemsize
    need = (2 * (HW * C1 + HWo * C2) * itemsize
            + sum(int(w.size) for w in weights) * 4
            + (H + 2) * (W + 2) * ce * 4
            + 16 * HW * ce * 4)
    vmem_limit = int(min(max(2 * need, 32 << 20), 64 << 20))
    # TODO(synk): for very large H*W*Ce (early EfficientNet stages on v7x's
    # 64 MiB VMEM) split the spatial axis into a second grid dimension with a
    # two-pass pool+scale instead of one resident block per batch element.

    grid_spec = pltpu.PrefetchScalarGridSpec(
        num_scalar_prefetch=0,
        grid=(B,),
        in_specs=[pl.BlockSpec((1, HW, C1), lambda b: (b, 0, 0))]
                + [pl.BlockSpec(w.shape, lambda b: (0, 0)) for w in weights],
        out_specs=pl.BlockSpec((1, HWo, C2), lambda b: (b, 0, 0)),
        scratch_shapes=[pltpu.VMEM((H + 2, W + 2, ce), jnp.float32)],
    )

    out = pl.pallas_call(
        kernel,
        out_shape=jax.ShapeDtypeStruct((B, HWo, C2), x_nchw.dtype),
        grid_spec=grid_spec,
        compiler_params=pltpu.CompilerParams(
            dimension_semantics=("parallel",),
            vmem_limit_bytes=vmem_limit,
        ),
    )(x, *weights)

    return jnp.transpose(out.reshape(B, Ho, Wo, C2), (0, 3, 1, 2))


# ---------------------------------------------------------------------------
# Parameter construction / eval-mode BatchNorm folding
# ---------------------------------------------------------------------------
def _fold_bn(gamma, beta, mean, var, eps=BN_EPS):
    g = gamma / jnp.sqrt(var + eps)
    return g, beta - mean * g


def fold_params(p):
    """Fold eval-mode BatchNorms into the adjacent conv weights and lay the
    weights out so every in-kernel matmul is (rows, C_in) @ (C_in, C_out)."""
    g1, b1 = _fold_bn(*p['bn1'])
    g2, b2 = _fold_bn(*p['bn2'])
    g3, b3 = _fold_bn(*p['bn3'])
    ce = p['w_dw'].shape[0]
    return {
        'we':  p['w_exp'][:, :, 0, 0].T * g1[None, :],                       # (C1, Ce)
        'be':  b1[None, :],                                                  # (1, Ce)
        'dw':  jnp.transpose(p['w_dw'][:, 0], (1, 2, 0)).reshape(9, ce) * g2[None, :],
        'bd':  b2[None, :],                                                  # (1, Ce)
        'ws1': p['w_se1'].T,                                                 # (Ce, Cse)
        'ws2': p['w_se2'].T,                                                 # (Cse, Ce)
        'wp':  p['w_proj'][:, :, 0, 0].T * g3[None, :],                      # (Ce, C2)
        'bp':  b3[None, :],                                                  # (1, C2)
    }


def _bn_init(key, c):
    k1, k2, k3, k4 = jax.random.split(key, 4)
    gamma = jax.random.uniform(k1, (c,), jnp.float32, 0.5, 1.5)
    beta = jax.random.uniform(k2, (c,), jnp.float32, -0.3, 0.3)
    mean = jax.random.uniform(k3, (c,), jnp.float32, -0.3, 0.3)
    var = jax.random.uniform(k4, (c,), jnp.float32, 0.5, 1.5)
    return (gamma, beta, mean, var)


def init_mbconv_params(key, c1, c2, expand_ratio=4.0, se_ratio=0.25):
    ce = int(c1 * expand_ratio)
    se_c = max(1, int(c1 * se_ratio))
    ks = jax.random.split(key, 8)

    def u(k, shape, fan_in):
        b = 1.0 / (fan_in ** 0.5)
        return jax.random.uniform(k, shape, jnp.float32, -b, b)

    return {
        'w_exp':  u(ks[0], (ce, c1, 1, 1), c1),          # Conv2d(c1, ce, 1)
        'bn1':    _bn_init(ks[1], ce),
        'w_dw':   u(ks[2], (ce, 1, 3, 3), 9),            # depthwise Conv2d
        'bn2':    _bn_init(ks[3], ce),
        'w_se1':  u(ks[4], (se_c, ce), ce),              # Linear(ce, se_c)
        'w_se2':  u(ks[5], (ce, se_c), se_c),            # Linear(se_c, ce)
        'w_proj': u(ks[6], (c2, ce, 1, 1), ce),          # Conv2d(ce, c2, 1)
        'bn3':    _bn_init(ks[7], c2),
    }


# ---------------------------------------------------------------------------
# Pure-JAX eval-mode reference (matches the PyTorch forward)
# ---------------------------------------------------------------------------
def _silu(x):
    return x * jax.nn.sigmoid(x)


def _bn_eval(x, bn):
    gamma, beta, mean, var = bn
    g = gamma / jnp.sqrt(var + BN_EPS)
    return x * g[None, :, None, None] + (beta - mean * g)[None, :, None, None]


def _conv1x1(x, w):                          # w: (Cout, Cin, 1, 1)
    return jnp.einsum('bchw,oc->bohw', x, w[:, :, 0, 0])


def _dwconv3x3(x, w, stride):                # w: (C, 1, 3, 3), groups = C
    return lax.conv_general_dilated(
        x, w, window_strides=(stride, stride), padding=((1, 1), (1, 1)),
        dimension_numbers=('NCHW', 'OIHW', 'NCHW'),
        feature_group_count=x.shape[1])


def mbconv_ref(x, p, *, stride, has_expand, use_residual):
    h = x
    if has_expand:
        h = _silu(_bn_eval(_conv1x1(h, p['w_exp']), p['bn1']))
    h = _silu(_bn_eval(_dwconv3x3(h, p['w_dw'], stride), p['bn2']))
    y = jnp.mean(h, axis=(2, 3))                       # SE squeeze
    y = _silu(y @ p['w_se1'].T)
    y = jax.nn.sigmoid(y @ p['w_se2'].T)
    h = h * y[:, :, None, None]                        # SE excite
    h = _bn_eval(_conv1x1(h, p['w_proj']), p['bn3'])
    # Dropout2d: identity in eval mode.
    if use_residual:
        h = x + h
    return h


# ---------------------------------------------------------------------------
if __name__ == "__main__":
    # MBConvBlock(c1=8, c2=16, n=2, expand_ratio=4.0, stride=1) on a
    # (2, 8, 16, 16) input. Block 0: 8->16 (no residual); block 1: 16->16
    # (residual). expanded_c = 32 / 64, se_c = 2 / 4.
    B, C1, C2, H, W = 2, 8, 16, 16, 16
    n_blocks, expand_ratio, stride = 2, 4.0, 1

    key = jax.random.PRNGKey(0)
    kx, kp = jax.random.split(key)
    x = jax.random.normal(kx, (B, C1, H, W), dtype=jnp.float32)

    raw_params, cfgs = [], []
    c_in = C1
    pkeys = jax.random.split(kp, n_blocks)
    for i in range(n_blocks):
        s = stride if i == 0 else 1
        raw_params.append(init_mbconv_params(pkeys[i], c_in, C2, expand_ratio))
        cfgs.append(dict(stride=s,
                         has_expand=(expand_ratio != 1.0),
                         use_residual=(s == 1 and c_in == C2)))
        c_in = C2

    # Fused Pallas forward (one kernel per MBConv block).
    y = x
    for p, cfg in zip(raw_params, cfgs):
        y = mbconv_pallas(y, fold_params(p), **cfg)
    y = jax.block_until_ready(y)

    # Pure-JAX reference.
    y_ref = x
    for p, cfg in zip(raw_params, cfgs):
        y_ref = mbconv_ref(y_ref, p, **cfg)
    y_ref = jax.block_until_ready(y_ref)

    assert y.shape == y_ref.shape == (B, C2, H, W)
    max_err = float(jnp.max(jnp.abs(y - y_ref)))
    assert max_err < 2e-4, f"mismatch vs reference: max abs err {max_err}"
    print("KERNEL_OK")
</pallas_src>

<mosaic_0001>
module attributes {stable_mosaic.version = 11 : i64} {
  func.func @kernel(%arg0: i32, %arg1: memref<1x256x8xf32, #tpu.memory_space<vmem>>, %arg2: memref<8x32xf32, #tpu.memory_space<vmem>>, %arg3: memref<1x32xf32, #tpu.memory_space<vmem>>, %arg4: memref<9x32xf32, #tpu.memory_space<vmem>>, %arg5: memref<1x32xf32, #tpu.memory_space<vmem>>, %arg6: memref<32x2xf32, #tpu.memory_space<vmem>>, %arg7: memref<2x32xf32, #tpu.memory_space<vmem>>, %arg8: memref<32x16xf32, #tpu.memory_space<vmem>>, %arg9: memref<1x16xf32, #tpu.memory_space<vmem>>, %arg10: memref<1x256x16xf32, #tpu.memory_space<vmem>>, %arg11: memref<18x18x32xf32, #tpu.memory_space<vmem>>) attributes {dimension_semantics = [#tpu.dimension_semantics<parallel>], iteration_bounds = array<i64: 2>, scalar_prefetch = 0 : i64, scratch_operands = 1 : i64, tpu.core_type = #tpu.core_type<tc>, window_params = [{transform_indices = @transform_0, window_bounds = array<i64: 1, 256, 8>}, {pipeline_mode = #tpu.pipeline_mode<synchronous>, transform_indices = @transform_1, window_bounds = array<i64: 8, 32>}, {pipeline_mode = #tpu.pipeline_mode<synchronous>, transform_indices = @transform_2, window_bounds = array<i64: 1, 32>}, {pipeline_mode = #tpu.pipeline_mode<synchronous>, transform_indices = @transform_3, window_bounds = array<i64: 9, 32>}, {pipeline_mode = #tpu.pipeline_mode<synchronous>, transform_indices = @transform_4, window_bounds = array<i64: 1, 32>}, {pipeline_mode = #tpu.pipeline_mode<synchronous>, transform_indices = @transform_5, window_bounds = array<i64: 32, 2>}, {pipeline_mode = #tpu.pipeline_mode<synchronous>, transform_indices = @transform_6, window_bounds = array<i64: 2, 32>}, {pipeline_mode = #tpu.pipeline_mode<synchronous>, transform_indices = @transform_7, window_bounds = array<i64: 32, 16>}, {pipeline_mode = #tpu.pipeline_mode<synchronous>, transform_indices = @transform_8, window_bounds = array<i64: 1, 16>}, {transform_indices = @transform_9, window_bounds = array<i64: 1, 256, 16>}]} {
    %c0 = arith.constant 0 : index
    %c0_0 = arith.constant 0 : index
    %c0_1 = arith.constant 0 : index
    %0 = vector.load %arg1[%c0, %c0_0, %c0_1] : memref<1x256x8xf32, #tpu.memory_space<vmem>>, vector<1x256x8xf32>
    %1 = vector.shape_cast %0 : vector<1x256x8xf32> to vector<256x8xf32>
    %c0_2 = arith.constant 0 : index
    %c0_3 = arith.constant 0 : index
    %2 = vector.load %arg2[%c0_2, %c0_3] : memref<8x32xf32, #tpu.memory_space<vmem>>, vector<8x32xf32>
    %cst = arith.constant dense<0.000000e+00> : vector<256x32xf32>
    %3 = tpu.matmul %1, %2, %cst {dimension_numbers = #tpu.dot_dimension_numbers<[1], [0], [0], [1], [0, 0, 1, 1], [], []>} : vector<256x8xf32>, vector<8x32xf32>, vector<256x32xf32> -> vector<256x32xf32>
    %c0_4 = arith.constant 0 : index
    %c0_5 = arith.constant 0 : index
    %4 = vector.load %arg3[%c0_4, %c0_5] : memref<1x32xf32, #tpu.memory_space<vmem>>, vector<1x32xf32>
    %5 = vector.broadcast %4 : vector<1x32xf32> to vector<256x32xf32>
    %6 = arith.addf %3, %5 : vector<256x32xf32>
    %7 = arith.negf %6 : vector<256x32xf32>
    %8 = math.exp %7 : vector<256x32xf32>
    %cst_6 = arith.constant 1.000000e+00 : f32
    %9 = vector.broadcast %cst_6 : f32 to vector<256x32xf32>
    %10 = arith.addf %9, %8 : vector<256x32xf32>
    %11 = arith.divf %9, %10 : vector<256x32xf32>
    %12 = arith.mulf %6, %11 : vector<256x32xf32>
    %cst_7 = arith.constant 0.000000e+00 : f32
    %13 = vector.broadcast %cst_7 : f32 to vector<18x18x32xf32>
    %c0_8 = arith.constant 0 : index
    %c0_9 = arith.constant 0 : index
    %c0_10 = arith.constant 0 : index
    %14 = vector.load %arg11[%c0_8, %c0_9, %c0_10] : memref<18x18x32xf32, #tpu.memory_space<vmem>>, vector<18x18x32xf32>
    tpu.vector_store %arg11[%c0_8, %c0_9, %c0_10], %13 {strides = array<i32>} : memref<18x18x32xf32, #tpu.memory_space<vmem>>, vector<18x18x32xf32>,
    %15 = vector.shape_cast %12 : vector<256x32xf32> to vector<16x16x32xf32>
    %c1 = arith.constant 1 : index
    %c1_11 = arith.constant 1 : index
    %c0_12 = arith.constant 0 : index
    %16 = vector.load %arg11[%c1, %c1_11, %c0_12] : memref<18x18x32xf32, #tpu.memory_space<vmem>>, vector<16x16x32xf32>
    tpu.vector_store %arg11[%c1, %c1_11, %c0_12], %15 {strides = array<i32>} : memref<18x18x32xf32, #tpu.memory_space<vmem>>, vector<16x16x32xf32>,
    %c0_13 = arith.constant 0 : index
    %c0_14 = arith.constant 0 : index
    %c0_15 = arith.constant 0 : index
    %17 = vector.load %arg11[%c0_13, %c0_14, %c0_15] : memref<18x18x32xf32, #tpu.memory_space<vmem>>, vector<18x18x32xf32>
    %c0_16 = arith.constant 0 : index
    %c0_17 = arith.constant 0 : index
    %18 = vector.load %arg4[%c0_16, %c0_17] : memref<9x32xf32, #tpu.memory_space<vmem>>, vector<9x32xf32>
    %cst_18 = arith.constant 0.000000e+00 : f32
    %19 = vector.broadcast %cst_18 : f32 to vector<16x16x32xf32>
    %20 = vector.extract_strided_slice %17 {offsets = [0, 0, 0], sizes = [16, 16, 32], strides = [1, 1, 1]} : vector<18x18x32xf32> to vector<16x16x32xf32>
    %21 = vector.extract_strided_slice %18 {offsets = [0, 0], sizes = [1, 32], strides = [1, 1]} : vector<9x32xf32> to vector<1x32xf32>
    %22 = vector.shape_cast %21 : vector<1x32xf32> to vector<1x1x32xf32>
    %23 = vector.broadcast %22 : vector<1x1x32xf32> to vector<16x16x32xf32>
    %24 = arith.mulf %20, %23 : vector<16x16x32xf32>
    %25 = arith.addf %19, %24 : vector<16x16x32xf32>
    %26 = vector.extract_strided_slice %17 {offsets = [0, 1, 0], sizes = [16, 16, 32], strides = [1, 1, 1]} : vector<18x18x32xf32> to vector<16x16x32xf32>
    %27 = vector.extract_strided_slice %18 {offsets = [1, 0], sizes = [1, 32], strides = [1, 1]} : vector<9x32xf32> to vector<1x32xf32>
    %28 = vector.shape_cast %27 : vector<1x32xf32> to vector<1x1x32xf32>
    %29 = vector.broadcast %28 : vector<1x1x32xf32> to vector<16x16x32xf32>
    %30 = arith.mulf %26, %29 : vector<16x16x32xf32>
    %31 = arith.addf %25, %30 : vector<16x16x32xf32>
    %32 = vector.extract_strided_slice %17 {offsets = [0, 2, 0], sizes = [16, 16, 32], strides = [1, 1, 1]} : vector<18x18x32xf32> to vector<16x16x32xf32>
    %33 = vector.extract_strided_slice %18 {offsets = [2, 0], sizes = [1, 32], strides = [1, 1]} : vector<9x32xf32> to vector<1x32xf32>
    %34 = vector.shape_cast %33 : vector<1x32xf32> to vector<1x1x32xf32>
    %35 = vector.broadcast %34 : vector<1x1x32xf32> to vector<16x16x32xf32>
    %36 = arith.mulf %32, %35 : vector<16x16x32xf32>
    %37 = arith.addf %31, %36 : vector<16x16x32xf32>
    %38 = vector.extract_strided_slice %17 {offsets = [1, 0, 0], sizes = [16, 16, 32], strides = [1, 1, 1]} : vector<18x18x32xf32> to vector<16x16x32xf32>
    %39 = vector.extract_strided_slice %18 {offsets = [3, 0], sizes = [1, 32], strides = [1, 1]} : vector<9x32xf32> to vector<1x32xf32>
    %40 = vector.shape_cast %39 : vector<1x32xf32> to vector<1x1x32xf32>
    %41 = vector.broadcast %40 : vector<1x1x32xf32> to vector<16x16x32xf32>
    %42 = arith.mulf %38, %41 : vector<16x16x32xf32>
    %43 = arith.addf %37, %42 : vector<16x16x32xf32>
    %44 = vector.extract_strided_slice %17 {offsets = [1, 1, 0], sizes = [16, 16, 32], strides = [1, 1, 1]} : vector<18x18x32xf32> to vector<16x16x32xf32>
    %45 = vector.extract_strided_slice %18 {offsets = [4, 0], sizes = [1, 32], strides = [1, 1]} : vector<9x32xf32> to vector<1x32xf32>
    %46 = vector.shape_cast %45 : vector<1x32xf32> to vector<1x1x32xf32>
    %47 = vector.broadcast %46 : vector<1x1x32xf32> to vector<16x16x32xf32>
    %48 = arith.mulf %44, %47 : vector<16x16x32xf32>
    %49 = arith.addf %43, %48 : vector<16x16x32xf32>
    %50 = vector.extract_strided_slice %17 {offsets = [1, 2, 0], sizes = [16, 16, 32], strides = [1, 1, 1]} : vector<18x18x32xf32> to vector<16x16x32xf32>
    %51 = vector.extract_strided_slice %18 {offsets = [5, 0], sizes = [1, 32], strides = [1, 1]} : vector<9x32xf32> to vector<1x32xf32>
    %52 = vector.shape_cast %51 : vector<1x32xf32> to vector<1x1x32xf32>
    %53 = vector.broadcast %52 : vector<1x1x32xf32> to vector<16x16x32xf32>
    %54 = arith.mulf %50, %53 : vector<16x16x32xf32>
    %55 = arith.addf %49, %54 : vector<16x16x32xf32>
    %56 = vector.extract_strided_slice %17 {offsets = [2, 0, 0], sizes = [16, 16, 32], strides = [1, 1, 1]} : vector<18x18x32xf32> to vector<16x16x32xf32>
    %57 = vector.extract_strided_slice %18 {offsets = [6, 0], sizes = [1, 32], strides = [1, 1]} : vector<9x32xf32> to vector<1x32xf32>
    %58 = vector.shape_cast %57 : vector<1x32xf32> to vector<1x1x32xf32>
    %59 = vector.broadcast %58 : vector<1x1x32xf32> to vector<16x16x32xf32>
    %60 = arith.mulf %56, %59 : vector<16x16x32xf32>
    %61 = arith.addf %55, %60 : vector<16x16x32xf32>
    %62 = vector.extract_strided_slice %17 {offsets = [2, 1, 0], sizes = [16, 16, 32], strides = [1, 1, 1]} : vector<18x18x32xf32> to vector<16x16x32xf32>
    %63 = vector.extract_strided_slice %18 {offsets = [7, 0], sizes = [1, 32], strides = [1, 1]} : vector<9x32xf32> to vector<1x32xf32>
    %64 = vector.shape_cast %63 : vector<1x32xf32> to vector<1x1x32xf32>
    %65 = vector.broadcast %64 : vector<1x1x32xf32> to vector<16x16x32xf32>
    %66 = arith.mulf %62, %65 : vector<16x16x32xf32>
    %67 = arith.addf %61, %66 : vector<16x16x32xf32>
    %68 = vector.extract_strided_slice %17 {offsets = [2, 2, 0], sizes = [16, 16, 32], strides = [1, 1, 1]} : vector<18x18x32xf32> to vector<16x16x32xf32>
    %69 = vector.extract_strided_slice %18 {offsets = [8, 0], sizes = [1, 32], strides = [1, 1]} : vector<9x32xf32> to vector<1x32xf32>
    %70 = vector.shape_cast %69 : vector<1x32xf32> to vector<1x1x32xf32>
    %71 = vector.broadcast %70 : vector<1x1x32xf32> to vector<16x16x32xf32>
    %72 = arith.mulf %68, %71 : vector<16x16x32xf32>
    %73 = arith.addf %67, %72 : vector<16x16x32xf32>
    %c0_19 = arith.constant 0 : index
    %c0_20 = arith.constant 0 : index
    %74 = vector.load %arg5[%c0_19, %c0_20] : memref<1x32xf32, #tpu.memory_space<vmem>>, vector<1x32xf32>
    %75 = vector.shape_cast %74 : vector<1x32xf32> to vector<1x1x32xf32>
    %76 = vector.broadcast %75 : vector<1x1x32xf32> to vector<16x16x32xf32>
    %77 = arith.addf %73, %76 : vector<16x16x32xf32>
    %78 = arith.negf %77 : vector<16x16x32xf32>
    %79 = math.exp %78 : vector<16x16x32xf32>
    %cst_21 = arith.constant 1.000000e+00 : f32
    %80 = vector.broadcast %cst_21 : f32 to vector<16x16x32xf32>
    %81 = arith.addf %80, %79 : vector<16x16x32xf32>
    %82 = arith.divf %80, %81 : vector<16x16x32xf32>
    %83 = arith.mulf %77, %82 : vector<16x16x32xf32>
    %84 = vector.shape_cast %83 : vector<16x16x32xf32> to vector<256x32xf32>
    %cst_22 = arith.constant dense<0.000000e+00> : vector<32xf32>
    %85 = vector.multi_reduction <add>, %84, %cst_22 [0] : vector<256x32xf32> to vector<32xf32>
    %86 = vector.shape_cast %85 : vector<32xf32> to vector<1x32xf32>
    %cst_23 = arith.constant 3.906250e-03 : f32
    %87 = vector.broadcast %cst_23 : f32 to vector<1x32xf32>
    %88 = arith.mulf %86, %87 : vector<1x32xf32>
    %c0_24 = arith.constant 0 : index
    %c0_25 = arith.constant 0 : index
    %89 = vector.load %arg6[%c0_24, %c0_25] : memref<32x2xf32, #tpu.memory_space<vmem>>, vector<32x2xf32>
    %cst_26 = arith.constant dense<0.000000e+00> : vector<1x2xf32>
    %90 = tpu.matmul %88, %89, %cst_26 {dimension_numbers = #tpu.dot_dimension_numbers<[1], [0], [0], [1], [0, 0, 1, 1], [], []>} : vector<1x32xf32>, vector<32x2xf32>, vector<1x2xf32> -> vector<1x2xf32>
    %91 = arith.negf %90 : vector<1x2xf32>
    %92 = math.exp %91 : vector<1x2xf32>
    %cst_27 = arith.constant 1.000000e+00 : f32
    %93 = vector.broadcast %cst_27 : f32 to vector<1x2xf32>
    %94 = arith.addf %93, %92 : vector<1x2xf32>
    %95 = arith.divf %93, %94 : vector<1x2xf32>
    %96 = arith.mulf %90, %95 : vector<1x2xf32>
    %c0_28 = arith.constant 0 : index
    %c0_29 = arith.constant 0 : index
    %97 = vector.load %arg7[%c0_28, %c0_29] : memref<2x32xf32, #tpu.memory_space<vmem>>, vector<2x32xf32>
    %cst_30 = arith.constant dense<0.000000e+00> : vector<1x32xf32>
    %98 = tpu.matmul %96, %97, %cst_30 {dimension_numbers = #tpu.dot_dimension_numbers<[1], [0], [0], [1], [0, 0, 1, 1], [], []>} : vector<1x2xf32>, vector<2x32xf32>, vector<1x32xf32> -> vector<1x32xf32>
    %99 = arith.negf %98 : vector<1x32xf32>
    %100 = math.exp %99 : vector<1x32xf32>
    %cst_31 = arith.constant 1.000000e+00 : f32
    %101 = vector.broadcast %cst_31 : f32 to vector<1x32xf32>
    %102 = arith.addf %101, %100 : vector<1x32xf32>
    %103 = arith.divf %101, %102 : vector<1x32xf32>
    %104 = vector.broadcast %103 : vector<1x32xf32> to vector<256x32xf32>
    %105 = arith.mulf %84, %104 : vector<256x32xf32>
    %c0_32 = arith.constant 0 : index
    %c0_33 = arith.constant 0 : index
    %106 = vector.load %arg8[%c0_32, %c0_33] : memref<32x16xf32, #tpu.memory_space<vmem>>, vector<32x16xf32>
    %cst_34 = arith.constant dense<0.000000e+00> : vector<256x16xf32>
    %107 = tpu.matmul %105, %106, %cst_34 {dimension_numbers = #tpu.dot_dimension_numbers<[1], [0], [0], [1], [0, 0, 1, 1], [], []>} : vector<256x32xf32>, vector<32x16xf32>, vector<256x16xf32> -> vector<256x16xf32>
    %c0_35 = arith.constant 0 : index
    %c0_36 = arith.constant 0 : index
    %108 = vector.load %arg9[%c0_35, %c0_36] : memref<1x16xf32, #tpu.memory_space<vmem>>, vector<1x16xf32>
    %109 = vector.broadcast %108 : vector<1x16xf32> to vector<256x16xf32>
    %110 = arith.addf %107, %109 : vector<256x16xf32>
    %c0_37 = arith.constant 0 : index
    %c0_38 = arith.constant 0 : index
    %c0_39 = arith.constant 0 : index
    %111 = vector.load %arg10[%c0_37, %c0_38, %c0_39] : memref<1x256x16xf32, #tpu.memory_space<vmem>>, vector<1x256x16xf32>
    %112 = vector.shape_cast %111 : vector<1x256x16xf32> to vector<256x16xf32>
    %113 = vector.shape_cast %110 : vector<256x16xf32> to vector<1x256x16xf32>
    tpu.vector_store %arg10[%c0_37, %c0_38, %c0_39], %113 {strides = array<i32>} : memref<1x256x16xf32, #tpu.memory_space<vmem>>, vector<1x256x16xf32>,
    return
  }
  func.func @transform_0(%arg0: i32) -> (i32, i32, i32) {
    %c0_i32 = arith.constant 0 : i32
    %c0_i32_0 = arith.constant 0 : i32
    %c0_i32_1 = arith.constant 0 : i32
    return %arg0, %c0_i32, %c0_i32_0 : i32, i32, i32
  }
  func.func @transform_1(%arg0: i32) -> (i32, i32) {
    %c0_i32 = arith.constant 0 : i32
    %c0_i32_0 = arith.constant 0 : i32
    %c0_i32_1 = arith.constant 0 : i32
    return %c0_i32, %c0_i32_0 : i32, i32
  }
  func.func @transform_2(%arg0: i32) -> (i32, i32) {
    %c0_i32 = arith.constant 0 : i32
    %c0_i32_0 = arith.constant 0 : i32
    %c0_i32_1 = arith.constant 0 : i32
    return %c0_i32, %c0_i32_0 : i32, i32
  }
  func.func @transform_3(%arg0: i32) -> (i32, i32) {
    %c0_i32 = arith.constant 0 : i32
    %c0_i32_0 = arith.constant 0 : i32
    %c0_i32_1 = arith.constant 0 : i32
    return %c0_i32, %c0_i32_0 : i32, i32
  }
  func.func @transform_4(%arg0: i32) -> (i32, i32) {
    %c0_i32 = arith.constant 0 : i32
    %c0_i32_0 = arith.constant 0 : i32
    %c0_i32_1 = arith.constant 0 : i32
    return %c0_i32, %c0_i32_0 : i32, i32
  }
  func.func @transform_5(%arg0: i32) -> (i32, i32) {
    %c0_i32 = arith.constant 0 : i32
    %c0_i32_0 = arith.constant 0 : i32
    %c0_i32_1 = arith.constant 0 : i32
    return %c0_i32, %c0_i32_0 : i32, i32
  }
  func.func @transform_6(%arg0: i32) -> (i32, i32) {
    %c0_i32 = arith.constant 0 : i32
    %c0_i32_0 = arith.constant 0 : i32
    %c0_i32_1 = arith.constant 0 : i32
    return %c0_i32, %c0_i32_0 : i32, i32
  }
  func.func @transform_7(%arg0: i32) -> (i32, i32) {
    %c0_i32 = arith.constant 0 : i32
    %c0_i32_0 = arith.constant 0 : i32
    %c0_i32_1 = arith.constant 0 : i32
    return %c0_i32, %c0_i32_0 : i32, i32
  }
  func.func @transform_8(%arg0: i32) -> (i32, i32) {
    %c0_i32 = arith.constant 0 : i32
    %c0_i32_0 = arith.constant 0 : i32
    %c0_i32_1 = arith.constant 0 : i32
    return %c0_i32, %c0_i32_0 : i32, i32
  }
  func.func @transform_9(%arg0: i32) -> (i32, i32, i32) {
    %c0_i32 = arith.constant 0 : i32
    %c0_i32_0 = arith.constant 0 : i32
    %c0_i32_1 = arith.constant 0 : i32
    return %arg0, %c0_i32, %c0_i32_0 : i32, i32, i32
  }
}

</mosaic_0001>

<llo_original>
// kernel: tpu_custom_call.1
$region0: #{tpu_custom_call.1}
  #allocation0 [shape = 'u32[]', space=smem, size = 0x4, offset = 0x4, fixed_abs, tag = 'smem constant byte address 0x4 - core index']
  #allocation1 [shape = 'u32[144,128]{1,0:T(1,128)}', space=vmem, size = 0x12000, scoped, tag = 'internal scratch']
  #allocation2 [shape = 'f32[18,18,32]{2,1,0:T(8,128)}', space=vmem, size = 0x36000, scoped, tag = 'scratch operand']
  %s0 = inlined_call_operand.vmem [shape: f32[2,256,8], index: 0, kind: input, shape index: {}]
  %s1 = inlined_call_operand.vmem [shape: f32[8,32], index: 1, kind: input, shape index: {}]
  %s2 = inlined_call_operand.vmem [shape: f32[1,32], index: 2, kind: input, shape index: {}]
  %s3 = inlined_call_operand.vmem [shape: f32[9,32], index: 3, kind: input, shape index: {}]
  %s4 = inlined_call_operand.vmem [shape: f32[1,32], index: 4, kind: input, shape index: {}]
  %s5 = inlined_call_operand.vmem [shape: f32[32,2], index: 5, kind: input, shape index: {}]
  %s6 = inlined_call_operand.vmem [shape: f32[2,32], index: 6, kind: input, shape index: {}]
  %s7 = inlined_call_operand.vmem [shape: f32[32,16], index: 7, kind: input, shape index: {}]
  %s8 = inlined_call_operand.vmem [shape: f32[1,16], index: 8, kind: input, shape index: {}]
  %s9 = inlined_call_operand.vmem [shape: f32[2,256,16], index: 9, kind: output, shape index: {}]
  %s10 = sld [smem:[#allocation0]]
  $region69: #{tpu_custom_call.1} parent=0
    _
  %s12 = ssub.s32 1, %s10
  %s13 = scalar_select 0, %s12, %s10
  loop: start=0, step=1, limit=4
  $region2: #{tpu_custom_call.1} parent=0 // loop_pre_header
    _
  $region3: #{tpu_custom_call.1} parent=0 // loop_header
    %s15 = sphi 0, %s19
    %p16 = scmp.ge.s32.totalorder %s15, 4
    %s25 = sphi 0, %s27
    %s28 = sphi 0, %s25
    %s29 = sphi 0, %s28
    %s45 = sphi 0, %s29
    %s49 = sphi 0, %s49
    %s51 = sphi 0, %s49
    %s52 = sphi 0, %s51
    %s66 = sphi 0, %s52
    %s70 = sphi 0, %s70
    %s72 = sphi 0, %s70
    %s73 = sphi 0, %s72
    %s87 = sphi 0, %s73
    %s91 = sphi 0, %s91
    %s93 = sphi 0, %s91
    %s94 = sphi 0, %s93
    %s108 = sphi 0, %s94
    %s112 = sphi 0, %s112
    %s114 = sphi 0, %s112
    %s115 = sphi 0, %s114
    %s129 = sphi 0, %s115
    %s133 = sphi 0, %s133
    %s135 = sphi 0, %s133
    %s136 = sphi 0, %s135
    %s150 = sphi 0, %s136
    %s154 = sphi 0, %s154
    %s156 = sphi 0, %s154
    %s157 = sphi 0, %s156
    %s171 = sphi 0, %s157
    %s175 = sphi 0, %s175
    %s177 = sphi 0, %s175
    %s178 = sphi 0, %s177
    %s192 = sphi 0, %s178
    %s196 = sphi 0, %s196
    %s198 = sphi 0, %s196
    %s199 = sphi 0, %s198
    %s213 = sphi 0, %s199
    %s219 = sphi 0, %s221
    %s222 = sphi 0, %s219
    %s223 = sphi 0, %s222
    %s239 = sphi 0, %s223
  $region4: #{tpu_custom_call.1} parent=0 // loop_header_branch
    %18 = sbr.rel (%p16) target = $region8
  $region5: #{tpu_custom_call.1} parent=0 // loop_body
    %s20 = ssub.s32 %s15, 1
    %s21 = ssub.s32 %s15, 2
    %s22 = sadd.s32 %s15, 1
    %s23 = ssub.s32 %s15, %s22
    %p24 = scmp.eq.s32.totalorder %s23, 0
    %s26 = sadd.s32 %s25, 1
    %s27 = scalar_select %p24, %s25, %s26
    %p30 = pneg %p24
    %p31 = scmp.eq.s32.totalorder %s15, 1
    %p32 = por %p30, %p31
    %p33 = scmp.ne.s32.totalorder %s25, %s28
    %p34 = scmp.eq.s32.totalorder %s15, 0
    %p35 = por %p33, %p34
    %p36 = scmp.ne.s32.totalorder %s25, %s28
    %p37 = scmp.eq.s32.totalorder %s20, 1
    %p38 = por %p36, %p37
    %p39 = scmp.ne.s32.totalorder %s28, %s29
    %p40 = scmp.eq.s32.totalorder %s20, 0
    %p41 = por %p39, %p40
    %p42 = scmp.ne.s32.totalorder %s28, %s29
    %p43 = scmp.eq.s32.totalorder %s21, 1
    %p44 = por %p42, %p43
    %p46 = scmp.ne.s32.totalorder %s29, %s45
    %p47 = scmp.eq.s32.totalorder %s21, 0
    %p48 = por %p46, %p47
    %s50 = sadd.s32 %s49, 1
    %p53 = scmp.eq.s32.totalorder %s15, 1
    %p54 = scmp.ne.s32.totalorder %s49, %s51
    %p55 = scmp.eq.s32.totalorder %s15, 0
    %p56 = por %p54, %p55
    %p57 = scmp.ne.s32.totalorder %s49, %s51
    %p58 = scmp.eq.s32.totalorder %s20, 1
    %p59 = por %p57, %p58
    %p60 = scmp.ne.s32.totalorder %s51, %s52
    %p61 = scmp.eq.s32.totalorder %s20, 0
    %p62 = por %p60, %p61
    %p63 = scmp.ne.s32.totalorder %s51, %s52
    %p64 = scmp.eq.s32.totalorder %s21, 1
    %p65 = por %p63, %p64
    %p67 = scmp.ne.s32.totalorder %s52, %s66
    %p68 = scmp.eq.s32.totalorder %s21, 0
    %p69 = por %p67, %p68
    %s71 = sadd.s32 %s70, 1
    %p74 = scmp.eq.s32.totalorder %s15, 1
    %p75 = scmp.ne.s32.totalorder %s70, %s72
    %p76 = scmp.eq.s32.totalorder %s15, 0
    %p77 = por %p75, %p76
    %p78 = scmp.ne.s32.totalorder %s70, %s72
    %p79 = scmp.eq.s32.totalorder %s20, 1
    %p80 = por %p78, %p79
    %p81 = scmp.ne.s32.totalorder %s72, %s73
    %p82 = scmp.eq.s32.totalorder %s20, 0
    %p83 = por %p81, %p82
    %p84 = scmp.ne.s32.totalorder %s72, %s73
    %p85 = scmp.eq.s32.totalorder %s21, 1
    %p86 = por %p84, %p85
    %p88 = scmp.ne.s32.totalorder %s73, %s87
    %p89 = scmp.eq.s32.totalorder %s21, 0
    %p90 = por %p88, %p89
    %s92 = sadd.s32 %s91, 1
    %p95 = scmp.eq.s32.totalorder %s15, 1
    %p96 = scmp.ne.s32.totalorder %s91, %s93
    %p97 = scmp.eq.s32.totalorder %s15, 0
    %p98 = por %p96, %p97
    %p99 = scmp.ne.s32.totalorder %s91, %s93
    %p100 = scmp.eq.s32.totalorder %s20, 1
    %p101 = por %p99, %p100
    %p102 = scmp.ne.s32.totalorder %s93, %s94
    %p103 = scmp.eq.s32.totalorder %s20, 0
    %p104 = por %p102, %p103
    %p105 = scmp.ne.s32.totalorder %s93, %s94
    %p106 = scmp.eq.s32.totalorder %s21, 1
    %p107 = por %p105, %p106
    %p109 = scmp.ne.s32.totalorder %s94, %s108
    %p110 = scmp.eq.s32.totalorder %s21, 0
    %p111 = por %p109, %p110
    %s113 = sadd.s32 %s112, 1
    %p116 = scmp.eq.s32.totalorder %s15, 1
    %p117 = scmp.ne.s32.totalorder %s112, %s114
    %p118 = scmp.eq.s32.totalorder %s15, 0
    %p119 = por %p117, %p118
    %p120 = scmp.ne.s32.totalorder %s112, %s114
    %p121 = scmp.eq.s32.totalorder %s20, 1
    %p122 = por %p120, %p121
    %p123 = scmp.ne.s32.totalorder %s114, %s115
    %p124 = scmp.eq.s32.totalorder %s20, 0
    %p125 = por %p123, %p124
    %p126 = scmp.ne.s32.totalorder %s114, %s115
    %p127 = scmp.eq.s32.totalorder %s21, 1
    %p128 = por %p126, %p127
    %p130 = scmp.ne.s32.totalorder %s115, %s129
    %p131 = scmp.eq.s32.totalorder %s21, 0
    %p132 = por %p130, %p131
    %s134 = sadd.s32 %s133, 1
    %p137 = scmp.eq.s32.totalorder %s15, 1
    %p138 = scmp.ne.s32.totalorder %s133, %s135
    %p139 = scmp.eq.s32.totalorder %s15, 0
    %p140 = por %p138, %p139
    %p141 = scmp.ne.s32.totalorder %s133, %s135
    %p142 = scmp.eq.s32.totalorder %s20, 1
    %p143 = por %p141, %p142
    %p144 = scmp.ne.s32.totalorder %s135, %s136
    %p145 = scmp.eq.s32.totalorder %s20, 0
    %p146 = por %p144, %p145
    %p147 = scmp.ne.s32.totalorder %s135, %s136
    %p148 = scmp.eq.s32.totalorder %s21, 1
    %p149 = por %p147, %p148
    %p151 = scmp.ne.s32.totalorder %s136, %s150
    %p152 = scmp.eq.s32.totalorder %s21, 0
    %p153 = por %p151, %p152
    %s155 = sadd.s32 %s154, 1
    %p158 = scmp.eq.s32.totalorder %s15, 1
    %p159 = scmp.ne.s32.totalorder %s154, %s156
    %p160 = scmp.eq.s32.totalorder %s15, 0
    %p161 = por %p159, %p160
    %p162 = scmp.ne.s32.totalorder %s154, %s156
    %p163 = scmp.eq.s32.totalorder %s20, 1
    %p164 = por %p162, %p163
    %p165 = scmp.ne.s32.totalorder %s156, %s157
    %p166 = scmp.eq.s32.totalorder %s20, 0
    %p167 = por %p165, %p166
    %p168 = scmp.ne.s32.totalorder %s156, %s157
    %p169 = scmp.eq.s32.totalorder %s21, 1
    %p170 = por %p168, %p169
    %p172 = scmp.ne.s32.totalorder %s157, %s171
    %p173 = scmp.eq.s32.totalorder %s21, 0
    %p174 = por %p172, %p173
    %s176 = sadd.s32 %s175, 1
    %p179 = scmp.eq.s32.totalorder %s15, 1
    %p180 = scmp.ne.s32.totalorder %s175, %s177
    %p181 = scmp.eq.s32.totalorder %s15, 0
    %p182 = por %p180, %p181
    %p183 = scmp.ne.s32.totalorder %s175, %s177
    %p184 = scmp.eq.s32.totalorder %s20, 1
    %p185 = por %p183, %p184
    %p186 = scmp.ne.s32.totalorder %s177, %s178
    %p187 = scmp.eq.s32.totalorder %s20, 0
    %p188 = por %p186, %p187
    %p189 = scmp.ne.s32.totalorder %s177, %s178
    %p190 = scmp.eq.s32.totalorder %s21, 1
    %p191 = por %p189, %p190
    %p193 = scmp.ne.s32.totalorder %s178, %s192
    %p194 = scmp.eq.s32.totalorder %s21, 0
    %p195 = por %p193, %p194
    %s197 = sadd.s32 %s196, 1
    %p200 = scmp.eq.s32.totalorder %s15, 1
    %p201 = scmp.ne.s32.totalorder %s196, %s198
    %p202 = scmp.eq.s32.totalorder %s15, 0
    %p203 = por %p201, %p202
    %p204 = scmp.ne.s32.totalorder %s196, %s198
    %p205 = scmp.eq.s32.totalorder %s20, 1
    %p206 = por %p204, %p205
    %p207 = scmp.ne.s32.totalorder %s198, %s199
    %p208 = scmp.eq.s32.totalorder %s20, 0
    %p209 = por %p207, %p208
    %p210 = scmp.ne.s32.totalorder %s198, %s199
    %p211 = scmp.eq.s32.totalorder %s21, 1
    %p212 = por %p210, %p211
    %p214 = scmp.ne.s32.totalorder %s199, %s213
    %p215 = scmp.eq.s32.totalorder %s21, 0
    %p216 = por %p214, %p215
    %s217 = ssub.s32 %s15, %s22
    %p218 = scmp.eq.s32.totalorder %s217, 0
    %s220 = sadd.s32 %s219, 1
    %s221 = scalar_select %p218, %s219, %s220
    %p224 = pneg %p218
    %p225 = scmp.eq.s32.totalorder %s15, 1
    %p226 = por %p224, %p225
    %p227 = scmp.ne.s32.totalorder %s219, %s222
    %p228 = scmp.eq.s32.totalorder %s15, 0
    %p229 = por %p227, %p228
    %p230 = scmp.ne.s32.totalorder %s219, %s222
    %p231 = scmp.eq.s32.totalorder %s20, 1
    %p232 = por %p230, %p231
    %p233 = scmp.ne.s32.totalorder %s222, %s223
    %p234 = scmp.eq.s32.totalorder %s20, 0
    %p235 = por %p233, %p234
    %p236 = scmp.ne.s32.totalorder %s222, %s223
    %p237 = scmp.eq.s32.totalorder %s21, 1
    %p238 = por %p236, %p237
    %p240 = scmp.ne.s32.totalorder %s223, %s239
    %p241 = scmp.eq.s32.totalorder %s21, 0
    %p242 = por %p240, %p241
    %p243 = scmp.le.s32.totalorder 1, %s15
    %p244 = scmp.lt.s32.totalorder %s15, 3
    %p245 = pnand %p243, %p244
    %p246 = pneg %p245
    // Predicated region
    $region9: #{tpu_custom_call.1} parent=5 // pred_check
      _
    $region10: #{tpu_custom_call.1} parent=5 // pred_check_branch
      %248 = sbr.rel (%p245) target = $region12
    $region11: #{tpu_custom_call.1} parent=5 // pred_region
      %s249 = ssub.s32 %s15, 1
      // Predicated region
      $region13: #{tpu_custom_call.1} parent=11 // pred_check
        %p250 = pneg %p62
      $region14: #{tpu_custom_call.1} parent=11 // pred_check_branch
        %252 = sbr.rel (%p250) target = $region16
      $region15: #{tpu_custom_call.1} parent=11 // pred_region
        _
      $region16: #{tpu_custom_call.1} parent=11 // pred_fallthru
        _
      // Predicated region
      $region17: #{tpu_custom_call.1} parent=11 // pred_check
        %p253 = pneg %p83
      $region18: #{tpu_custom_call.1} parent=11 // pred_check_branch
        %255 = sbr.rel (%p253) target = $region20
      $region19: #{tpu_custom_call.1} parent=11 // pred_region
        _
      $region20: #{tpu_custom_call.1} parent=11 // pred_fallthru
        _
      // Predicated region
      $region21: #{tpu_custom_call.1} parent=11 // pred_check
        %p256 = pneg %p104
      $region22: #{tpu_custom_call.1} parent=11 // pred_check_branch
        %258 = sbr.rel (%p256) target = $region24
      $region23: #{tpu_custom_call.1} parent=11 // pred_region
        _
      $region24: #{tpu_custom_call.1} parent=11 // pred_fallthru
        _
      // Predicated region
      $region25: #{tpu_custom_call.1} parent=11 // pred_check
        %p259 = pneg %p125
      $region26: #{tpu_custom_call.1} parent=11 // pred_check_branch
        %261 = sbr.rel (%p259) target = $region28
      $region27: #{tpu_custom_call.1} parent=11 // pred_region
        _
      $region28: #{tpu_custom_call.1} parent=11 // pred_fallthru
        _
      // Predicated region
      $region29: #{tpu_custom_call.1} parent=11 // pred_check
        %p262 = pneg %p146
      $region30: #{tpu_custom_call.1} parent=11 // pred_check_branch
        %264 = sbr.rel (%p262) target = $region32
      $region31: #{tpu_custom_call.1} parent=11 // pred_region
        _
      $region32: #{tpu_custom_call.1} parent=11 // pred_fallthru
        _
      // Predicated region
      $region33: #{tpu_custom_call.1} parent=11 // pred_check
        %p265 = pneg %p167
      $region34: #{tpu_custom_call.1} parent=11 // pred_check_branch
        %267 = sbr.rel (%p265) target = $region36
      $region35: #{tpu_custom_call.1} parent=11 // pred_region
        _
      $region36: #{tpu_custom_call.1} parent=11 // pred_fallthru
        _
      // Predicated region
      $region37: #{tpu_custom_call.1} parent=11 // pred_check
        %p268 = pneg %p188
      $region38: #{tpu_custom_call.1} parent=11 // pred_check_branch
        %270 = sbr.rel (%p268) target = $region40
      $region39: #{tpu_custom_call.1} parent=11 // pred_region
        _
      $region40: #{tpu_custom_call.1} parent=11 // pred_fallthru
        _
      // Predicated region
      $region41: #{tpu_custom_call.1} parent=11 // pred_check
        %p271 = pneg %p209
      $region42: #{tpu_custom_call.1} parent=11 // pred_check_branch
        %273 = sbr.rel (%p271) target = $region44
      $region43: #{tpu_custom_call.1} parent=11 // pred_region
        _
      $region44: #{tpu_custom_call.1} parent=11 // pred_fallthru
        _
    $region12: #{tpu_custom_call.1} parent=5 // pred_fallthru
      _
    %p274 = scmp.lt.s32.totalorder %s15, 2
    // Predicated region
    $region45: #{tpu_custom_call.1} parent=5 // pred_check
      %p275 = pneg %p274
    $region46: #{tpu_custom_call.1} parent=5 // pred_check_branch
      %277 = sbr.rel (%p275) target = $region48
    $region47: #{tpu_custom_call.1} parent=5 // pred_region
      // Predicated region
      $region49: #{tpu_custom_call.1} parent=47 // pred_check
        %p278 = pneg %p35
      $region50: #{tpu_custom_call.1} parent=47 // pred_check_branch
        %280 = sbr.rel (%p278) target = $region52
      $region51: #{tpu_custom_call.1} parent=47 // pred_region
        %p281 = scmp.lt.s32.totalorder %s15, 1
        %s282 = scalar_select %p281, %s15, 1
        %s283 = smul.addr %s282, 32
        %s284 = smul.addr %s283, 8
        %s285 = scalar_lea.vmem %s0, %s284
      $region52: #{tpu_custom_call.1} parent=47 // pred_fallthru
        _
    $region48: #{tpu_custom_call.1} parent=5 // pred_fallthru
      _
    %p286 = scmp.le.s32.totalorder 1, %s15
    %p287 = scmp.lt.s32.totalorder %s15, 3
    %p288 = pnand %p286, %p287
    %p289 = pneg %p288
    // Predicated region
    $region53: #{tpu_custom_call.1} parent=5 // pred_check
      _
    $region54: #{tpu_custom_call.1} parent=5 // pred_check_branch
      %291 = sbr.rel (%p288) target = $region56
    $region55: #{tpu_custom_call.1} parent=5 // pred_region
      %s292 = ssub.s32 %s15, 1
      %p293 = scmp.lt.s32.totalorder %s20, 1
      %s294 = scalar_select %p293, %s20, 1
      %s295 = smul.addr %s294, 32
      %s296 = smul.addr %s295, 8
      %s297 = scalar_lea.vmem %s0, %s296
      %p298 = pneg %p41
      %p299 = pneg %p38
      %p300 = pneg %p62
      %p301 = pneg %p59
      %p302 = pneg %p83
      %p303 = pneg %p80
      %p304 = pneg %p104
      %p305 = pneg %p101
      %p306 = pneg %p125
      %p307 = pneg %p122
      %p308 = pneg %p146
      %p309 = pneg %p143
      %p310 = pneg %p167
      %p311 = pneg %p164
      %p312 = pneg %p188
      %p313 = pneg %p185
      %p314 = pneg %p209
      %p315 = pneg %p206
      %p316 = pneg %p235
      %p317 = pneg %p232
      %p318 = scmp.lt.s32.totalorder %s20, 1
      %s319 = scalar_select %p318, %s20, 1
      %s320 = smul.addr %s319, 32
      %s321 = smul.addr %s320, 8
      %s322 = scalar_lea.vmem %s9, %s321
      %p323 = scmp.lt.s32.totalorder %s20, 1
      %s324 = scalar_select %p323, %s20, 1
      %s325 = smul.addr %s324, 32
      %s326 = smul.addr %s325, 8
      %s327 = scalar_lea.vmem %s0, %s326
      %p328 = scmp.lt.s32.totalorder %s20, 1
      %s329 = scalar_select %p328, %s20, 1
      %s330 = smul.addr %s329, 32
      %s331 = smul.addr %s330, 8
      %s332 = scalar_lea.vmem %s9, %s331
      %v333 = vld [vmem:[%s327] sm:$0xff]
      %v334 = vld [vmem:[%s327 + $0x8] sm:$0xff]
      %v335 = vld [vmem:[%s327 + $0x10] sm:$0xff]
      %v336 = vld [vmem:[%s327 + $0x18] sm:$0xff]
      %v337 = vld [vmem:[%s327 + $0x20] sm:$0xff]
      %v338 = vld [vmem:[%s327 + $0x28] sm:$0xff]
      %v339 = vld [vmem:[%s327 + $0x30] sm:$0xff]
      %v340 = vld [vmem:[%s327 + $0x38] sm:$0xff]
      %v341 = vld [vmem:[%s327 + $0x40] sm:$0xff]
      %v342 = vld [vmem:[%s327 + $0x48] sm:$0xff]
      %v343 = vld [vmem:[%s327 + $0x50] sm:$0xff]
      %v344 = vld [vmem:[%s327 + $0x58] sm:$0xff]
      %v345 = vld [vmem:[%s327 + $0x60] sm:$0xff]
      %v346 = vld [vmem:[%s327 + $0x68] sm:$0xff]
      %v347 = vld [vmem:[%s327 + $0x70] sm:$0xff]
      %v348 = vld [vmem:[%s327 + $0x78] sm:$0xff]
      %v349 = vld [vmem:[%s327 + $0x80] sm:$0xff]
      %v350 = vld [vmem:[%s327 + $0x88] sm:$0xff]
      %v351 = vld [vmem:[%s327 + $0x90] sm:$0xff]
      %v352 = vld [vmem:[%s327 + $0x98] sm:$0xff]
      %v353 = vld [vmem:[%s327 + $0xa0] sm:$0xff]
      %v354 = vld [vmem:[%s327 + $0xa8] sm:$0xff]
      %v355 = vld [vmem:[%s327 + $0xb0] sm:$0xff]
      %v356 = vld [vmem:[%s327 + $0xb8] sm:$0xff]
      %v357 = vld [vmem:[%s327 + $0xc0] sm:$0xff]
      %v358 = vld [vmem:[%s327 + $0xc8] sm:$0xff]
      %v359 = vld [vmem:[%s327 + $0xd0] sm:$0xff]
      %v360 = vld [vmem:[%s327 + $0xd8] sm:$0xff]
      %v361 = vld [vmem:[%s327 + $0xe0] sm:$0xff]
      %v362 = vld [vmem:[%s327 + $0xe8] sm:$0xff]
      %v363 = vld [vmem:[%s327 + $0xf0] sm:$0xff]
      %v364 = vld [vmem:[%s327 + $0xf8] sm:$0xff]
      %v365 = vld [vmem:[%s1] sm:$0xff]
      %v366 = vld [vmem:[%s2] sm:$0x1]
      %v368 = vlaneseq
      %v369 = vshrl.u32 %v368, 7
      %v370 = vsub.s32 0, %v369
      %v371 = vrot.slane %v366, %v370
      %vm373 = vcmask 64512
      %v375 = vsel %vm373, %v333, 0
      %v378 = vsel %vm373, %v334, 0
      %v381 = vsel %vm373, %v335, 0
      %v384 = vsel %vm373, %v336, 0
      %v387 = vsel %vm373, %v337, 0
      %v390 = vsel %vm373, %v338, 0
      %v393 = vsel %vm373, %v339, 0
      %v396 = vsel %vm373, %v340, 0
      %v399 = vsel %vm373, %v341, 0
      %v402 = vsel %vm373, %v342, 0
      %v405 = vsel %vm373, %v343, 0
      %v408 = vsel %vm373, %v344, 0
      %v411 = vsel %vm373, %v345, 0
      %v414 = vsel %vm373, %v346, 0
      %v417 = vsel %vm373, %v347, 0
      %v420 = vsel %vm373, %v348, 0
      %v423 = vsel %vm373, %v349, 0
      %v426 = vsel %vm373, %v350, 0
      %v429 = vsel %vm373, %v351, 0
      %v432 = vsel %vm373, %v352, 0
      %v435 = vsel %vm373, %v353, 0
      %v438 = vsel %vm373, %v354, 0
      %v441 = vsel %vm373, %v355, 0
      %v444 = vsel %vm373, %v356, 0
      %v447 = vsel %vm373, %v357, 0
      %v450 = vsel %vm373, %v358, 0
      %v453 = vsel %vm373, %v359, 0
      %v456 = vsel %vm373, %v360, 0
      %v459 = vsel %vm373, %v361, 0
      %v462 = vsel %vm373, %v362, 0
      %v465 = vsel %vm373, %v363, 0
      %v468 = vsel %vm373, %v364, 0
      %470 = vmatprep.subr.mxu0 0.0
      %471 = vmatpush1.msra.mxu0 %v365
      %472 = vmatprep.subr.mxu0 0.0
      %473 = vmatpush1.msra.mxu0 0.0
      %474 = vmatprep.subr.mxu0 0.0
      %475 = vmatpush1.msra.mxu0 0.0
      %476 = vmatprep.subr.mxu0 0.0
      %477 = vmatpush1.msra.mxu0 0.0
      %478 = vmatprep.subr.mxu0 0.0
      %479 = vmatpush1.msra.mxu0 0.0
      %480 = vmatprep.subr.mxu0 0.0
      %481 = vmatpush1.msra.mxu0 0.0
      %482 = vmatprep.subr.mxu0 0.0
      %483 = vmatpush1.msra.mxu0 0.0
      %484 = vmatprep.subr.mxu0 0.0
      %485 = vmatpush1.msra.mxu0 0.0
      %486 = vmatprep.subr.mxu0 0.0
      %487 = vmatpush1.msra.mxu0 0.0
      %488 = vmatprep.subr.mxu0 0.0
      %489 = vmatpush1.msra.mxu0 0.0
      %490 = vmatprep.subr.mxu0 0.0
      %491 = vmatpush1.msra.mxu0 0.0
      %492 = vmatprep.subr.mxu0 0.0
      %493 = vmatpush1.msra.mxu0 0.0
      %494 = vmatprep.subr.mxu0 0.0
      %495 = vmatpush1.msra.mxu0 0.0
      %496 = vmatprep.subr.mxu0 0.0
      %497 = vmatpush1.msra.mxu0 0.0
      %498 = vmatprep.subr.mxu0 0.0
      %499 = vmatpush1.msra.mxu0 0.0
      %500 = vmatprep.subr.mxu0 0.0
      %501 = vmatpush1.msra.mxu0 0.0
      %502 = vmatprep.subr.mxu0 0.0
      %503 = vmatpush1.msra.mxu0 0.0
      %504 = vmatprep.subr.mxu0 0.0
      %505 = vmatpush1.msra.mxu0 0.0
      %506 = vmatprep.subr.mxu0 0.0
      %507 = vmatpush1.msra.mxu0 0.0
      %508 = vmatprep.subr.mxu0 0.0
      %509 = vmatpush1.msra.mxu0 0.0
      %510 = vmatprep.subr.mxu0 0.0
      %511 = vmatpush1.msra.mxu0 0.0
      %512 = vmatprep.subr.mxu0 0.0
      %513 = vmatpush1.msra.mxu0 0.0
      %514 = vmatprep.subr.mxu0 0.0
      %515 = vmatpush1.msra.mxu0 0.0
      %516 = vmatprep.subr.mxu0 0.0
      %517 = vmatpush1.msra.mxu0 0.0
      %518 = vmatprep.subr.mxu0 0.0
      %519 = vmatpush1.msra.mxu0 0.0
      %520 = vmatprep.subr.mxu0 0.0
      %521 = vmatpush1.msra.mxu0 0.0
      %522 = vmatprep.subr.mxu0 0.0
      %523 = vmatpush1.msra.mxu0 0.0
      %524 = vmatprep.subr.mxu0 0.0
      %525 = vmatpush1.msra.mxu0 0.0
      %526 = vmatprep.subr.mxu0 0.0
      %527 = vmatpush1.msra.mxu0 0.0
      %528 = vmatprep.subr.mxu0 0.0
      %529 = vmatpush1.msra.mxu0 0.0
      %530 = vmatprep.subr.mxu0 0.0
      %531 = vmatpush1.msra.mxu0 0.0
      %532 = vmatprep.subr.mxu0 0.0
      %533 = vmatpush1.msra.mxu0 0.0
      %534 = vmatprep.mubr.f32.mxu0 0.0
      %535 = vmatmul.mubr.f32.gmra.mrb[0].mxu0 %v375
      %v536 = vpop.f32.mrb[0].mxu0
      %v537 = vadd.f32 %v371, %v536
      %v538 = vpop.f32.mrb[0].mxu0
      %539 = vmatprep.mubr.f32.mxu0 0.0
      %540 = vmatmul.mubr.f32.gmra.mrb[0].mxu0 %v378
      %v541 = vpop.f32.mrb[0].mxu0
      %v542 = vadd.f32 %v371, %v541
      %v543 = vpop.f32.mrb[0].mxu0
      %544 = vmatprep.mubr.f32.mxu0 0.0
      %545 = vmatmul.mubr.f32.gmra.mrb[0].mxu0 %v381
      %v546 = vpop.f32.mrb[0].mxu0
      %v547 = vadd.f32 %v371, %v546
      %v548 = vpop.f32.mrb[0].mxu0
      %549 = vmatprep.mubr.f32.mxu0 0.0
      %550 = vmatmul.mubr.f32.gmra.mrb[0].mxu0 %v384
      %v551 = vpop.f32.mrb[0].mxu0
      %v552 = vadd.f32 %v371, %v551
      %v553 = vpop.f32.mrb[0].mxu0
      %554 = vmatprep.mubr.f32.mxu0 0.0
      %555 = vmatmul.mubr.f32.gmra.mrb[0].mxu0 %v387
      %v556 = vpop.f32.mrb[0].mxu0
      %v557 = vadd.f32 %v371, %v556
      %v558 = vpop.f32.mrb[0].mxu0
      %559 = vmatprep.mubr.f32.mxu0 0.0
      %560 = vmatmul.mubr.f32.gmra.mrb[0].mxu0 %v390
      %v561 = vpop.f32.mrb[0].mxu0
      %v562 = vadd.f32 %v371, %v561
      %v563 = vpop.f32.mrb[0].mxu0
      %564 = vmatprep.mubr.f32.mxu0 0.0
      %565 = vmatmul.mubr.f32.gmra.mrb[0].mxu0 %v393
      %v566 = vpop.f32.mrb[0].mxu0
      %v567 = vadd.f32 %v371, %v566
      %v568 = vpop.f32.mrb[0].mxu0
      %569 = vmatprep.mubr.f32.mxu0 0.0
      %570 = vmatmul.mubr.f32.gmra.mrb[0].mxu0 %v396
      %v571 = vpop.f32.mrb[0].mxu0
      %v572 = vadd.f32 %v371, %v571
      %v573 = vpop.f32.mrb[0].mxu0
      %574 = vmatprep.mubr.f32.mxu0 0.0
      %575 = vmatmul.mubr.f32.gmra.mrb[0].mxu0 %v399
      %v576 = vpop.f32.mrb[0].mxu0
      %v577 = vadd.f32 %v371, %v576
      %v578 = vpop.f32.mrb[0].mxu0
      %579 = vmatprep.mubr.f32.mxu0 0.0
      %580 = vmatmul.mubr.f32.gmra.mrb[0].mxu0 %v402
      %v581 = vpop.f32.mrb[0].mxu0
      %v582 = vadd.f32 %v371, %v581
      %v583 = vpop.f32.mrb[0].mxu0
      %584 = vmatprep.mubr.f32.mxu0 0.0
      %585 = vmatmul.mubr.f32.gmra.mrb[0].mxu0 %v405
      %v586 = vpop.f32.mrb[0].mxu0
      %v587 = vadd.f32 %v371, %v586
      %v588 = vpop.f32.mrb[0].mxu0
      %589 = vmatprep.mubr.f32.mxu0 0.0
      %590 = vmatmul.mubr.f32.gmra.mrb[0].mxu0 %v408
      %v591 = vpop.f32.mrb[0].mxu0
      %v592 = vadd.f32 %v371, %v591
      %v593 = vpop.f32.mrb[0].mxu0
      %594 = vmatprep.mubr.f32.mxu0 0.0
      %595 = vmatmul.mubr.f32.gmra.mrb[0].mxu0 %v411
      %v596 = vpop.f32.mrb[0].mxu0
      %v597 = vadd.f32 %v371, %v596
      %v598 = vpop.f32.mrb[0].mxu0
      %599 = vmatprep.mubr.f32.mxu0 0.0
      %600 = vmatmul.mubr.f32.gmra.mrb[0].mxu0 %v414
      %v601 = vpop.f32.mrb[0].mxu0
      %v602 = vadd.f32 %v371, %v601
      %v603 = vpop.f32.mrb[0].mxu0
      %604 = vmatprep.mubr.f32.mxu0 0.0
      %605 = vmatmul.mubr.f32.gmra.mrb[0].mxu0 %v417
      %v606 = vpop.f32.mrb[0].mxu0
      %v607 = vadd.f32 %v371, %v606
      %v608 = vpop.f32.mrb[0].mxu0
      %609 = vmatprep.mubr.f32.mxu0 0.0
      %610 = vmatmul.mubr.f32.gmra.mrb[0].mxu0 %v420
      %v611 = vpop.f32.mrb[0].mxu0
      %v612 = vadd.f32 %v371, %v611
      %v613 = vpop.f32.mrb[0].mxu0
      %614 = vmatprep.mubr.f32.mxu0 0.0
      %615 = vmatmul.mubr.f32.gmra.mrb[0].mxu0 %v423
      %v616 = vpop.f32.mrb[0].mxu0
      %v617 = vadd.f32 %v371, %v616
      %v618 = vpop.f32.mrb[0].mxu0
      %619 = vmatprep.mubr.f32.mxu0 0.0
      %620 = vmatmul.mubr.f32.gmra.mrb[0].mxu0 %v426
      %v621 = vpop.f32.mrb[0].mxu0
      %v622 = vadd.f32 %v371, %v621
      %v623 = vpop.f32.mrb[0].mxu0
      %624 = vmatprep.mubr.f32.mxu0 0.0
      %625 = vmatmul.mubr.f32.gmra.mrb[0].mxu0 %v429
      %v626 = vpop.f32.mrb[0].mxu0
      %v627 = vadd.f32 %v371, %v626
      %v628 = vpop.f32.mrb[0].mxu0
      %629 = vmatprep.mubr.f32.mxu0 0.0
      %630 = vmatmul.mubr.f32.gmra.mrb[0].mxu0 %v432
      %v631 = vpop.f32.mrb[0].mxu0
      %v632 = vadd.f32 %v371, %v631
      %v633 = vpop.f32.mrb[0].mxu0
      %634 = vmatprep.mubr.f32.mxu0 0.0
      %635 = vmatmul.mubr.f32.gmra.mrb[0].mxu0 %v435
      %v636 = vpop.f32.mrb[0].mxu0
      %v637 = vadd.f32 %v371, %v636
      %v638 = vpop.f32.mrb[0].mxu0
      %639 = vmatprep.mubr.f32.mxu0 0.0
      %640 = vmatmul.mubr.f32.gmra.mrb[0].mxu0 %v438
      %v641 = vpop.f32.mrb[0].mxu0
      %v642 = vadd.f32 %v371, %v641
      %v643 = vpop.f32.mrb[0].mxu0
      %644 = vmatprep.mubr.f32.mxu0 0.0
      %645 = vmatmul.mubr.f32.gmra.mrb[0].mxu0 %v441
      %v646 = vpop.f32.mrb[0].mxu0
      %v647 = vadd.f32 %v371, %v646
      %v648 = vpop.f32.mrb[0].mxu0
      %649 = vmatprep.mubr.f32.mxu0 0.0
      %650 = vmatmul.mubr.f32.gmra.mrb[0].mxu0 %v444
      %v651 = vpop.f32.mrb[0].mxu0
      %v652 = vadd.f32 %v371, %v651
      %v653 = vpop.f32.mrb[0].mxu0
      %654 = vmatprep.mubr.f32.mxu0 0.0
      %655 = vmatmul.mubr.f32.gmra.mrb[0].mxu0 %v447
      %v656 = vpop.f32.mrb[0].mxu0
      %v657 = vadd.f32 %v371, %v656
      %v658 = vpop.f32.mrb[0].mxu0
      %659 = vmatprep.mubr.f32.mxu0 0.0
      %660 = vmatmul.mubr.f32.gmra.mrb[0].mxu0 %v450
      %v661 = vpop.f32.mrb[0].mxu0
      %v662 = vadd.f32 %v371, %v661
      %v663 = vpop.f32.mrb[0].mxu0
      %664 = vmatprep.mubr.f32.mxu0 0.0
      %665 = vmatmul.mubr.f32.gmra.mrb[0].mxu0 %v453
      %v666 = vpop.f32.mrb[0].mxu0
      %v667 = vadd.f32 %v371, %v666
      %v668 = vpop.f32.mrb[0].mxu0
      %669 = vmatprep.mubr.f32.mxu0 0.0
      %670 = vmatmul.mubr.f32.gmra.mrb[0].mxu0 %v456
      %v671 = vpop.f32.mrb[0].mxu0
      %v672 = vadd.f32 %v371, %v671
      %v673 = vpop.f32.mrb[0].mxu0
      %674 = vmatprep.mubr.f32.mxu0 0.0
      %675 = vmatmul.mubr.f32.gmra.mrb[0].mxu0 %v459
      %v676 = vpop.f32.mrb[0].mxu0
      %v677 = vadd.f32 %v371, %v676
      %v678 = vpop.f32.mrb[0].mxu0
      %679 = vmatprep.mubr.f32.mxu0 0.0
      %680 = vmatmul.mubr.f32.gmra.mrb[0].mxu0 %v462
      %v681 = vpop.f32.mrb[0].mxu0
      %v682 = vadd.f32 %v371, %v681
      %v683 = vpop.f32.mrb[0].mxu0
      %684 = vmatprep.mubr.f32.mxu0 0.0
      %685 = vmatmul.mubr.f32.gmra.mrb[0].mxu0 %v465
      %v686 = vpop.f32.mrb[0].mxu0
      %v687 = vadd.f32 %v371, %v686
      %v688 = vpop.f32.mrb[0].mxu0
      %689 = vmatprep.mubr.f32.mxu0 0.0
      %690 = vmatmul.mubr.f32.gmra.mrb[0].mxu0 %v468
      %v691 = vpop.f32.mrb[0].mxu0
      %v692 = vadd.f32 %v371, %v691
      %v693 = vpop.f32.mrb[0].mxu0
      %694 = vdwg.mxu0
      %v695 = vxor.u32 %v537, 2147483648
      %v696 = vxor.u32 %v542, 2147483648
      %v697 = vxor.u32 %v547, 2147483648
      %v698 = vxor.u32 %v552, 2147483648
      %v699 = vxor.u32 %v557, 2147483648
      %v700 = vxor.u32 %v562, 2147483648
      %v701 = vxor.u32 %v567, 2147483648
      %v702 = vxor.u32 %v572, 2147483648
      %v703 = vxor.u32 %v577, 2147483648
      %v704 = vxor.u32 %v582, 2147483648
      %v705 = vxor.u32 %v587, 2147483648
      %v706 = vxor.u32 %v592, 2147483648
      %v707 = vxor.u32 %v597, 2147483648
      %v708 = vxor.u32 %v602, 2147483648
      %v709 = vxor.u32 %v607, 2147483648
      %v710 = vxor.u32 %v612, 2147483648
      %v711 = vxor.u32 %v617, 2147483648
      %v712 = vxor.u32 %v622, 2147483648
      %v713 = vxor.u32 %v627, 2147483648
      %v714 = vxor.u32 %v632, 2147483648
      %v715 = vxor.u32 %v637, 2147483648
      %v716 = vxor.u32 %v642, 2147483648
      %v717 = vxor.u32 %v647, 2147483648
      %v718 = vxor.u32 %v652, 2147483648
      %v719 = vxor.u32 %v657, 2147483648
      %v720 = vxor.u32 %v662, 2147483648
      %v721 = vxor.u32 %v667, 2147483648
      %v722 = vxor.u32 %v672, 2147483648
      %v723 = vxor.u32 %v677, 2147483648
      %v724 = vxor.u32 %v682, 2147483648
      %v725 = vxor.u32 %v687, 2147483648
      %v726 = vxor.u32 %v692, 2147483648
      %v727 = vmul.f32 %v695, 1.442695
      %v728 = vpow.pop %v727
      %v729 = vmul.f32 %v696, 1.442695
      %v730 = vpow.pop %v729
      %v731 = vmul.f32 %v697, 1.442695
      %v732 = vpow.pop %v731
      %v733 = vmul.f32 %v698, 1.442695
      %v734 = vpow.pop %v733
      %v735 = vmul.f32 %v699, 1.442695
      %v736 = vpow.pop %v735
      %v737 = vmul.f32 %v700, 1.442695
      %v738 = vpow.pop %v737
      %v739 = vmul.f32 %v701, 1.442695
      %v740 = vpow.pop %v739
      %v741 = vmul.f32 %v702, 1.442695
      %v742 = vpow.pop %v741
      %v743 = vmul.f32 %v703, 1.442695
      %v744 = vpow.pop %v743
      %v745 = vmul.f32 %v704, 1.442695
      %v746 = vpow.pop %v745
      %v747 = vmul.f32 %v705, 1.442695
      %v748 = vpow.pop %v747
      %v749 = vmul.f32 %v706, 1.442695
      %v750 = vpow.pop %v749
      %v751 = vmul.f32 %v707, 1.442695
      %v752 = vpow.pop %v751
      %v753 = vmul.f32 %v708, 1.442695
      %v754 = vpow.pop %v753
      %v755 = vmul.f32 %v709, 1.442695
      %v756 = vpow.pop %v755
      %v757 = vmul.f32 %v710, 1.442695
      %v758 = vpow.pop %v757
      %v759 = vmul.f32 %v711, 1.442695
      %v760 = vpow.pop %v759
      %v761 = vmul.f32 %v712, 1.442695
      %v762 = vpow.pop %v761
      %v763 = vmul.f32 %v713, 1.442695
      %v764 = vpow.pop %v763
      %v765 = vmul.f32 %v714, 1.442695
      %v766 = vpow.pop %v765
      %v767 = vmul.f32 %v715, 1.442695
      %v768 = vpow.pop %v767
      %v769 = vmul.f32 %v716, 1.442695
      %v770 = vpow.pop %v769
      %v771 = vmul.f32 %v717, 1.442695
      %v772 = vpow.pop %v771
      %v773 = vmul.f32 %v718, 1.442695
      %v774 = vpow.pop %v773
      %v775 = vmul.f32 %v719, 1.442695
      %v776 = vpow.pop %v775
      %v777 = vmul.f32 %v720, 1.442695
      %v778 = vpow.pop %v777
      %v779 = vmul.f32 %v721, 1.442695
      %v780 = vpow.pop %v779
      %v781 = vmul.f32 %v722, 1.442695
      %v782 = vpow.pop %v781
      %v783 = vmul.f32 %v723, 1.442695
      %v784 = vpow.pop %v783
      %v785 = vmul.f32 %v724, 1.442695
      %v786 = vpow.pop %v785
      %v787 = vmul.f32 %v725, 1.442695
      %v788 = vpow.pop %v787
      %v789 = vmul.f32 %v726, 1.442695
      %v790 = vpow.pop %v789
      %v791 = vadd.f32 %v728, 1.0
      %v792 = vadd.f32 %v730, 1.0
      %v793 = vadd.f32 %v732, 1.0
      %v794 = vadd.f32 %v734, 1.0
      %v795 = vadd.f32 %v736, 1.0
      %v796 = vadd.f32 %v738, 1.0
      %v797 = vadd.f32 %v740, 1.0
      %v798 = vadd.f32 %v742, 1.0
      %v799 = vadd.f32 %v744, 1.0
      %v800 = vadd.f32 %v746, 1.0
      %v801 = vadd.f32 %v748, 1.0
      %v802 = vadd.f32 %v750, 1.0
      %v803 = vadd.f32 %v752, 1.0
      %v804 = vadd.f32 %v754, 1.0
      %v805 = vadd.f32 %v756, 1.0
      %v806 = vadd.f32 %v758, 1.0
      %v807 = vadd.f32 %v760, 1.0
      %v808 = vadd.f32 %v762, 1.0
      %v809 = vadd.f32 %v764, 1.0
      %v810 = vadd.f32 %v766, 1.0
      %v811 = vadd.f32 %v768, 1.0
      %v812 = vadd.f32 %v770, 1.0
      %v813 = vadd.f32 %v772, 1.0
      %v814 = vadd.f32 %v774, 1.0
      %v815 = vadd.f32 %v776, 1.0
      %v816 = vadd.f32 %v778, 1.0
      %v817 = vadd.f32 %v780, 1.0
      %v818 = vadd.f32 %v782, 1.0
      %v819 = vadd.f32 %v784, 1.0
      %v820 = vadd.f32 %v786, 1.0
      %v821 = vadd.f32 %v788, 1.0
      %v822 = vadd.f32 %v790, 1.0
      %v823 = vrcp.pop %v791
      %v824 = vmul.f32 1.0, %v823
      %v825 = vrcp.pop %v792
      %v826 = vmul.f32 1.0, %v825
      %v827 = vrcp.pop %v793
      %v828 = vmul.f32 1.0, %v827
      %v829 = vrcp.pop %v794
      %v830 = vmul.f32 1.0, %v829
      %v831 = vrcp.pop %v795
      %v832 = vmul.f32 1.0, %v831
      %v833 = vrcp.pop %v796
      %v834 = vmul.f32 1.0, %v833
      %v835 = vrcp.pop %v797
      %v836 = vmul.f32 1.0, %v835
      %v837 = vrcp.pop %v798
      %v838 = vmul.f32 1.0, %v837
      %v839 = vrcp.pop %v799
      %v840 = vmul.f32 1.0, %v839
      %v841 = vrcp.pop %v800
      %v842 = vmul.f32 1.0, %v841
      %v843 = vrcp.pop %v801
      %v844 = vmul.f32 1.0, %v843
      %v845 = vrcp.pop %v802
      %v846 = vmul.f32 1.0, %v845
      %v847 = vrcp.pop %v803
      %v848 = vmul.f32 1.0, %v847
      %v849 = vrcp.pop %v804
      %v850 = vmul.f32 1.0, %v849
      %v851 = vrcp.pop %v805
      %v852 = vmul.f32 1.0, %v851
      %v853 = vrcp.pop %v806
      %v854 = vmul.f32 1.0, %v853
      %v855 = vrcp.pop %v807
      %v856 = vmul.f32 1.0, %v855
      %v857 = vrcp.pop %v808
      %v858 = vmul.f32 1.0, %v857
      %v859 = vrcp.pop %v809
      %v860 = vmul.f32 1.0, %v859
      %v861 = vrcp.pop %v810
      %v862 = vmul.f32 1.0, %v861
      %v863 = vrcp.pop %v811
      %v864 = vmul.f32 1.0, %v863
      %v865 = vrcp.pop %v812
      %v866 = vmul.f32 1.0, %v865
      %v867 = vrcp.pop %v813
      %v868 = vmul.f32 1.0, %v867
      %v869 = vrcp.pop %v814
      %v870 = vmul.f32 1.0, %v869
      %v871 = vrcp.pop %v815
      %v872 = vmul.f32 1.0, %v871
      %v873 = vrcp.pop %v816
      %v874 = vmul.f32 1.0, %v873
      %v875 = vrcp.pop %v817
      %v876 = vmul.f32 1.0, %v875
      %v877 = vrcp.pop %v818
      %v878 = vmul.f32 1.0, %v877
      %v879 = vrcp.pop %v819
      %v880 = vmul.f32 1.0, %v879
      %v881 = vrcp.pop %v820
      %v882 = vmul.f32 1.0, %v881
      %v883 = vrcp.pop %v821
      %v884 = vmul.f32 1.0, %v883
      %v885 = vrcp.pop %v822
      %v886 = vmul.f32 1.0, %v885
      %v887 = vmul.f32 %v537, %v824
      %v888 = vmul.f32 %v542, %v826
      %v889 = vmul.f32 %v547, %v828
      %v890 = vmul.f32 %v552, %v830
      %v891 = vmul.f32 %v557, %v832
      %v892 = vmul.f32 %v562, %v834
      %v893 = vmul.f32 %v567, %v836
      %v894 = vmul.f32 %v572, %v838
      %v895 = vmul.f32 %v577, %v840
      %v896 = vmul.f32 %v582, %v842
      %v897 = vmul.f32 %v587, %v844
      %v898 = vmul.f32 %v592, %v846
      %v899 = vmul.f32 %v597, %v848
      %v900 = vmul.f32 %v602, %v850
      %v901 = vmul.f32 %v607, %v852
      %v902 = vmul.f32 %v612, %v854
      %v903 = vmul.f32 %v617, %v856
      %v904 = vmul.f32 %v622, %v858
      %v905 = vmul.f32 %v627, %v860
      %v906 = vmul.f32 %v632, %v862
      %v907 = vmul.f32 %v637, %v864
      %v908 = vmul.f32 %v642, %v866
      %v909 = vmul.f32 %v647, %v868
      %v910 = vmul.f32 %v652, %v870
      %v911 = vmul.f32 %v657, %v872
      %v912 = vmul.f32 %v662, %v874
      %v913 = vmul.f32 %v667, %v876
      %v914 = vmul.f32 %v672, %v878
      %v915 = vmul.f32 %v677, %v880
      %v916 = vmul.f32 %v682, %v882
      %v917 = vmul.f32 %v687, %v884
      %v918 = vmul.f32 %v692, %v886
      %vm919 = vcmask 261120
      %920 = vst.msk [vmem:[#allocation2] sm:$0xff] %vm919, 0.0
      %921 = vst.msk [vmem:[#allocation2 + $0x8] sm:$0xff] %vm919, 0.0
      %vm922 = vcmask 254976
      %923 = vst.msk [vmem:[#allocation2 + $0x10] sm:$0x3] %vm922, 0.0
      %924 = vst.msk [vmem:[#allocation2 + $0x18] sm:$0xff] %vm919, 0.0
      %925 = vst.msk [vmem:[#allocation2 + $0x20] sm:$0xff] %vm919, 0.0
      %926 = vst.msk [vmem:[#allocation2 + $0x28] sm:$0x3] %vm922, 0.0
      %927 = vst.msk [vmem:[#allocation2 + $0x30] sm:$0xff] %vm919, 0.0
      %928 = vst.msk [vmem:[#allocation2 + $0x38] sm:$0xff] %vm919, 0.0
      %929 = vst.msk [vmem:[#allocation2 + $0x40] sm:$0x3] %vm922, 0.0
      %930 = vst.msk [vmem:[#allocation2 + $0x48] sm:$0xff] %vm919, 0.0
      %931 = vst.msk [vmem:[#allocation2 + $0x50] sm:$0xff] %vm919, 0.0
      %932 = vst.msk [vmem:[#allocation2 + $0x58] sm:$0x3] %vm922, 0.0
      %933 = vst.msk [vmem:[#allocation2 + $0x60] sm:$0xff] %vm919, 0.0
      %934 = vst.msk [vmem:[#allocation2 + $0x68] sm:$0xff] %vm919, 0.0
      %935 = vst.msk [vmem:[#allocation2 + $0x70] sm:$0x3] %vm922, 0.0
      %936 = vst.msk [vmem:[#allocation2 + $0x78] sm:$0xff] %vm919, 0.0
      %937 = vst.msk [vmem:[#allocation2 + $0x80] sm:$0xff] %vm919, 0.0
      %938 = vst.msk [vmem:[#allocation2 + $0x88] sm:$0x3] %vm922, 0.0
      %939 = vst.msk [vmem:[#allocation2 + $0x90] sm:$0xff] %vm919, 0.0
      %940 = vst.msk [vmem:[#allocation2 + $0x98] sm:$0xff] %vm919, 0.0
      %941 = vst.msk [vmem:[#allocation2 + $0xa0] sm:$0x3] %vm922, 0.0
      %942 = vst.msk [vmem:[#allocation2 + $0xa8] sm:$0xff] %vm919, 0.0
      %943 = vst.msk [vmem:[#allocation2 + $0xb0] sm:$0xff] %vm919, 0.0
      %944 = vst.msk [vmem:[#allocation2 + $0xb8] sm:$0x3] %vm922, 0.0
      %945 = vst.msk [vmem:[#allocation2 + $0xc0] sm:$0xff] %vm919, 0.0
      %946 = vst.msk [vmem:[#allocation2 + $0xc8] sm:$0xff] %vm919, 0.0
      %947 = vst.msk [vmem:[#allocation2 + $0xd0] sm:$0x3] %vm922, 0.0
      %948 = vst.msk [vmem:[#allocation2 + $0xd8] sm:$0xff] %vm919, 0.0
      %949 = vst.msk [vmem:[#allocation2 + $0xe0] sm:$0xff] %vm919, 0.0
      %950 = vst.msk [vmem:[#allocation2 + $0xe8] sm:$0x3] %vm922, 0.0
      %951 = vst.msk [vmem:[#allocation2 + $0xf0] sm:$0xff] %vm919, 0.0
      %952 = vst.msk [vmem:[#allocation2 + $0xf8] sm:$0xff] %vm919, 0.0
      %953 = vst.msk [vmem:[#allocation2 + $0x100] sm:$0x3] %vm922, 0.0
      %954 = vst.msk [vmem:[#allocation2 + $0x108] sm:$0xff] %vm919, 0.0
      %955 = vst.msk [vmem:[#allocation2 + $0x110] sm:$0xff] %vm919, 0.0
      %956 = vst.msk [vmem:[#allocation2 + $0x118] sm:$0x3] %vm922, 0.0
      %957 = vst.msk [vmem:[#allocation2 + $0x120] sm:$0xff] %vm919, 0.0
      %958 = vst.msk [vmem:[#allocation2 + $0x128] sm:$0xff] %vm919, 0.0
      %959 = vst.msk [vmem:[#allocation2 + $0x130] sm:$0x3] %vm922, 0.0
      %960 = vst.msk [vmem:[#allocation2 + $0x138] sm:$0xff] %vm919, 0.0
      %961 = vst.msk [vmem:[#allocation2 + $0x140] sm:$0xff] %vm919, 0.0
      %962 = vst.msk [vmem:[#allocation2 + $0x148] sm:$0x3] %vm922, 0.0
      %963 = vst.msk [vmem:[#allocation2 + $0x150] sm:$0xff] %vm919, 0.0
      %964 = vst.msk [vmem:[#allocation2 + $0x158] sm:$0xff] %vm919, 0.0
      %965 = vst.msk [vmem:[#allocation2 + $0x160] sm:$0x3] %vm922, 0.0
      %966 = vst.msk [vmem:[#allocation2 + $0x168] sm:$0xff] %vm919, 0.0
      %967 = vst.msk [vmem:[#allocation2 + $0x170] sm:$0xff] %vm919, 0.0
      %968 = vst.msk [vmem:[#allocation2 + $0x178] sm:$0x3] %vm922, 0.0
      %969 = vst.msk [vmem:[#allocation2 + $0x180] sm:$0xff] %vm919, 0.0
      %970 = vst.msk [vmem:[#allocation2 + $0x188] sm:$0xff] %vm919, 0.0
      %971 = vst.msk [vmem:[#allocation2 + $0x190] sm:$0x3] %vm922, 0.0
      %972 = vst.msk [vmem:[#allocation2 + $0x198] sm:$0xff] %vm919, 0.0
      %973 = vst.msk [vmem:[#allocation2 + $0x1a0] sm:$0xff] %vm919, 0.0
      %974 = vst.msk [vmem:[#allocation2 + $0x1a8] sm:$0x3] %vm922, 0.0
      %s975 = scalar_lea.vmem [#allocation2], 24
      %976 = vst.msk [vmem:[%s975 + $0x1] sm:$0xff] %vm919, %v887
      %977 = vst.msk [vmem:[%s975 + $0x9] sm:$0xff] %vm919, %v888
      %978 = vst.msk [vmem:[%s975 + $0x19] sm:$0xff] %vm919, %v889
      %979 = vst.msk [vmem:[%s975 + $0x21] sm:$0xff] %vm919, %v890
      %980 = vst.msk [vmem:[%s975 + $0x31] sm:$0xff] %vm919, %v891
      %981 = vst.msk [vmem:[%s975 + $0x39] sm:$0xff] %vm919, %v892
      %982 = vst.msk [vmem:[%s975 + $0x49] sm:$0xff] %vm919, %v893
      %983 = vst.msk [vmem:[%s975 + $0x51] sm:$0xff] %vm919, %v894
      %984 = vst.msk [vmem:[%s975 + $0x61] sm:$0xff] %vm919, %v895
      %985 = vst.msk [vmem:[%s975 + $0x69] sm:$0xff] %vm919, %v896
      %986 = vst.msk [vmem:[%s975 + $0x79] sm:$0xff] %vm919, %v897
      %987 = vst.msk [vmem:[%s975 + $0x81] sm:$0xff] %vm919, %v898
      %988 = vst.msk [vmem:[%s975 + $0x91] sm:$0xff] %vm919, %v899
      %989 = vst.msk [vmem:[%s975 + $0x99] sm:$0xff] %vm919, %v900
      %990 = vst.msk [vmem:[%s975 + $0xa9] sm:$0xff] %vm919, %v901
      %991 = vst.msk [vmem:[%s975 + $0xb1] sm:$0xff] %vm919, %v902
      %992 = vst.msk [vmem:[%s975 + $0xc1] sm:$0xff] %vm919, %v903
      %993 = vst.msk [vmem:[%s975 + $0xc9] sm:$0xff] %vm919, %v904
      %994 = vst.msk [vmem:[%s975 + $0xd9] sm:$0xff] %vm919, %v905
      %995 = vst.msk [vmem:[%s975 + $0xe1] sm:$0xff] %vm919, %v906
      %996 = vst.msk [vmem:[%s975 + $0xf1] sm:$0xff] %vm919, %v907
      %997 = vst.msk [vmem:[%s975 + $0xf9] sm:$0xff] %vm919, %v908
      %998 = vst.msk [vmem:[%s975 + $0x109] sm:$0xff] %vm919, %v909
      %999 = vst.msk [vmem:[%s975 + $0x111] sm:$0xff] %vm919, %v910
      %1000 = vst.msk [vmem:[%s975 + $0x121] sm:$0xff] %vm919, %v911
      %1001 = vst.msk [vmem:[%s975 + $0x129] sm:$0xff] %vm919, %v912
      %1002 = vst.msk [vmem:[%s975 + $0x139] sm:$0xff] %vm919, %v913
      %1003 = vst.msk [vmem:[%s975 + $0x141] sm:$0xff] %vm919, %v914
      %1004 = vst.msk [vmem:[%s975 + $0x151] sm:$0xff] %vm919, %v915
      %1005 = vst.msk [vmem:[%s975 + $0x159] sm:$0xff] %vm919, %v916
      %1006 = vst.msk [vmem:[%s975 + $0x169] sm:$0xff] %vm919, %v917
      %1007 = vst.msk [vmem:[%s975 + $0x171] sm:$0xff] %vm919, %v918
      %v1008 = vld [vmem:[#allocation2] sm:$0xff]
      %v1009 = vld [vmem:[#allocation2 + $0x8] sm:$0xff]
      %v1010 = vld [vmem:[#allocation2 + $0x10] sm:$0x3]
      %v1011 = vld [vmem:[#allocation2 + $0x18] sm:$0xff]
      %v1012 = vld [vmem:[#allocation2 + $0x20] sm:$0xff]
      %v1013 = vld [vmem:[#allocation2 + $0x28] sm:$0x3]
      %v1014 = vld [vmem:[#allocation2 + $0x30] sm:$0xff]
      %v1015 = vld [vmem:[#allocation2 + $0x38] sm:$0xff]
      %v1016 = vld [vmem:[#allocation2 + $0x40] sm:$0x3]
      %v1017 = vld [vmem:[#allocation2 + $0x48] sm:$0xff]
      %v1018 = vld [vmem:[#allocation2 + $0x50] sm:$0xff]
      %v1019 = vld [vmem:[#allocation2 + $0x58] sm:$0x3]
      %v1020 = vld [vmem:[#allocation2 + $0x60] sm:$0xff]
      %v1021 = vld [vmem:[#allocation2 + $0x68] sm:$0xff]
      %v1022 = vld [vmem:[#allocation2 + $0x70] sm:$0x3]
      %v1023 = vld [vmem:[#allocation2 + $0x78] sm:$0xff]
      %v1024 = vld [vmem:[#allocation2 + $0x80] sm:$0xff]
      %v1025 = vld [vmem:[#allocation2 + $0x88] sm:$0x3]
      %v1026 = vld [vmem:[#allocation2 + $0x90] sm:$0xff]
      %v1027 = vld [vmem:[#allocation2 + $0x98] sm:$0xff]
      %v1028 = vld [vmem:[#allocation2 + $0xa0] sm:$0x3]
      %v1029 = vld [vmem:[#allocation2 + $0xa8] sm:$0xff]
      %v1030 = vld [vmem:[#allocation2 + $0xb0] sm:$0xff]
      %v1031 = vld [vmem:[#allocation2 + $0xb8] sm:$0x3]
      %v1032 = vld [vmem:[#allocation2 + $0xc0] sm:$0xff]
      %v1033 = vld [vmem:[#allocation2 + $0xc8] sm:$0xff]
      %v1034 = vld [vmem:[#allocation2 + $0xd0] sm:$0x3]
      %v1035 = vld [vmem:[#allocation2 + $0xd8] sm:$0xff]
      %v1036 = vld [vmem:[#allocation2 + $0xe0] sm:$0xff]
      %v1037 = vld [vmem:[#allocation2 + $0xe8] sm:$0x3]
      %v1038 = vld [vmem:[#allocation2 + $0xf0] sm:$0xff]
      %v1039 = vld [vmem:[#allocation2 + $0xf8] sm:$0xff]
      %v1040 = vld [vmem:[#allocation2 + $0x100] sm:$0x3]
      %v1041 = vld [vmem:[#allocation2 + $0x108] sm:$0xff]
      %v1042 = vld [vmem:[#allocation2 + $0x110] sm:$0xff]
      %v1043 = vld [vmem:[#allocation2 + $0x118] sm:$0x3]
      %v1044 = vld [vmem:[#allocation2 + $0x120] sm:$0xff]
      %v1045 = vld [vmem:[#allocation2 + $0x128] sm:$0xff]
      %v1046 = vld [vmem:[#allocation2 + $0x130] sm:$0x3]
      %v1047 = vld [vmem:[#allocation2 + $0x138] sm:$0xff]
      %v1048 = vld [vmem:[#allocation2 + $0x140] sm:$0xff]
      %v1049 = vld [vmem:[#allocation2 + $0x148] sm:$0x3]
      %v1050 = vld [vmem:[#allocation2 + $0x150] sm:$0xff]
      %v1051 = vld [vmem:[#allocation2 + $0x158] sm:$0xff]
      %v1052 = vld [vmem:[#allocation2 + $0x160] sm:$0x3]
      %v1053 = vld [vmem:[#allocation2 + $0x168] sm:$0xff]
      %v1054 = vld [vmem:[#allocation2 + $0x170] sm:$0xff]
      %v1055 = vld [vmem:[#allocation2 + $0x178] sm:$0x3]
      %v1056 = vld [vmem:[#allocation2 + $0x180] sm:$0xff]
      %v1057 = vld [vmem:[#allocation2 + $0x188] sm:$0xff]
      %v1058 = vld [vmem:[#allocation2 + $0x190] sm:$0x3]
      %v1059 = vld [vmem:[#allocation2 + $0x198] sm:$0xff]
      %v1060 = vld [vmem:[#allocation2 + $0x1a0] sm:$0xff]
      %v1061 = vld [vmem:[#allocation2 + $0x1a8] sm:$0x3]
      %v1062 = vld [vmem:[%s3] sm:$0xff]
      %v1063 = vld [vmem:[%s3 + $0x8] sm:$0x1]
      %v1064 = vlaneseq
      %v1065 = vshrl.u32 %v1064, 7
      %v1066 = vsub.s32 0, %v1065
      %v1067 = vrot.slane %v1062, %v1066
      %v1068 = vmul.f32 %v1008, %v1067
      %v1069 = vmul.f32 %v1009, %v1067
      %v1070 = vmul.f32 %v1011, %v1067
      %v1071 = vmul.f32 %v1012, %v1067
      %v1072 = vmul.f32 %v1014, %v1067
      %v1073 = vmul.f32 %v1015, %v1067
      %v1074 = vmul.f32 %v1017, %v1067
      %v1075 = vmul.f32 %v1018, %v1067
      %v1076 = vmul.f32 %v1020, %v1067
      %v1077 = vmul.f32 %v1021, %v1067
      %v1078 = vmul.f32 %v1023, %v1067
      %v1079 = vmul.f32 %v1024, %v1067
      %v1080 = vmul.f32 %v1026, %v1067
      %v1081 = vmul.f32 %v1027, %v1067
      %v1082 = vmul.f32 %v1029, %v1067
      %v1083 = vmul.f32 %v1030, %v1067
      %v1084 = vmul.f32 %v1032, %v1067
      %v1085 = vmul.f32 %v1033, %v1067
      %v1086 = vmul.f32 %v1035, %v1067
      %v1087 = vmul.f32 %v1036, %v1067
      %v1088 = vmul.f32 %v1038, %v1067
      %v1089 = vmul.f32 %v1039, %v1067
      %v1090 = vmul.f32 %v1041, %v1067
      %v1091 = vmul.f32 %v1042, %v1067
      %v1092 = vmul.f32 %v1044, %v1067
      %v1093 = vmul.f32 %v1045, %v1067
      %v1094 = vmul.f32 %v1047, %v1067
      %v1095 = vmul.f32 %v1048, %v1067
      %v1096 = vmul.f32 %v1050, %v1067
      %v1097 = vmul.f32 %v1051, %v1067
      %v1098 = vmul.f32 %v1053, %v1067
      %v1099 = vmul.f32 %v1054, %v1067
      %v1100 = vadd.f32 %v1068, 0.0
      %v1101 = vadd.f32 %v1069, 0.0
      %v1102 = vadd.f32 %v1070, 0.0
      %v1103 = vadd.f32 %v1071, 0.0
      %v1104 = vadd.f32 %v1072, 0.0
      %v1105 = vadd.f32 %v1073, 0.0
      %v1106 = vadd.f32 %v1074, 0.0
      %v1107 = vadd.f32 %v1075, 0.0
      %v1108 = vadd.f32 %v1076, 0.0
      %v1109 = vadd.f32 %v1077, 0.0
      %v1110 = vadd.f32 %v1078, 0.0
      %v1111 = vadd.f32 %v1079, 0.0
      %v1112 = vadd.f32 %v1080, 0.0
      %v1113 = vadd.f32 %v1081, 0.0
      %v1114 = vadd.f32 %v1082, 0.0
      %v1115 = vadd.f32 %v1083, 0.0
      %v1116 = vadd.f32 %v1084, 0.0
      %v1117 = vadd.f32 %v1085, 0.0
      %v1118 = vadd.f32 %v1086, 0.0
      %v1119 = vadd.f32 %v1087, 0.0
      %v1120 = vadd.f32 %v1088, 0.0
      %v1121 = vadd.f32 %v1089, 0.0
      %v1122 = vadd.f32 %v1090, 0.0
      %v1123 = vadd.f32 %v1091, 0.0
      %v1124 = vadd.f32 %v1092, 0.0
      %v1125 = vadd.f32 %v1093, 0.0
      %v1126 = vadd.f32 %v1094, 0.0
      %v1127 = vadd.f32 %v1095, 0.0
      %v1128 = vadd.f32 %v1096, 0.0
      %v1129 = vadd.f32 %v1097, 0.0
      %v1130 = vadd.f32 %v1098, 0.0
      %v1131 = vadd.f32 %v1099, 0.0
      %v1132 = vlaneseq
      %v1133 = vshrl.u32 %v1132, 7
      %v1134 = vsub.s32 1, %v1133
      %v1135 = vrot.slane %v1062, %v1134
      %v1136 = vmul.f32 %v1008, %v1135
      %v1137 = vmul.f32 %v1009, %v1135
      %v1138 = vmul.f32 %v1010, %v1135
      %v1139 = vmul.f32 %v1011, %v1135
      %v1140 = vmul.f32 %v1012, %v1135
      %v1141 = vmul.f32 %v1013, %v1135
      %v1142 = vmul.f32 %v1014, %v1135
      %v1143 = vmul.f32 %v1015, %v1135
      %v1144 = vmul.f32 %v1016, %v1135
      %v1145 = vmul.f32 %v1017, %v1135
      %v1146 = vmul.f32 %v1018, %v1135
      %v1147 = vmul.f32 %v1019, %v1135
      %v1148 = vmul.f32 %v1020, %v1135
      %v1149 = vmul.f32 %v1021, %v1135
      %v1150 = vmul.f32 %v1022, %v1135
      %v1151 = vmul.f32 %v1023, %v1135
      %v1152 = vmul.f32 %v1024, %v1135
      %v1153 = vmul.f32 %v1025, %v1135
      %v1154 = vmul.f32 %v1026, %v1135
      %v1155 = vmul.f32 %v1027, %v1135
      %v1156 = vmul.f32 %v1028, %v1135
      %v1157 = vmul.f32 %v1029, %v1135
      %v1158 = vmul.f32 %v1030, %v1135
      %v1159 = vmul.f32 %v1031, %v1135
      %v1160 = vmul.f32 %v1032, %v1135
      %v1161 = vmul.f32 %v1033, %v1135
      %v1162 = vmul.f32 %v1034, %v1135
      %v1163 = vmul.f32 %v1035, %v1135
      %v1164 = vmul.f32 %v1036, %v1135
      %v1165 = vmul.f32 %v1037, %v1135
      %v1166 = vmul.f32 %v1038, %v1135
      %v1167 = vmul.f32 %v1039, %v1135
      %v1168 = vmul.f32 %v1040, %v1135
      %v1169 = vmul.f32 %v1041, %v1135
      %v1170 = vmul.f32 %v1042, %v1135
      %v1171 = vmul.f32 %v1043, %v1135
      %v1172 = vmul.f32 %v1044, %v1135
      %v1173 = vmul.f32 %v1045, %v1135
      %v1174 = vmul.f32 %v1046, %v1135
      %v1175 = vmul.f32 %v1047, %v1135
      %v1176 = vmul.f32 %v1048, %v1135
      %v1177 = vmul.f32 %v1049, %v1135
      %v1178 = vmul.f32 %v1050, %v1135
      %v1179 = vmul.f32 %v1051, %v1135
      %v1180 = vmul.f32 %v1052, %v1135
      %v1181 = vmul.f32 %v1053, %v1135
      %v1182 = vmul.f32 %v1054, %v1135
      %v1183 = vmul.f32 %v1055, %v1135
      %vm1232 = vcmask 1046528
      %v1233 = vrot.slane %v1136, 1
      %v1234 = vrot.slane %v1137, 1
      %v1235 = vsel %vm1232, %v1233, %v1234
      %v1236 = vrot.slane %v1138, 1
      %v1237 = vsel %vm1232, %v1234, %v1236
      %v1238 = vrot.slane %v1139, 1
      %v1239 = vrot.slane %v1140, 1
      %v1240 = vsel %vm1232, %v1238, %v1239
      %v1241 = vrot.slane %v1141, 1
      %v1242 = vsel %vm1232, %v1239, %v1241
      %v1243 = vrot.slane %v1142, 1
      %v1244 = vrot.slane %v1143, 1
      %v1245 = vsel %vm1232, %v1243, %v1244
      %v1246 = vrot.slane %v1144, 1
      %v1247 = vsel %vm1232, %v1244, %v1246
      %v1248 = vrot.slane %v1145, 1
      %v1249 = vrot.slane %v1146, 1
      %v1250 = vsel %vm1232, %v1248, %v1249
      %v1251 = vrot.slane %v1147, 1
      %v1252 = vsel %vm1232, %v1249, %v1251
      %v1253 = vrot.slane %v1148, 1
      %v1254 = vrot.slane %v1149, 1
      %v1255 = vsel %vm1232, %v1253, %v1254
      %v1256 = vrot.slane %v1150, 1
      %v1257 = vsel %vm1232, %v1254, %v1256
      %v1258 = vrot.slane %v1151, 1
      %v1259 = vrot.slane %v1152, 1
      %v1260 = vsel %vm1232, %v1258, %v1259
      %v1261 = vrot.slane %v1153, 1
      %v1262 = vsel %vm1232, %v1259, %v1261
      %v1263 = vrot.slane %v1154, 1
      %v1264 = vrot.slane %v1155, 1
      %v1265 = vsel %vm1232, %v1263, %v1264
      %v1266 = vrot.slane %v1156, 1
      %v1267 = vsel %vm1232, %v1264, %v1266
      %v1268 = vrot.slane %v1157, 1
      %v1269 = vrot.slane %v1158, 1
      %v1270 = vsel %vm1232, %v1268, %v1269
      %v1271 = vrot.slane %v1159, 1
      %v1272 = vsel %vm1232, %v1269, %v1271
      %v1273 = vrot.slane %v1160, 1
      %v1274 = vrot.slane %v1161, 1
      %v1275 = vsel %vm1232, %v1273, %v1274
      %v1276 = vrot.slane %v1162, 1
      %v1277 = vsel %vm1232, %v1274, %v1276
      %v1278 = vrot.slane %v1163, 1
      %v1279 = vrot.slane %v1164, 1
      %v1280 = vsel %vm1232, %v1278, %v1279
      %v1281 = vrot.slane %v1165, 1
      %v1282 = vsel %vm1232, %v1279, %v1281
      %v1283 = vrot.slane %v1166, 1
      %v1284 = vrot.slane %v1167, 1
      %v1285 = vsel %vm1232, %v1283, %v1284
      %v1286 = vrot.slane %v1168, 1
      %v1287 = vsel %vm1232, %v1284, %v1286
      %v1288 = vrot.slane %v1169, 1
      %v1289 = vrot.slane %v1170, 1
      %v1290 = vsel %vm1232, %v1288, %v1289
      %v1291 = vrot.slane %v1171, 1
      %v1292 = vsel %vm1232, %v1289, %v1291
      %v1293 = vrot.slane %v1172, 1
      %v1294 = vrot.slane %v1173, 1
      %v1295 = vsel %vm1232, %v1293, %v1294
      %v1296 = vrot.slane %v1174, 1
      %v1297 = vsel %vm1232, %v1294, %v1296
      %v1298 = vrot.slane %v1175, 1
      %v1299 = vrot.slane %v1176, 1
      %v1300 = vsel %vm1232, %v1298, %v1299
      %v1301 = vrot.slane %v1177, 1
      %v1302 = vsel %vm1232, %v1299, %v1301
      %v1303 = vrot.slane %v1178, 1
      %v1304 = vrot.slane %v1179, 1
      %v1305 = vsel %vm1232, %v1303, %v1304
      %v1306 = vrot.slane %v1180, 1
      %v1307 = vsel %vm1232, %v1304, %v1306
      %v1308 = vrot.slane %v1181, 1
      %v1309 = vrot.slane %v1182, 1
      %v1310 = vsel %vm1232, %v1308, %v1309
      %v1311 = vrot.slane %v1183, 1
      %v1312 = vsel %vm1232, %v1309, %v1311
      %v1345 = vadd.f32 %v1100, %v1235
      %v1346 = vadd.f32 %v1101, %v1237
      %v1347 = vadd.f32 %v1102, %v1240
      %v1348 = vadd.f32 %v1103, %v1242
      %v1349 = vadd.f32 %v1104, %v1245
      %v1350 = vadd.f32 %v1105, %v1247
      %v1351 = vadd.f32 %v1106, %v1250
      %v1352 = vadd.f32 %v1107, %v1252
      %v1353 = vadd.f32 %v1108, %v1255
      %v1354 = vadd.f32 %v1109, %v1257
      %v1355 = vadd.f32 %v1110, %v1260
      %v1356 = vadd.f32 %v1111, %v1262
      %v1357 = vadd.f32 %v1112, %v1265
      %v1358 = vadd.f32 %v1113, %v1267
      %v1359 = vadd.f32 %v1114, %v1270
      %v1360 = vadd.f32 %v1115, %v1272
      %v1361 = vadd.f32 %v1116, %v1275
      %v1362 = vadd.f32 %v1117, %v1277
      %v1363 = vadd.f32 %v1118, %v1280
      %v1364 = vadd.f32 %v1119, %v1282
      %v1365 = vadd.f32 %v1120, %v1285
      %v1366 = vadd.f32 %v1121, %v1287
      %v1367 = vadd.f32 %v1122, %v1290
      %v1368 = vadd.f32 %v1123, %v1292
      %v1369 = vadd.f32 %v1124, %v1295
      %v1370 = vadd.f32 %v1125, %v1297
      %v1371 = vadd.f32 %v1126, %v1300
      %v1372 = vadd.f32 %v1127, %v1302
      %v1373 = vadd.f32 %v1128, %v1305
      %v1374 = vadd.f32 %v1129, %v1307
      %v1375 = vadd.f32 %v1130, %v1310
      %v1376 = vadd.f32 %v1131, %v1312
      %v1377 = vlaneseq
      %v1378 = vshrl.u32 %v1377, 7
      %v1379 = vsub.s32 2, %v1378
      %v1380 = vrot.slane %v1062, %v1379
      %v1381 = vmul.f32 %v1008, %v1380
      %v1382 = vmul.f32 %v1009, %v1380
      %v1383 = vmul.f32 %v1010, %v1380
      %v1384 = vmul.f32 %v1011, %v1380
      %v1385 = vmul.f32 %v1012, %v1380
      %v1386 = vmul.f32 %v1013, %v1380
      %v1387 = vmul.f32 %v1014, %v1380
      %v1388 = vmul.f32 %v1015, %v1380
      %v1389 = vmul.f32 %v1016, %v1380
      %v1390 = vmul.f32 %v1017, %v1380
      %v1391 = vmul.f32 %v1018, %v1380
      %v1392 = vmul.f32 %v1019, %v1380
      %v1393 = vmul.f32 %v1020, %v1380
      %v1394 = vmul.f32 %v1021, %v1380
      %v1395 = vmul.f32 %v1022, %v1380
      %v1396 = vmul.f32 %v1023, %v1380
      %v1397 = vmul.f32 %v1024, %v1380
      %v1398 = vmul.f32 %v1025, %v1380
      %v1399 = vmul.f32 %v1026, %v1380
      %v1400 = vmul.f32 %v1027, %v1380
      %v1401 = vmul.f32 %v1028, %v1380
      %v1402 = vmul.f32 %v1029, %v1380
      %v1403 = vmul.f32 %v1030, %v1380
      %v1404 = vmul.f32 %v1031, %v1380
      %v1405 = vmul.f32 %v1032, %v1380
      %v1406 = vmul.f32 %v1033, %v1380
      %v1407 = vmul.f32 %v1034, %v1380
      %v1408 = vmul.f32 %v1035, %v1380
      %v1409 = vmul.f32 %v1036, %v1380
      %v1410 = vmul.f32 %v1037, %v1380
      %v1411 = vmul.f32 %v1038, %v1380
      %v1412 = vmul.f32 %v1039, %v1380
      %v1413 = vmul.f32 %v1040, %v1380
      %v1414 = vmul.f32 %v1041, %v1380
      %v1415 = vmul.f32 %v1042, %v1380
      %v1416 = vmul.f32 %v1043, %v1380
      %v1417 = vmul.f32 %v1044, %v1380
      %v1418 = vmul.f32 %v1045, %v1380
      %v1419 = vmul.f32 %v1046, %v1380
      %v1420 = vmul.f32 %v1047, %v1380
      %v1421 = vmul.f32 %v1048, %v1380
      %v1422 = vmul.f32 %v1049, %v1380
      %v1423 = vmul.f32 %v1050, %v1380
      %v1424 = vmul.f32 %v1051, %v1380
      %v1425 = vmul.f32 %v1052, %v1380
      %v1426 = vmul.f32 %v1053, %v1380
      %v1427 = vmul.f32 %v1054, %v1380
      %v1428 = vmul.f32 %v1055, %v1380
      %vm1477 = vcmask 1045504
      %v1478 = vrot.slane %v1381, 2
      %v1479 = vrot.slane %v1382, 2
      %v1480 = vsel %vm1477, %v1478, %v1479
      %v1481 = vrot.slane %v1383, 2
      %v1482 = vsel %vm1477, %v1479, %v1481
      %v1483 = vrot.slane %v1384, 2
      %v1484 = vrot.slane %v1385, 2
      %v1485 = vsel %vm1477, %v1483, %v1484
      %v1486 = vrot.slane %v1386, 2
      %v1487 = vsel %vm1477, %v1484, %v1486
      %v1488 = vrot.slane %v1387, 2
      %v1489 = vrot.slane %v1388, 2
      %v1490 = vsel %vm1477, %v1488, %v1489
      %v1491 = vrot.slane %v1389, 2
      %v1492 = vsel %vm1477, %v1489, %v1491
      %v1493 = vrot.slane %v1390, 2
      %v1494 = vrot.slane %v1391, 2
      %v1495 = vsel %vm1477, %v1493, %v1494
      %v1496 = vrot.slane %v1392, 2
      %v1497 = vsel %vm1477, %v1494, %v1496
      %v1498 = vrot.slane %v1393, 2
      %v1499 = vrot.slane %v1394, 2
      %v1500 = vsel %vm1477, %v1498, %v1499
      %v1501 = vrot.slane %v1395, 2
      %v1502 = vsel %vm1477, %v1499, %v1501
      %v1503 = vrot.slane %v1396, 2
      %v1504 = vrot.slane %v1397, 2
      %v1505 = vsel %vm1477, %v1503, %v1504
      %v1506 = vrot.slane %v1398, 2
      %v1507 = vsel %vm1477, %v1504, %v1506
      %v1508 = vrot.slane %v1399, 2
      %v1509 = vrot.slane %v1400, 2
      %v1510 = vsel %vm1477, %v1508, %v1509
      %v1511 = vrot.slane %v1401, 2
      %v1512 = vsel %vm1477, %v1509, %v1511
      %v1513 = vrot.slane %v1402, 2
      %v1514 = vrot.slane %v1403, 2
      %v1515 = vsel %vm1477, %v1513, %v1514
      %v1516 = vrot.slane %v1404, 2
      %v1517 = vsel %vm1477, %v1514, %v1516
      %v1518 = vrot.slane %v1405, 2
      %v1519 = vrot.slane %v1406, 2
      %v1520 = vsel %vm1477, %v1518, %v1519
      %v1521 = vrot.slane %v1407, 2
      %v1522 = vsel %vm1477, %v1519, %v1521
      %v1523 = vrot.slane %v1408, 2
      %v1524 = vrot.slane %v1409, 2
      %v1525 = vsel %vm1477, %v1523, %v1524
      %v1526 = vrot.slane %v1410, 2
      %v1527 = vsel %vm1477, %v1524, %v1526
      %v1528 = vrot.slane %v1411, 2
      %v1529 = vrot.slane %v1412, 2
      %v1530 = vsel %vm1477, %v1528, %v1529
      %v1531 = vrot.slane %v1413, 2
      %v1532 = vsel %vm1477, %v1529, %v1531
      %v1533 = vrot.slane %v1414, 2
      %v1534 = vrot.slane %v1415, 2
      %v1535 = vsel %vm1477, %v1533, %v1534
      %v1536 = vrot.slane %v1416, 2
      %v1537 = vsel %vm1477, %v1534, %v1536
      %v1538 = vrot.slane %v1417, 2
      %v1539 = vrot.slane %v1418, 2
      %v1540 = vsel %vm1477, %v1538, %v1539
      %v1541 = vrot.slane %v1419, 2
      %v1542 = vsel %vm1477, %v1539, %v1541
      %v1543 = vrot.slane %v1420, 2
      %v1544 = vrot.slane %v1421, 2
      %v1545 = vsel %vm1477, %v1543, %v1544
      %v1546 = vrot.slane %v1422, 2
      %v1547 = vsel %vm1477, %v1544, %v1546
      %v1548 = vrot.slane %v1423, 2
      %v1549 = vrot.slane %v1424, 2
      %v1550 = vsel %vm1477, %v1548, %v1549
      %v1551 = vrot.slane %v1425, 2
      %v1552 = vsel %vm1477, %v1549, %v1551
      %v1553 = vrot.slane %v1426, 2
      %v1554 = vrot.slane %v1427, 2
      %v1555 = vsel %vm1477, %v1553, %v1554
      %v1556 = vrot.slane %v1428, 2
      %v1557 = vsel %vm1477, %v1554, %v1556
      %v1590 = vadd.f32 %v1345, %v1480
      %v1591 = vadd.f32 %v1346, %v1482
      %v1592 = vadd.f32 %v1347, %v1485
      %v1593 = vadd.f32 %v1348, %v1487
      %v1594 = vadd.f32 %v1349, %v1490
      %v1595 = vadd.f32 %v1350, %v1492
      %v1596 = vadd.f32 %v1351, %v1495
      %v1597 = vadd.f32 %v1352, %v1497
      %v1598 = vadd.f32 %v1353, %v1500
      %v1599 = vadd.f32 %v1354, %v1502
      %v1600 = vadd.f32 %v1355, %v1505
      %v1601 = vadd.f32 %v1356, %v1507
      %v1602 = vadd.f32 %v1357, %v1510
      %v1603 = vadd.f32 %v1358, %v1512
      %v1604 = vadd.f32 %v1359, %v1515
      %v1605 = vadd.f32 %v1360, %v1517
      %v1606 = vadd.f32 %v1361, %v1520
      %v1607 = vadd.f32 %v1362, %v1522
      %v1608 = vadd.f32 %v1363, %v1525
      %v1609 = vadd.f32 %v1364, %v1527
      %v1610 = vadd.f32 %v1365, %v1530
      %v1611 = vadd.f32 %v1366, %v1532
      %v1612 = vadd.f32 %v1367, %v1535
      %v1613 = vadd.f32 %v1368, %v1537
      %v1614 = vadd.f32 %v1369, %v1540
      %v1615 = vadd.f32 %v1370, %v1542
      %v1616 = vadd.f32 %v1371, %v1545
      %v1617 = vadd.f32 %v1372, %v1547
      %v1618 = vadd.f32 %v1373, %v1550
      %v1619 = vadd.f32 %v1374, %v1552
      %v1620 = vadd.f32 %v1375, %v1555
      %v1621 = vadd.f32 %v1376, %v1557
      %v1622 = vlaneseq
      %v1623 = vshrl.u32 %v1622, 7
      %v1624 = vsub.s32 3, %v1623
      %v1625 = vrot.slane %v1062, %v1624
      %v1626 = vmul.f32 %v1011, %v1625
      %v1627 = vmul.f32 %v1012, %v1625
      %v1628 = vmul.f32 %v1014, %v1625
      %v1629 = vmul.f32 %v1015, %v1625
      %v1630 = vmul.f32 %v1017, %v1625
      %v1631 = vmul.f32 %v1018, %v1625
      %v1632 = vmul.f32 %v1020, %v1625
      %v1633 = vmul.f32 %v1021, %v1625
      %v1634 = vmul.f32 %v1023, %v1625
      %v1635 = vmul.f32 %v1024, %v1625
      %v1636 = vmul.f32 %v1026, %v1625
      %v1637 = vmul.f32 %v1027, %v1625
      %v1638 = vmul.f32 %v1029, %v1625
      %v1639 = vmul.f32 %v1030, %v1625
      %v1640 = vmul.f32 %v1032, %v1625
      %v1641 = vmul.f32 %v1033, %v1625
      %v1642 = vmul.f32 %v1035, %v1625
      %v1643 = vmul.f32 %v1036, %v1625
      %v1644 = vmul.f32 %v1038, %v1625
      %v1645 = vmul.f32 %v1039, %v1625
      %v1646 = vmul.f32 %v1041, %v1625
      %v1647 = vmul.f32 %v1042, %v1625
      %v1648 = vmul.f32 %v1044, %v1625
      %v1649 = vmul.f32 %v1045, %v1625
      %v1650 = vmul.f32 %v1047, %v1625
      %v1651 = vmul.f32 %v1048, %v1625
      %v1652 = vmul.f32 %v1050, %v1625
      %v1653 = vmul.f32 %v1051, %v1625
      %v1654 = vmul.f32 %v1053, %v1625
      %v1655 = vmul.f32 %v1054, %v1625
      %v1656 = vmul.f32 %v1056, %v1625
      %v1657 = vmul.f32 %v1057, %v1625
      %v1658 = vadd.f32 %v1590, %v1626
      %v1659 = vadd.f32 %v1591, %v1627
      %v1660 = vadd.f32 %v1592, %v1628
      %v1661 = vadd.f32 %v1593, %v1629
      %v1662 = vadd.f32 %v1594, %v1630
      %v1663 = vadd.f32 %v1595, %v1631
      %v1664 = vadd.f32 %v1596, %v1632
      %v1665 = vadd.f32 %v1597, %v1633
      %v1666 = vadd.f32 %v1598, %v1634
      %v1667 = vadd.f32 %v1599, %v1635
      %v1668 = vadd.f32 %v1600, %v1636
      %v1669 = vadd.f32 %v1601, %v1637
      %v1670 = vadd.f32 %v1602, %v1638
      %v1671 = vadd.f32 %v1603, %v1639
      %v1672 = vadd.f32 %v1604, %v1640
      %v1673 = vadd.f32 %v1605, %v1641
      %v1674 = vadd.f32 %v1606, %v1642
      %v1675 = vadd.f32 %v1607, %v1643
      %v1676 = vadd.f32 %v1608, %v1644
      %v1677 = vadd.f32 %v1609, %v1645
      %v1678 = vadd.f32 %v1610, %v1646
      %v1679 = vadd.f32 %v1611, %v1647
      %v1680 = vadd.f32 %v1612, %v1648
      %v1681 = vadd.f32 %v1613, %v1649
      %v1682 = vadd.f32 %v1614, %v1650
      %v1683 = vadd.f32 %v1615, %v1651
      %v1684 = vadd.f32 %v1616, %v1652
      %v1685 = vadd.f32 %v1617, %v1653
      %v1686 = vadd.f32 %v1618, %v1654
      %v1687 = vadd.f32 %v1619, %v1655
      %v1688 = vadd.f32 %v1620, %v1656
      %v1689 = vadd.f32 %v1621, %v1657
      %v1690 = vlaneseq
      %v1691 = vshrl.u32 %v1690, 7
      %v1692 = vsub.s32 4, %v1691
      %v1693 = vrot.slane %v1062, %v1692
      %v1694 = vmul.f32 %v1011, %v1693
      %v1695 = vmul.f32 %v1012, %v1693
      %v1696 = vmul.f32 %v1013, %v1693
      %v1697 = vmul.f32 %v1014, %v1693
      %v1698 = vmul.f32 %v1015, %v1693
      %v1699 = vmul.f32 %v1016, %v1693
      %v1700 = vmul.f32 %v1017, %v1693
      %v1701 = vmul.f32 %v1018, %v1693
      %v1702 = vmul.f32 %v1019, %v1693
      %v1703 = vmul.f32 %v1020, %v1693
      %v1704 = vmul.f32 %v1021, %v1693
      %v1705 = vmul.f32 %v1022, %v1693
      %v1706 = vmul.f32 %v1023, %v1693
      %v1707 = vmul.f32 %v1024, %v1693
      %v1708 = vmul.f32 %v1025, %v1693
      %v1709 = vmul.f32 %v1026, %v1693
      %v1710 = vmul.f32 %v1027, %v1693
      %v1711 = vmul.f32 %v1028, %v1693
      %v1712 = vmul.f32 %v1029, %v1693
      %v1713 = vmul.f32 %v1030, %v1693
      %v1714 = vmul.f32 %v1031, %v1693
      %v1715 = vmul.f32 %v1032, %v1693
      %v1716 = vmul.f32 %v1033, %v1693
      %v1717 = vmul.f32 %v1034, %v1693
      %v1718 = vmul.f32 %v1035, %v1693
      %v1719 = vmul.f32 %v1036, %v1693
      %v1720 = vmul.f32 %v1037, %v1693
      %v1721 = vmul.f32 %v1038, %v1693
      %v1722 = vmul.f32 %v1039, %v1693
      %v1723 = vmul.f32 %v1040, %v1693
      %v1724 = vmul.f32 %v1041, %v1693
      %v1725 = vmul.f32 %v1042, %v1693
      %v1726 = vmul.f32 %v1043, %v1693
      %v1727 = vmul.f32 %v1044, %v1693
      %v1728 = vmul.f32 %v1045, %v1693
      %v1729 = vmul.f32 %v1046, %v1693
      %v1730 = vmul.f32 %v1047, %v1693
      %v1731 = vmul.f32 %v1048, %v1693
      %v1732 = vmul.f32 %v1049, %v1693
      %v1733 = vmul.f32 %v1050, %v1693
      %v1734 = vmul.f32 %v1051, %v1693
      %v1735 = vmul.f32 %v1052, %v1693
      %v1736 = vmul.f32 %v1053, %v1693
      %v1737 = vmul.f32 %v1054, %v1693
      %v1738 = vmul.f32 %v1055, %v1693
      %v1739 = vmul.f32 %v1056, %v1693
      %v1740 = vmul.f32 %v1057, %v1693
      %v1741 = vmul.f32 %v1058, %v1693
      %v1790 = vrot.slane %v1694, 1
      %v1791 = vrot.slane %v1695, 1
      %v1792 = vsel %vm1232, %v1790, %v1791
      %v1793 = vrot.slane %v1696, 1
      %v1794 = vsel %vm1232, %v1791, %v1793
      %v1795 = vrot.slane %v1697, 1
      %v1796 = vrot.slane %v1698, 1
      %v1797 = vsel %vm1232, %v1795, %v1796
      %v1798 = vrot.slane %v1699, 1
      %v1799 = vsel %vm1232, %v1796, %v1798
      %v1800 = vrot.slane %v1700, 1
      %v1801 = vrot.slane %v1701, 1
      %v1802 = vsel %vm1232, %v1800, %v1801
      %v1803 = vrot.slane %v1702, 1
      %v1804 = vsel %vm1232, %v1801, %v1803
      %v1805 = vrot.slane %v1703, 1
      %v1806 = vrot.slane %v1704, 1
      %v1807 = vsel %vm1232, %v1805, %v1806
      %v1808 = vrot.slane %v1705, 1
      %v1809 = vsel %vm1232, %v1806, %v1808
      %v1810 = vrot.slane %v1706, 1
      %v1811 = vrot.slane %v1707, 1
      %v1812 = vsel %vm1232, %v1810, %v1811
      %v1813 = vrot.slane %v1708, 1
      %v1814 = vsel %vm1232, %v1811, %v1813
      %v1815 = vrot.slane %v1709, 1
      %v1816 = vrot.slane %v1710, 1
      %v1817 = vsel %vm1232, %v1815, %v1816
      %v1818 = vrot.slane %v1711, 1
      %v1819 = vsel %vm1232, %v1816, %v1818
      %v1820 = vrot.slane %v1712, 1
      %v1821 = vrot.slane %v1713, 1
      %v1822 = vsel %vm1232, %v1820, %v1821
      %v1823 = vrot.slane %v1714, 1
      %v1824 = vsel %vm1232, %v1821, %v1823
      %v1825 = vrot.slane %v1715, 1
      %v1826 = vrot.slane %v1716, 1
      %v1827 = vsel %vm1232, %v1825, %v1826
      %v1828 = vrot.slane %v1717, 1
      %v1829 = vsel %vm1232, %v1826, %v1828
      %v1830 = vrot.slane %v1718, 1
      %v1831 = vrot.slane %v1719, 1
      %v1832 = vsel %vm1232, %v1830, %v1831
      %v1833 = vrot.slane %v1720, 1
      %v1834 = vsel %vm1232, %v1831, %v1833
      %v1835 = vrot.slane %v1721, 1
      %v1836 = vrot.slane %v1722, 1
      %v1837 = vsel %vm1232, %v1835, %v1836
      %v1838 = vrot.slane %v1723, 1
      %v1839 = vsel %vm1232, %v1836, %v1838
      %v1840 = vrot.slane %v1724, 1
      %v1841 = vrot.slane %v1725, 1
      %v1842 = vsel %vm1232, %v1840, %v1841
      %v1843 = vrot.slane %v1726, 1
      %v1844 = vsel %vm1232, %v1841, %v1843
      %v1845 = vrot.slane %v1727, 1
      %v1846 = vrot.slane %v1728, 1
      %v1847 = vsel %vm1232, %v1845, %v1846
      %v1848 = vrot.slane %v1729, 1
      %v1849 = vsel %vm1232, %v1846, %v1848
      %v1850 = vrot.slane %v1730, 1
      %v1851 = vrot.slane %v1731, 1
      %v1852 = vsel %vm1232, %v1850, %v1851
      %v1853 = vrot.slane %v1732, 1
      %v1854 = vsel %vm1232, %v1851, %v1853
      %v1855 = vrot.slane %v1733, 1
      %v1856 = vrot.slane %v1734, 1
      %v1857 = vsel %vm1232, %v1855, %v1856
      %v1858 = vrot.slane %v1735, 1
      %v1859 = vsel %vm1232, %v1856, %v1858
      %v1860 = vrot.slane %v1736, 1
      %v1861 = vrot.slane %v1737, 1
      %v1862 = vsel %vm1232, %v1860, %v1861
      %v1863 = vrot.slane %v1738, 1
      %v1864 = vsel %vm1232, %v1861, %v1863
      %v1865 = vrot.slane %v1739, 1
      %v1866 = vrot.slane %v1740, 1
      %v1867 = vsel %vm1232, %v1865, %v1866
      %v1868 = vrot.slane %v1741, 1
      %v1869 = vsel %vm1232, %v1866, %v1868
      %v1902 = vadd.f32 %v1658, %v1792
      %v1903 = vadd.f32 %v1659, %v1794
      %v1904 = vadd.f32 %v1660, %v1797
      %v1905 = vadd.f32 %v1661, %v1799
      %v1906 = vadd.f32 %v1662, %v1802
      %v1907 = vadd.f32 %v1663, %v1804
      %v1908 = vadd.f32 %v1664, %v1807
      %v1909 = vadd.f32 %v1665, %v1809
      %v1910 = vadd.f32 %v1666, %v1812
      %v1911 = vadd.f32 %v1667, %v1814
      %v1912 = vadd.f32 %v1668, %v1817
      %v1913 = vadd.f32 %v1669, %v1819
      %v1914 = vadd.f32 %v1670, %v1822
      %v1915 = vadd.f32 %v1671, %v1824
      %v1916 = vadd.f32 %v1672, %v1827
      %v1917 = vadd.f32 %v1673, %v1829
      %v1918 = vadd.f32 %v1674, %v1832
      %v1919 = vadd.f32 %v1675, %v1834
      %v1920 = vadd.f32 %v1676, %v1837
      %v1921 = vadd.f32 %v1677, %v1839
      %v1922 = vadd.f32 %v1678, %v1842
      %v1923 = vadd.f32 %v1679, %v1844
      %v1924 = vadd.f32 %v1680, %v1847
      %v1925 = vadd.f32 %v1681, %v1849
      %v1926 = vadd.f32 %v1682, %v1852
      %v1927 = vadd.f32 %v1683, %v1854
      %v1928 = vadd.f32 %v1684, %v1857
      %v1929 = vadd.f32 %v1685, %v1859
      %v1930 = vadd.f32 %v1686, %v1862
      %v1931 = vadd.f32 %v1687, %v1864
      %v1932 = vadd.f32 %v1688, %v1867
      %v1933 = vadd.f32 %v1689, %v1869
      %v1934 = vlaneseq
      %v1935 = vshrl.u32 %v1934, 7
      %v1936 = vsub.s32 5, %v1935
      %v1937 = vrot.slane %v1062, %v1936
      %v1938 = vmul.f32 %v1011, %v1937
      %v1939 = vmul.f32 %v1012, %v1937
      %v1940 = vmul.f32 %v1013, %v1937
      %v1941 = vmul.f32 %v1014, %v1937
      %v1942 = vmul.f32 %v1015, %v1937
      %v1943 = vmul.f32 %v1016, %v1937
      %v1944 = vmul.f32 %v1017, %v1937
      %v1945 = vmul.f32 %v1018, %v1937
      %v1946 = vmul.f32 %v1019, %v1937
      %v1947 = vmul.f32 %v1020, %v1937
      %v1948 = vmul.f32 %v1021, %v1937
      %v1949 = vmul.f32 %v1022, %v1937
      %v1950 = vmul.f32 %v1023, %v1937
      %v1951 = vmul.f32 %v1024, %v1937
      %v1952 = vmul.f32 %v1025, %v1937
      %v1953 = vmul.f32 %v1026, %v1937
      %v1954 = vmul.f32 %v1027, %v1937
      %v1955 = vmul.f32 %v1028, %v1937
      %v1956 = vmul.f32 %v1029, %v1937
      %v1957 = vmul.f32 %v1030, %v1937
      %v1958 = vmul.f32 %v1031, %v1937
      %v1959 = vmul.f32 %v1032, %v1937
      %v1960 = vmul.f32 %v1033, %v1937
      %v1961 = vmul.f32 %v1034, %v1937
      %v1962 = vmul.f32 %v1035, %v1937
      %v1963 = vmul.f32 %v1036, %v1937
      %v1964 = vmul.f32 %v1037, %v1937
      %v1965 = vmul.f32 %v1038, %v1937
      %v1966 = vmul.f32 %v1039, %v1937
      %v1967 = vmul.f32 %v1040, %v1937
      %v1968 = vmul.f32 %v1041, %v1937
      %v1969 = vmul.f32 %v1042, %v1937
      %v1970 = vmul.f32 %v1043, %v1937
      %v1971 = vmul.f32 %v1044, %v1937
      %v1972 = vmul.f32 %v1045, %v1937
      %v1973 = vmul.f32 %v1046, %v1937
      %v1974 = vmul.f32 %v1047, %v1937
      %v1975 = vmul.f32 %v1048, %v1937
      %v1976 = vmul.f32 %v1049, %v1937
      %v1977 = vmul.f32 %v1050, %v1937
      %v1978 = vmul.f32 %v1051, %v1937
      %v1979 = vmul.f32 %v1052, %v1937
      %v1980 = vmul.f32 %v1053, %v1937
      %v1981 = vmul.f32 %v1054, %v1937
      %v1982 = vmul.f32 %v1055, %v1937
      %v1983 = vmul.f32 %v1056, %v1937
      %v1984 = vmul.f32 %v1057, %v1937
      %v1985 = vmul.f32 %v1058, %v1937
      %v2034 = vrot.slane %v1938, 2
      %v2035 = vrot.slane %v1939, 2
      %v2036 = vsel %vm1477, %v2034, %v2035
      %v2037 = vrot.slane %v1940, 2
      %v2038 = vsel %vm1477, %v2035, %v2037
      %v2039 = vrot.slane %v1941, 2
      %v2040 = vrot.slane %v1942, 2
      %v2041 = vsel %vm1477, %v2039, %v2040
      %v2042 = vrot.slane %v1943, 2
      %v2043 = vsel %vm1477, %v2040, %v2042
      %v2044 = vrot.slane %v1944, 2
      %v2045 = vrot.slane %v1945, 2
      %v2046 = vsel %vm1477, %v2044, %v2045
      %v2047 = vrot.slane %v1946, 2
      %v2048 = vsel %vm1477, %v2045, %v2047
      %v2049 = vrot.slane %v1947, 2
      %v2050 = vrot.slane %v1948, 2
      %v2051 = vsel %vm1477, %v2049, %v2050
      %v2052 = vrot.slane %v1949, 2
      %v2053 = vsel %vm1477, %v2050, %v2052
      %v2054 = vrot.slane %v1950, 2
      %v2055 = vrot.slane %v1951, 2
      %v2056 = vsel %vm1477, %v2054, %v2055
      %v2057 = vrot.slane %v1952, 2
      %v2058 = vsel %vm1477, %v2055, %v2057
      %v2059 = vrot.slane %v1953, 2
      %v2060 = vrot.slane %v1954, 2
      %v2061 = vsel %vm1477, %v2059, %v2060
      %v2062 = vrot.slane %v1955, 2
      %v2063 = vsel %vm1477, %v2060, %v2062
      %v2064 = vrot.slane %v1956, 2
      %v2065 = vrot.slane %v1957, 2
      %v2066 = vsel %vm1477, %v2064, %v2065
      %v2067 = vrot.slane %v1958, 2
      %v2068 = vsel %vm1477, %v2065, %v2067
      %v2069 = vrot.slane %v1959, 2
      %v2070 = vrot.slane %v1960, 2
      %v2071 = vsel %vm1477, %v2069, %v2070
      %v2072 = vrot.slane %v1961, 2
      %v2073 = vsel %vm1477, %v2070, %v2072
      %v2074 = vrot.slane %v1962, 2
      %v2075 = vrot.slane %v1963, 2
      %v2076 = vsel %vm1477, %v2074, %v2075
      %v2077 = vrot.slane %v1964, 2
      %v2078 = vsel %vm1477, %v2075, %v2077
      %v2079 = vrot.slane %v1965, 2
      %v2080 = vrot.slane %v1966, 2
      %v2081 = vsel %vm1477, %v2079, %v2080
      %v2082 = vrot.slane %v1967, 2
      %v2083 = vsel %vm1477, %v2080, %v2082
      %v2084 = vrot.slane %v1968, 2
      %v2085 = vrot.slane %v1969, 2
      %v2086 = vsel %vm1477, %v2084, %v2085
      %v2087 = vrot.slane %v1970, 2
      %v2088 = vsel %vm1477, %v2085, %v2087
      %v2089 = vrot.slane %v1971, 2
      %v2090 = vrot.slane %v1972, 2
      %v2091 = vsel %vm1477, %v2089, %v2090
      %v2092 = vrot.slane %v1973, 2
      %v2093 = vsel %vm1477, %v2090, %v2092
      %v2094 = vrot.slane %v1974, 2
      %v2095 = vrot.slane %v1975, 2
      %v2096 = vsel %vm1477, %v2094, %v2095
      %v2097 = vrot.slane %v1976, 2
      %v2098 = vsel %vm1477, %v2095, %v2097
      %v2099 = vrot.slane %v1977, 2
      %v2100 = vrot.slane %v1978, 2
      %v2101 = vsel %vm1477, %v2099, %v2100
      %v2102 = vrot.slane %v1979, 2
      %v2103 = vsel %vm1477, %v2100, %v2102
      %v2104 = vrot.slane %v1980, 2
      %v2105 = vrot.slane %v1981, 2
      %v2106 = vsel %vm1477, %v2104, %v2105
      %v2107 = vrot.slane %v1982, 2
      %v2108 = vsel %vm1477, %v2105, %v2107
      %v2109 = vrot.slane %v1983, 2
      %v2110 = vrot.slane %v1984, 2
      %v2111 = vsel %vm1477, %v2109, %v2110
      %v2112 = vrot.slane %v1985, 2
      %v2113 = vsel %vm1477, %v2110, %v2112
      %v2146 = vadd.f32 %v1902, %v2036
      %v2147 = vadd.f32 %v1903, %v2038
      %v2148 = vadd.f32 %v1904, %v2041
      %v2149 = vadd.f32 %v1905, %v2043
      %v2150 = vadd.f32 %v1906, %v2046
      %v2151 = vadd.f32 %v1907, %v2048
      %v2152 = vadd.f32 %v1908, %v2051
      %v2153 = vadd.f32 %v1909, %v2053
      %v2154 = vadd.f32 %v1910, %v2056
      %v2155 = vadd.f32 %v1911, %v2058
      %v2156 = vadd.f32 %v1912, %v2061
      %v2157 = vadd.f32 %v1913, %v2063
      %v2158 = vadd.f32 %v1914, %v2066
      %v2159 = vadd.f32 %v1915, %v2068
      %v2160 = vadd.f32 %v1916, %v2071
      %v2161 = vadd.f32 %v1917, %v2073
      %v2162 = vadd.f32 %v1918, %v2076
      %v2163 = vadd.f32 %v1919, %v2078
      %v2164 = vadd.f32 %v1920, %v2081
      %v2165 = vadd.f32 %v1921, %v2083
      %v2166 = vadd.f32 %v1922, %v2086
      %v2167 = vadd.f32 %v1923, %v2088
      %v2168 = vadd.f32 %v1924, %v2091
      %v2169 = vadd.f32 %v1925, %v2093
      %v2170 = vadd.f32 %v1926, %v2096
      %v2171 = vadd.f32 %v1927, %v2098
      %v2172 = vadd.f32 %v1928, %v2101
      %v2173 = vadd.f32 %v1929, %v2103
      %v2174 = vadd.f32 %v1930, %v2106
      %v2175 = vadd.f32 %v1931, %v2108
      %v2176 = vadd.f32 %v1932, %v2111
      %v2177 = vadd.f32 %v1933, %v2113
      %v2178 = vlaneseq
      %v2179 = vshrl.u32 %v2178, 7
      %v2180 = vsub.s32 6, %v2179
      %v2181 = vrot.slane %v1062, %v2180
      %v2182 = vmul.f32 %v1014, %v2181
      %v2183 = vmul.f32 %v1015, %v2181
      %v2184 = vmul.f32 %v1017, %v2181
      %v2185 = vmul.f32 %v1018, %v2181
      %v2186 = vmul.f32 %v1020, %v2181
      %v2187 = vmul.f32 %v1021, %v2181
      %v2188 = vmul.f32 %v1023, %v2181
      %v2189 = vmul.f32 %v1024, %v2181
      %v2190 = vmul.f32 %v1026, %v2181
      %v2191 = vmul.f32 %v1027, %v2181
      %v2192 = vmul.f32 %v1029, %v2181
      %v2193 = vmul.f32 %v1030, %v2181
      %v2194 = vmul.f32 %v1032, %v2181
      %v2195 = vmul.f32 %v1033, %v2181
      %v2196 = vmul.f32 %v1035, %v2181
      %v2197 = vmul.f32 %v1036, %v2181
      %v2198 = vmul.f32 %v1038, %v2181
      %v2199 = vmul.f32 %v1039, %v2181
      %v2200 = vmul.f32 %v1041, %v2181
      %v2201 = vmul.f32 %v1042, %v2181
      %v2202 = vmul.f32 %v1044, %v2181
      %v2203 = vmul.f32 %v1045, %v2181
      %v2204 = vmul.f32 %v1047, %v2181
      %v2205 = vmul.f32 %v1048, %v2181
      %v2206 = vmul.f32 %v1050, %v2181
      %v2207 = vmul.f32 %v1051, %v2181
      %v2208 = vmul.f32 %v1053, %v2181
      %v2209 = vmul.f32 %v1054, %v2181
      %v2210 = vmul.f32 %v1056, %v2181
      %v2211 = vmul.f32 %v1057, %v2181
      %v2212 = vmul.f32 %v1059, %v2181
      %v2213 = vmul.f32 %v1060, %v2181
      %v2214 = vadd.f32 %v2146, %v2182
      %v2215 = vadd.f32 %v2147, %v2183
      %v2216 = vadd.f32 %v2148, %v2184
      %v2217 = vadd.f32 %v2149, %v2185
      %v2218 = vadd.f32 %v2150, %v2186
      %v2219 = vadd.f32 %v2151, %v2187
      %v2220 = vadd.f32 %v2152, %v2188
      %v2221 = vadd.f32 %v2153, %v2189
      %v2222 = vadd.f32 %v2154, %v2190
      %v2223 = vadd.f32 %v2155, %v2191
      %v2224 = vadd.f32 %v2156, %v2192
      %v2225 = vadd.f32 %v2157, %v2193
      %v2226 = vadd.f32 %v2158, %v2194
      %v2227 = vadd.f32 %v2159, %v2195
      %v2228 = vadd.f32 %v2160, %v2196
      %v2229 = vadd.f32 %v2161, %v2197
      %v2230 = vadd.f32 %v2162, %v2198
      %v2231 = vadd.f32 %v2163, %v2199
      %v2232 = vadd.f32 %v2164, %v2200
      %v2233 = vadd.f32 %v2165, %v2201
      %v2234 = vadd.f32 %v2166, %v2202
      %v2235 = vadd.f32 %v2167, %v2203
      %v2236 = vadd.f32 %v2168, %v2204
      %v2237 = vadd.f32 %v2169, %v2205
      %v2238 = vadd.f32 %v2170, %v2206
      %v2239 = vadd.f32 %v2171, %v2207
      %v2240 = vadd.f32 %v2172, %v2208
      %v2241 = vadd.f32 %v2173, %v2209
      %v2242 = vadd.f32 %v2174, %v2210
      %v2243 = vadd.f32 %v2175, %v2211
      %v2244 = vadd.f32 %v2176, %v2212
      %v2245 = vadd.f32 %v2177, %v2213
      %v2246 = vlaneseq
      %v2247 = vshrl.u32 %v2246, 7
      %v2248 = vsub.s32 7, %v2247
      %v2249 = vrot.slane %v1062, %v2248
      %v2250 = vmul.f32 %v1014, %v2249
      %v2251 = vmul.f32 %v1015, %v2249
      %v2252 = vmul.f32 %v1016, %v2249
      %v2253 = vmul.f32 %v1017, %v2249
      %v2254 = vmul.f32 %v1018, %v2249
      %v2255 = vmul.f32 %v1019, %v2249
      %v2256 = vmul.f32 %v1020, %v2249
      %v2257 = vmul.f32 %v1021, %v2249
      %v2258 = vmul.f32 %v1022, %v2249
      %v2259 = vmul.f32 %v1023, %v2249
      %v2260 = vmul.f32 %v1024, %v2249
      %v2261 = vmul.f32 %v1025, %v2249
      %v2262 = vmul.f32 %v1026, %v2249
      %v2263 = vmul.f32 %v1027, %v2249
      %v2264 = vmul.f32 %v1028, %v2249
      %v2265 = vmul.f32 %v1029, %v2249
      %v2266 = vmul.f32 %v1030, %v2249
      %v2267 = vmul.f32 %v1031, %v2249
      %v2268 = vmul.f32 %v1032, %v2249
      %v2269 = vmul.f32 %v1033, %v2249
      %v2270 = vmul.f32 %v1034, %v2249
      %v2271 = vmul.f32 %v1035, %v2249
      %v2272 = vmul.f32 %v1036, %v2249
      %v2273 = vmul.f32 %v1037, %v2249
      %v2274 = vmul.f32 %v1038, %v2249
      %v2275 = vmul.f32 %v1039, %v2249
      %v2276 = vmul.f32 %v1040, %v2249
      %v2277 = vmul.f32 %v1041, %v2249
      %v2278 = vmul.f32 %v1042, %v2249
      %v2279 = vmul.f32 %v1043, %v2249
      %v2280 = vmul.f32 %v1044, %v2249
      %v2281 = vmul.f32 %v1045, %v2249
      %v2282 = vmul.f32 %v1046, %v2249
      %v2283 = vmul.f32 %v1047, %v2249
      %v2284 = vmul.f32 %v1048, %v2249
      %v2285 = vmul.f32 %v1049, %v2249
      %v2286 = vmul.f32 %v1050, %v2249
      %v2287 = vmul.f32 %v1051, %v2249
      %v2288 = vmul.f32 %v1052, %v2249
      %v2289 = vmul.f32 %v1053, %v2249
      %v2290 = vmul.f32 %v1054, %v2249
      %v2291 = vmul.f32 %v1055, %v2249
      %v2292 = vmul.f32 %v1056, %v2249
      %v2293 = vmul.f32 %v1057, %v2249
      %v2294 = vmul.f32 %v1058, %v2249
      %v2295 = vmul.f32 %v1059, %v2249
      %v2296 = vmul.f32 %v1060, %v2249
      %v2297 = vmul.f32 %v1061, %v2249
      %v2346 = vrot.slane %v2250, 1
      %v2347 = vrot.slane %v2251, 1
      %v2348 = vsel %vm1232, %v2346, %v2347
      %v2349 = vrot.slane %v2252, 1
      %v2350 = vsel %vm1232, %v2347, %v2349
      %v2351 = vrot.slane %v2253, 1
      %v2352 = vrot.slane %v2254, 1
      %v2353 = vsel %vm1232, %v2351, %v2352
      %v2354 = vrot.slane %v2255, 1
      %v2355 = vsel %vm1232, %v2352, %v2354
      %v2356 = vrot.slane %v2256, 1
      %v2357 = vrot.slane %v2257, 1
      %v2358 = vsel %vm1232, %v2356, %v2357
      %v2359 = vrot.slane %v2258, 1
      %v2360 = vsel %vm1232, %v2357, %v2359
      %v2361 = vrot.slane %v2259, 1
      %v2362 = vrot.slane %v2260, 1
      %v2363 = vsel %vm1232, %v2361, %v2362
      %v2364 = vrot.slane %v2261, 1
      %v2365 = vsel %vm1232, %v2362, %v2364
      %v2366 = vrot.slane %v2262, 1
      %v2367 = vrot.slane %v2263, 1
      %v2368 = vsel %vm1232, %v2366, %v2367
      %v2369 = vrot.slane %v2264, 1
      %v2370 = vsel %vm1232, %v2367, %v2369
      %v2371 = vrot.slane %v2265, 1
      %v2372 = vrot.slane %v2266, 1
      %v2373 = vsel %vm1232, %v2371, %v2372
      %v2374 = vrot.slane %v2267, 1
      %v2375 = vsel %vm1232, %v2372, %v2374
      %v2376 = vrot.slane %v2268, 1
      %v2377 = vrot.slane %v2269, 1
      %v2378 = vsel %vm1232, %v2376, %v2377
      %v2379 = vrot.slane %v2270, 1
      %v2380 = vsel %vm1232, %v2377, %v2379
      %v2381 = vrot.slane %v2271, 1
      %v2382 = vrot.slane %v2272, 1
      %v2383 = vsel %vm1232, %v2381, %v2382
      %v2384 = vrot.slane %v2273, 1
      %v2385 = vsel %vm1232, %v2382, %v2384
      %v2386 = vrot.slane %v2274, 1
      %v2387 = vrot.slane %v2275, 1
      %v2388 = vsel %vm1232, %v2386, %v2387
      %v2389 = vrot.slane %v2276, 1
      %v2390 = vsel %vm1232, %v2387, %v2389
      %v2391 = vrot.slane %v2277, 1
      %v2392 = vrot.slane %v2278, 1
      %v2393 = vsel %vm1232, %v2391, %v2392
      %v2394 = vrot.slane %v2279, 1
      %v2395 = vsel %vm1232, %v2392, %v2394
      %v2396 = vrot.slane %v2280, 1
      %v2397 = vrot.slane %v2281, 1
      %v2398 = vsel %vm1232, %v2396, %v2397
      %v2399 = vrot.slane %v2282, 1
      %v2400 = vsel %vm1232, %v2397, %v2399
      %v2401 = vrot.slane %v2283, 1
      %v2402 = vrot.slane %v2284, 1
      %v2403 = vsel %vm1232, %v2401, %v2402
      %v2404 = vrot.slane %v2285, 1
      %v2405 = vsel %vm1232, %v2402, %v2404
      %v2406 = vrot.slane %v2286, 1
      %v2407 = vrot.slane %v2287, 1
      %v2408 = vsel %vm1232, %v2406, %v2407
      %v2409 = vrot.slane %v2288, 1
      %v2410 = vsel %vm1232, %v2407, %v2409
      %v2411 = vrot.slane %v2289, 1
      %v2412 = vrot.slane %v2290, 1
      %v2413 = vsel %vm1232, %v2411, %v2412
      %v2414 = vrot.slane %v2291, 1
      %v2415 = vsel %vm1232, %v2412, %v2414
      %v2416 = vrot.slane %v2292, 1
      %v2417 = vrot.slane %v2293, 1
      %v2418 = vsel %vm1232, %v2416, %v2417
      %v2419 = vrot.slane %v2294, 1
      %v2420 = vsel %vm1232, %v2417, %v2419
      %v2421 = vrot.slane %v2295, 1
      %v2422 = vrot.slane %v2296, 1
      %v2423 = vsel %vm1232, %v2421, %v2422
      %v2424 = vrot.slane %v2297, 1
      %v2425 = vsel %vm1232, %v2422, %v2424
      %v2458 = vadd.f32 %v2214, %v2348
      %v2459 = vadd.f32 %v2215, %v2350
      %v2460 = vadd.f32 %v2216, %v2353
      %v2461 = vadd.f32 %v2217, %v2355
      %v2462 = vadd.f32 %v2218, %v2358
      %v2463 = vadd.f32 %v2219, %v2360
      %v2464 = vadd.f32 %v2220, %v2363
      %v2465 = vadd.f32 %v2221, %v2365
      %v2466 = vadd.f32 %v2222, %v2368
      %v2467 = vadd.f32 %v2223, %v2370
      %v2468 = vadd.f32 %v2224, %v2373
      %v2469 = vadd.f32 %v2225, %v2375
      %v2470 = vadd.f32 %v2226, %v2378
      %v2471 = vadd.f32 %v2227, %v2380
      %v2472 = vadd.f32 %v2228, %v2383
      %v2473 = vadd.f32 %v2229, %v2385
      %v2474 = vadd.f32 %v2230, %v2388
      %v2475 = vadd.f32 %v2231, %v2390
      %v2476 = vadd.f32 %v2232, %v2393
      %v2477 = vadd.f32 %v2233, %v2395
      %v2478 = vadd.f32 %v2234, %v2398
      %v2479 = vadd.f32 %v2235, %v2400
      %v2480 = vadd.f32 %v2236, %v2403
      %v2481 = vadd.f32 %v2237, %v2405
      %v2482 = vadd.f32 %v2238, %v2408
      %v2483 = vadd.f32 %v2239, %v2410
      %v2484 = vadd.f32 %v2240, %v2413
      %v2485 = vadd.f32 %v2241, %v2415
      %v2486 = vadd.f32 %v2242, %v2418
      %v2487 = vadd.f32 %v2243, %v2420
      %v2488 = vadd.f32 %v2244, %v2423
      %v2489 = vadd.f32 %v2245, %v2425
      %v2490 = vlaneseq
      %v2491 = vshrl.u32 %v2490, 7
      %v2492 = vsub.s32 0, %v2491
      %v2493 = vrot.slane %v1063, %v2492
      %v2494 = vmul.f32 %v1014, %v2493
      %v2495 = vmul.f32 %v1015, %v2493
      %v2496 = vmul.f32 %v1016, %v2493
      %v2497 = vmul.f32 %v1017, %v2493
      %v2498 = vmul.f32 %v1018, %v2493
      %v2499 = vmul.f32 %v1019, %v2493
      %v2500 = vmul.f32 %v1020, %v2493
      %v2501 = vmul.f32 %v1021, %v2493
      %v2502 = vmul.f32 %v1022, %v2493
      %v2503 = vmul.f32 %v1023, %v2493
      %v2504 = vmul.f32 %v1024, %v2493
      %v2505 = vmul.f32 %v1025, %v2493
      %v2506 = vmul.f32 %v1026, %v2493
      %v2507 = vmul.f32 %v1027, %v2493
      %v2508 = vmul.f32 %v1028, %v2493
      %v2509 = vmul.f32 %v1029, %v2493
      %v2510 = vmul.f32 %v1030, %v2493
      %v2511 = vmul.f32 %v1031, %v2493
      %v2512 = vmul.f32 %v1032, %v2493
      %v2513 = vmul.f32 %v1033, %v2493
      %v2514 = vmul.f32 %v1034, %v2493
      %v2515 = vmul.f32 %v1035, %v2493
      %v2516 = vmul.f32 %v1036, %v2493
      %v2517 = vmul.f32 %v1037, %v2493
      %v2518 = vmul.f32 %v1038, %v2493
      %v2519 = vmul.f32 %v1039, %v2493
      %v2520 = vmul.f32 %v1040, %v2493
      %v2521 = vmul.f32 %v1041, %v2493
      %v2522 = vmul.f32 %v1042, %v2493
      %v2523 = vmul.f32 %v1043, %v2493
      %v2524 = vmul.f32 %v1044, %v2493
      %v2525 = vmul.f32 %v1045, %v2493
      %v2526 = vmul.f32 %v1046, %v2493
      %v2527 = vmul.f32 %v1047, %v2493
      %v2528 = vmul.f32 %v1048, %v2493
      %v2529 = vmul.f32 %v1049, %v2493
      %v2530 = vmul.f32 %v1050, %v2493
      %v2531 = vmul.f32 %v1051, %v2493
      %v2532 = vmul.f32 %v1052, %v2493
      %v2533 = vmul.f32 %v1053, %v2493
      %v2534 = vmul.f32 %v1054, %v2493
      %v2535 = vmul.f32 %v1055, %v2493
      %v2536 = vmul.f32 %v1056, %v2493
      %v2537 = vmul.f32 %v1057, %v2493
      %v2538 = vmul.f32 %v1058, %v2493
      %v2539 = vmul.f32 %v1059, %v2493
      %v2540 = vmul.f32 %v1060, %v2493
      %v2541 = vmul.f32 %v1061, %v2493
      %v2590 = vrot.slane %v2494, 2
      %v2591 = vrot.slane %v2495, 2
      %v2592 = vsel %vm1477, %v2590, %v2591
      %v2593 = vrot.slane %v2496, 2
      %v2594 = vsel %vm1477, %v2591, %v2593
      %v2595 = vrot.slane %v2497, 2
      %v2596 = vrot.slane %v2498, 2
      %v2597 = vsel %vm1477, %v2595, %v2596
      %v2598 = vrot.slane %v2499, 2
      %v2599 = vsel %vm1477, %v2596, %v2598
      %v2600 = vrot.slane %v2500, 2
      %v2601 = vrot.slane %v2501, 2
      %v2602 = vsel %vm1477, %v2600, %v2601
      %v2603 = vrot.slane %v2502, 2
      %v2604 = vsel %vm1477, %v2601, %v2603
      %v2605 = vrot.slane %v2503, 2
      %v2606 = vrot.slane %v2504, 2
      %v2607 = vsel %vm1477, %v2605, %v2606
      %v2608 = vrot.slane %v2505, 2
      %v2609 = vsel %vm1477, %v2606, %v2608
      %v2610 = vrot.slane %v2506, 2
      %v2611 = vrot.slane %v2507, 2
      %v2612 = vsel %vm1477, %v2610, %v2611
      %v2613 = vrot.slane %v2508, 2
      %v2614 = vsel %vm1477, %v2611, %v2613
      %v2615 = vrot.slane %v2509, 2
      %v2616 = vrot.slane %v2510, 2
      %v2617 = vsel %vm1477, %v2615, %v2616
      %v2618 = vrot.slane %v2511, 2
      %v2619 = vsel %vm1477, %v2616, %v2618
      %v2620 = vrot.slane %v2512, 2
      %v2621 = vrot.slane %v2513, 2
      %v2622 = vsel %vm1477, %v2620, %v2621
      %v2623 = vrot.slane %v2514, 2
      %v2624 = vsel %vm1477, %v2621, %v2623
      %v2625 = vrot.slane %v2515, 2
      %v2626 = vrot.slane %v2516, 2
      %v2627 = vsel %vm1477, %v2625, %v2626
      %v2628 = vrot.slane %v2517, 2
      %v2629 = vsel %vm1477, %v2626, %v2628
      %v2630 = vrot.slane %v2518, 2
      %v2631 = vrot.slane %v2519, 2
      %v2632 = vsel %vm1477, %v2630, %v2631
      %v2633 = vrot.slane %v2520, 2
      %v2634 = vsel %vm1477, %v2631, %v2633
      %v2635 = vrot.slane %v2521, 2
      %v2636 = vrot.slane %v2522, 2
      %v2637 = vsel %vm1477, %v2635, %v2636
      %v2638 = vrot.slane %v2523, 2
      %v2639 = vsel %vm1477, %v2636, %v2638
      %v2640 = vrot.slane %v2524, 2
      %v2641 = vrot.slane %v2525, 2
      %v2642 = vsel %vm1477, %v2640, %v2641
      %v2643 = vrot.slane %v2526, 2
      %v2644 = vsel %vm1477, %v2641, %v2643
      %v2645 = vrot.slane %v2527, 2
      %v2646 = vrot.slane %v2528, 2
      %v2647 = vsel %vm1477, %v2645, %v2646
      %v2648 = vrot.slane %v2529, 2
      %v2649 = vsel %vm1477, %v2646, %v2648
      %v2650 = vrot.slane %v2530, 2
      %v2651 = vrot.slane %v2531, 2
      %v2652 = vsel %vm1477, %v2650, %v2651
      %v2653 = vrot.slane %v2532, 2
      %v2654 = vsel %vm1477, %v2651, %v2653
      %v2655 = vrot.slane %v2533, 2
      %v2656 = vrot.slane %v2534, 2
      %v2657 = vsel %vm1477, %v2655, %v2656
      %v2658 = vrot.slane %v2535, 2
      %v2659 = vsel %vm1477, %v2656, %v2658
      %v2660 = vrot.slane %v2536, 2
      %v2661 = vrot.slane %v2537, 2
      %v2662 = vsel %vm1477, %v2660, %v2661
      %v2663 = vrot.slane %v2538, 2
      %v2664 = vsel %vm1477, %v2661, %v2663
      %v2665 = vrot.slane %v2539, 2
      %v2666 = vrot.slane %v2540, 2
      %v2667 = vsel %vm1477, %v2665, %v2666
      %v2668 = vrot.slane %v2541, 2
      %v2669 = vsel %vm1477, %v2666, %v2668
      %v2702 = vadd.f32 %v2458, %v2592
      %v2703 = vadd.f32 %v2459, %v2594
      %v2704 = vadd.f32 %v2460, %v2597
      %v2705 = vadd.f32 %v2461, %v2599
      %v2706 = vadd.f32 %v2462, %v2602
      %v2707 = vadd.f32 %v2463, %v2604
      %v2708 = vadd.f32 %v2464, %v2607
      %v2709 = vadd.f32 %v2465, %v2609
      %v2710 = vadd.f32 %v2466, %v2612
      %v2711 = vadd.f32 %v2467, %v2614
      %v2712 = vadd.f32 %v2468, %v2617
      %v2713 = vadd.f32 %v2469, %v2619
      %v2714 = vadd.f32 %v2470, %v2622
      %v2715 = vadd.f32 %v2471, %v2624
      %v2716 = vadd.f32 %v2472, %v2627
      %v2717 = vadd.f32 %v2473, %v2629
      %v2718 = vadd.f32 %v2474, %v2632
      %v2719 = vadd.f32 %v2475, %v2634
      %v2720 = vadd.f32 %v2476, %v2637
      %v2721 = vadd.f32 %v2477, %v2639
      %v2722 = vadd.f32 %v2478, %v2642
      %v2723 = vadd.f32 %v2479, %v2644
      %v2724 = vadd.f32 %v2480, %v2647
      %v2725 = vadd.f32 %v2481, %v2649
      %v2726 = vadd.f32 %v2482, %v2652
      %v2727 = vadd.f32 %v2483, %v2654
      %v2728 = vadd.f32 %v2484, %v2657
      %v2729 = vadd.f32 %v2485, %v2659
      %v2730 = vadd.f32 %v2486, %v2662
      %v2731 = vadd.f32 %v2487, %v2664
      %v2732 = vadd.f32 %v2488, %v2667
      %v2733 = vadd.f32 %v2489, %v2669
      %v2734 = vld [vmem:[%s4] sm:$0x1]
      %v2736 = vlaneseq
      %v2737 = vshrl.u32 %v2736, 7
      %v2738 = vsub.s32 0, %v2737
      %v2739 = vrot.slane %v2734, %v2738
      %v2741 = vadd.f32 %v2702, %v2739
      %v2742 = vadd.f32 %v2703, %v2739
      %v2743 = vadd.f32 %v2704, %v2739
      %v2744 = vadd.f32 %v2705, %v2739
      %v2745 = vadd.f32 %v2706, %v2739
      %v2746 = vadd.f32 %v2707, %v2739
      %v2747 = vadd.f32 %v2708, %v2739
      %v2748 = vadd.f32 %v2709, %v2739
      %v2749 = vadd.f32 %v2710, %v2739
      %v2750 = vadd.f32 %v2711, %v2739
      %v2751 = vadd.f32 %v2712, %v2739
      %v2752 = vadd.f32 %v2713, %v2739
      %v2753 = vadd.f32 %v2714, %v2739
      %v2754 = vadd.f32 %v2715, %v2739
      %v2755 = vadd.f32 %v2716, %v2739
      %v2756 = vadd.f32 %v2717, %v2739
      %v2757 = vadd.f32 %v2718, %v2739
      %v2758 = vadd.f32 %v2719, %v2739
      %v2759 = vadd.f32 %v2720, %v2739
      %v2760 = vadd.f32 %v2721, %v2739
      %v2761 = vadd.f32 %v2722, %v2739
      %v2762 = vadd.f32 %v2723, %v2739
      %v2763 = vadd.f32 %v2724, %v2739
      %v2764 = vadd.f32 %v2725, %v2739
      %v2765 = vadd.f32 %v2726, %v2739
      %v2766 = vadd.f32 %v2727, %v2739
      %v2767 = vadd.f32 %v2728, %v2739
      %v2768 = vadd.f32 %v2729, %v2739
      %v2769 = vadd.f32 %v2730, %v2739
      %v2770 = vadd.f32 %v2731, %v2739
      %v2771 = vadd.f32 %v2732, %v2739
      %v2772 = vadd.f32 %v2733, %v2739
      %v2773 = vxor.u32 %v2741, 2147483648
      %v2774 = vxor.u32 %v2742, 2147483648
      %v2775 = vxor.u32 %v2743, 2147483648
      %v2776 = vxor.u32 %v2744, 2147483648
      %v2777 = vxor.u32 %v2745, 2147483648
      %v2778 = vxor.u32 %v2746, 2147483648
      %v2779 = vxor.u32 %v2747, 2147483648
      %v2780 = vxor.u32 %v2748, 2147483648
      %v2781 = vxor.u32 %v2749, 2147483648
      %v2782 = vxor.u32 %v2750, 2147483648
      %v2783 = vxor.u32 %v2751, 2147483648
      %v2784 = vxor.u32 %v2752, 2147483648
      %v2785 = vxor.u32 %v2753, 2147483648
      %v2786 = vxor.u32 %v2754, 2147483648
      %v2787 = vxor.u32 %v2755, 2147483648
      %v2788 = vxor.u32 %v2756, 2147483648
      %v2789 = vxor.u32 %v2757, 2147483648
      %v2790 = vxor.u32 %v2758, 2147483648
      %v2791 = vxor.u32 %v2759, 2147483648
      %v2792 = vxor.u32 %v2760, 2147483648
      %v2793 = vxor.u32 %v2761, 2147483648
      %v2794 = vxor.u32 %v2762, 2147483648
      %v2795 = vxor.u32 %v2763, 2147483648
      %v2796 = vxor.u32 %v2764, 2147483648
      %v2797 = vxor.u32 %v2765, 2147483648
      %v2798 = vxor.u32 %v2766, 2147483648
      %v2799 = vxor.u32 %v2767, 2147483648
      %v2800 = vxor.u32 %v2768, 2147483648
      %v2801 = vxor.u32 %v2769, 2147483648
      %v2802 = vxor.u32 %v2770, 2147483648
      %v2803 = vxor.u32 %v2771, 2147483648
      %v2804 = vxor.u32 %v2772, 2147483648
      %v2805 = vmul.f32 %v2773, 1.442695
      %v2806 = vpow.pop %v2805
      %v2807 = vmul.f32 %v2774, 1.442695
      %v2808 = vpow.pop %v2807
      %v2809 = vmul.f32 %v2775, 1.442695
      %v2810 = vpow.pop %v2809
      %v2811 = vmul.f32 %v2776, 1.442695
      %v2812 = vpow.pop %v2811
      %v2813 = vmul.f32 %v2777, 1.442695
      %v2814 = vpow.pop %v2813
      %v2815 = vmul.f32 %v2778, 1.442695
      %v2816 = vpow.pop %v2815
      %v2817 = vmul.f32 %v2779, 1.442695
      %v2818 = vpow.pop %v2817
      %v2819 = vmul.f32 %v2780, 1.442695
      %v2820 = vpow.pop %v2819
      %v2821 = vmul.f32 %v2781, 1.442695
      %v2822 = vpow.pop %v2821
      %v2823 = vmul.f32 %v2782, 1.442695
      %v2824 = vpow.pop %v2823
      %v2825 = vmul.f32 %v2783, 1.442695
      %v2826 = vpow.pop %v2825
      %v2827 = vmul.f32 %v2784, 1.442695
      %v2828 = vpow.pop %v2827
      %v2829 = vmul.f32 %v2785, 1.442695
      %v2830 = vpow.pop %v2829
      %v2831 = vmul.f32 %v2786, 1.442695
      %v2832 = vpow.pop %v2831
      %v2833 = vmul.f32 %v2787, 1.442695
      %v2834 = vpow.pop %v2833
      %v2835 = vmul.f32 %v2788, 1.442695
      %v2836 = vpow.pop %v2835
      %v2837 = vmul.f32 %v2789, 1.442695
      %v2838 = vpow.pop %v2837
      %v2839 = vmul.f32 %v2790, 1.442695
      %v2840 = vpow.pop %v2839
      %v2841 = vmul.f32 %v2791, 1.442695
      %v2842 = vpow.pop %v2841
      %v2843 = vmul.f32 %v2792, 1.442695
      %v2844 = vpow.pop %v2843
      %v2845 = vmul.f32 %v2793, 1.442695
      %v2846 = vpow.pop %v2845
      %v2847 = vmul.f32 %v2794, 1.442695
      %v2848 = vpow.pop %v2847
      %v2849 = vmul.f32 %v2795, 1.442695
      %v2850 = vpow.pop %v2849
      %v2851 = vmul.f32 %v2796, 1.442695
      %v2852 = vpow.pop %v2851
      %v2853 = vmul.f32 %v2797, 1.442695
      %v2854 = vpow.pop %v2853
      %v2855 = vmul.f32 %v2798, 1.442695
      %v2856 = vpow.pop %v2855
      %v2857 = vmul.f32 %v2799, 1.442695
      %v2858 = vpow.pop %v2857
      %v2859 = vmul.f32 %v2800, 1.442695
      %v2860 = vpow.pop %v2859
      %v2861 = vmul.f32 %v2801, 1.442695
      %v2862 = vpow.pop %v2861
      %v2863 = vmul.f32 %v2802, 1.442695
      %v2864 = vpow.pop %v2863
      %v2865 = vmul.f32 %v2803, 1.442695
      %v2866 = vpow.pop %v2865
      %v2867 = vmul.f32 %v2804, 1.442695
      %v2868 = vpow.pop %v2867
      %v2869 = vadd.f32 %v2806, 1.0
      %v2870 = vadd.f32 %v2808, 1.0
      %v2871 = vadd.f32 %v2810, 1.0
      %v2872 = vadd.f32 %v2812, 1.0
      %v2873 = vadd.f32 %v2814, 1.0
      %v2874 = vadd.f32 %v2816, 1.0
      %v2875 = vadd.f32 %v2818, 1.0
      %v2876 = vadd.f32 %v2820, 1.0
      %v2877 = vadd.f32 %v2822, 1.0
      %v2878 = vadd.f32 %v2824, 1.0
      %v2879 = vadd.f32 %v2826, 1.0
      %v2880 = vadd.f32 %v2828, 1.0
      %v2881 = vadd.f32 %v2830, 1.0
      %v2882 = vadd.f32 %v2832, 1.0
      %v2883 = vadd.f32 %v2834, 1.0
      %v2884 = vadd.f32 %v2836, 1.0
      %v2885 = vadd.f32 %v2838, 1.0
      %v2886 = vadd.f32 %v2840, 1.0
      %v2887 = vadd.f32 %v2842, 1.0
      %v2888 = vadd.f32 %v2844, 1.0
      %v2889 = vadd.f32 %v2846, 1.0
      %v2890 = vadd.f32 %v2848, 1.0
      %v2891 = vadd.f32 %v2850, 1.0
      %v2892 = vadd.f32 %v2852, 1.0
      %v2893 = vadd.f32 %v2854, 1.0
      %v2894 = vadd.f32 %v2856, 1.0
      %v2895 = vadd.f32 %v2858, 1.0
      %v2896 = vadd.f32 %v2860, 1.0
      %v2897 = vadd.f32 %v2862, 1.0
      %v2898 = vadd.f32 %v2864, 1.0
      %v2899 = vadd.f32 %v2866, 1.0
      %v2900 = vadd.f32 %v2868, 1.0
      %v2901 = vrcp.pop %v2869
      %v2902 = vmul.f32 1.0, %v2901
      %v2903 = vrcp.pop %v2870
      %v2904 = vmul.f32 1.0, %v2903
      %v2905 = vrcp.pop %v2871
      %v2906 = vmul.f32 1.0, %v2905
      %v2907 = vrcp.pop %v2872
      %v2908 = vmul.f32 1.0, %v2907
      %v2909 = vrcp.pop %v2873
      %v2910 = vmul.f32 1.0, %v2909
      %v2911 = vrcp.pop %v2874
      %v2912 = vmul.f32 1.0, %v2911
      %v2913 = vrcp.pop %v2875
      %v2914 = vmul.f32 1.0, %v2913
      %v2915 = vrcp.pop %v2876
      %v2916 = vmul.f32 1.0, %v2915
      %v2917 = vrcp.pop %v2877
      %v2918 = vmul.f32 1.0, %v2917
      %v2919 = vrcp.pop %v2878
      %v2920 = vmul.f32 1.0, %v2919
      %v2921 = vrcp.pop %v2879
      %v2922 = vmul.f32 1.0, %v2921
      %v2923 = vrcp.pop %v2880
      %v2924 = vmul.f32 1.0, %v2923
      %v2925 = vrcp.pop %v2881
      %v2926 = vmul.f32 1.0, %v2925
      %v2927 = vrcp.pop %v2882
      %v2928 = vmul.f32 1.0, %v2927
      %v2929 = vrcp.pop %v2883
      %v2930 = vmul.f32 1.0, %v2929
      %v2931 = vrcp.pop %v2884
      %v2932 = vmul.f32 1.0, %v2931
      %v2933 = vrcp.pop %v2885
      %v2934 = vmul.f32 1.0, %v2933
      %v2935 = vrcp.pop %v2886
      %v2936 = vmul.f32 1.0, %v2935
      %v2937 = vrcp.pop %v2887
      %v2938 = vmul.f32 1.0, %v2937
      %v2939 = vrcp.pop %v2888
      %v2940 = vmul.f32 1.0, %v2939
      %v2941 = vrcp.pop %v2889
      %v2942 = vmul.f32 1.0, %v2941
      %v2943 = vrcp.pop %v2890
      %v2944 = vmul.f32 1.0, %v2943
      %v2945 = vrcp.pop %v2891
      %v2946 = vmul.f32 1.0, %v2945
      %v2947 = vrcp.pop %v2892
      %v2948 = vmul.f32 1.0, %v2947
      %v2949 = vrcp.pop %v2893
      %v2950 = vmul.f32 1.0, %v2949
      %v2951 = vrcp.pop %v2894
      %v2952 = vmul.f32 1.0, %v2951
      %v2953 = vrcp.pop %v2895
      %v2954 = vmul.f32 1.0, %v2953
      %v2955 = vrcp.pop %v2896
      %v2956 = vmul.f32 1.0, %v2955
      %v2957 = vrcp.pop %v2897
      %v2958 = vmul.f32 1.0, %v2957
      %v2959 = vrcp.pop %v2898
      %v2960 = vmul.f32 1.0, %v2959
      %v2961 = vrcp.pop %v2899
      %v2962 = vmul.f32 1.0, %v2961
      %v2963 = vrcp.pop %v2900
      %v2964 = vmul.f32 1.0, %v2963
      %v2965 = vmul.f32 %v2741, %v2902
      %v2966 = vmul.f32 %v2742, %v2904
      %v2967 = vmul.f32 %v2743, %v2906
      %v2968 = vmul.f32 %v2744, %v2908
      %v2969 = vmul.f32 %v2745, %v2910
      %v2970 = vmul.f32 %v2746, %v2912
      %v2971 = vmul.f32 %v2747, %v2914
      %v2972 = vmul.f32 %v2748, %v2916
      %v2973 = vmul.f32 %v2749, %v2918
      %v2974 = vmul.f32 %v2750, %v2920
      %v2975 = vmul.f32 %v2751, %v2922
      %v2976 = vmul.f32 %v2752, %v2924
      %v2977 = vmul.f32 %v2753, %v2926
      %v2978 = vmul.f32 %v2754, %v2928
      %v2979 = vmul.f32 %v2755, %v2930
      %v2980 = vmul.f32 %v2756, %v2932
      %v2981 = vmul.f32 %v2757, %v2934
      %v2982 = vmul.f32 %v2758, %v2936
      %v2983 = vmul.f32 %v2759, %v2938
      %v2984 = vmul.f32 %v2760, %v2940
      %v2985 = vmul.f32 %v2761, %v2942
      %v2986 = vmul.f32 %v2762, %v2944
      %v2987 = vmul.f32 %v2763, %v2946
      %v2988 = vmul.f32 %v2764, %v2948
      %v2989 = vmul.f32 %v2765, %v2950
      %v2990 = vmul.f32 %v2766, %v2952
      %v2991 = vmul.f32 %v2767, %v2954
      %v2992 = vmul.f32 %v2768, %v2956
      %v2993 = vmul.f32 %v2769, %v2958
      %v2994 = vmul.f32 %v2770, %v2960
      %v2995 = vmul.f32 %v2771, %v2962
      %v2996 = vmul.f32 %v2772, %v2964
      %v2997 = vsel %vm919, %v2965, 0.0
      %v2998 = vsel %vm919, %v2966, 0.0
      %v2999 = vadd.f32 %v2997, %v2998
      %v3000 = vsel %vm919, %v2967, 0.0
      %v3001 = vadd.f32 %v2999, %v3000
      %v3002 = vsel %vm919, %v2968, 0.0
      %v3003 = vadd.f32 %v3001, %v3002
      %v3004 = vsel %vm919, %v2969, 0.0
      %v3005 = vadd.f32 %v3003, %v3004
      %v3006 = vsel %vm919, %v2970, 0.0
      %v3007 = vadd.f32 %v3005, %v3006
      %v3008 = vsel %vm919, %v2971, 0.0
      %v3009 = vadd.f32 %v3007, %v3008
      %v3010 = vsel %vm919, %v2972, 0.0
      %v3011 = vadd.f32 %v3009, %v3010
      %v3012 = vsel %vm919, %v2973, 0.0
      %v3013 = vadd.f32 %v3011, %v3012
      %v3014 = vsel %vm919, %v2974, 0.0
      %v3015 = vadd.f32 %v3013, %v3014
      %v3016 = vsel %vm919, %v2975, 0.0
      %v3017 = vadd.f32 %v3015, %v3016
      %v3018 = vsel %vm919, %v2976, 0.0
      %v3019 = vadd.f32 %v3017, %v3018
      %v3020 = vsel %vm919, %v2977, 0.0
      %v3021 = vadd.f32 %v3019, %v3020
      %v3022 = vsel %vm919, %v2978, 0.0
      %v3023 = vadd.f32 %v3021, %v3022
      %v3024 = vsel %vm919, %v2979, 0.0
      %v3025 = vadd.f32 %v3023, %v3024
      %v3026 = vsel %vm919, %v2980, 0.0
      %v3027 = vadd.f32 %v3025, %v3026
      %v3028 = vsel %vm919, %v2981, 0.0
      %v3029 = vadd.f32 %v3027, %v3028
      %v3030 = vsel %vm919, %v2982, 0.0
      %v3031 = vadd.f32 %v3029, %v3030
      %v3032 = vsel %vm919, %v2983, 0.0
      %v3033 = vadd.f32 %v3031, %v3032
      %v3034 = vsel %vm919, %v2984, 0.0
      %v3035 = vadd.f32 %v3033, %v3034
      %v3036 = vsel %vm919, %v2985, 0.0
      %v3037 = vadd.f32 %v3035, %v3036
      %v3038 = vsel %vm919, %v2986, 0.0
      %v3039 = vadd.f32 %v3037, %v3038
      %v3040 = vsel %vm919, %v2987, 0.0
      %v3041 = vadd.f32 %v3039, %v3040
      %v3042 = vsel %vm919, %v2988, 0.0
      %v3043 = vadd.f32 %v3041, %v3042
      %v3044 = vsel %vm919, %v2989, 0.0
      %v3045 = vadd.f32 %v3043, %v3044
      %v3046 = vsel %vm919, %v2990, 0.0
      %v3047 = vadd.f32 %v3045, %v3046
      %v3048 = vsel %vm919, %v2991, 0.0
      %v3049 = vadd.f32 %v3047, %v3048
      %v3050 = vsel %vm919, %v2992, 0.0
      %v3051 = vadd.f32 %v3049, %v3050
      %v3052 = vsel %vm919, %v2993, 0.0
      %v3053 = vadd.f32 %v3051, %v3052
      %v3054 = vsel %vm919, %v2994, 0.0
      %v3055 = vadd.f32 %v3053, %v3054
      %v3056 = vsel %vm919, %v2995, 0.0
      %v3057 = vadd.f32 %v3055, %v3056
      %v3058 = vsel %vm919, %v2996, 0.0
      %v3059 = vadd.f32 %v3057, %v3058
      %v3060 = vrot.slane %v3059, 4
      %v3061 = vadd.f32 %v3059, %v3060
      %v3062 = vrot.slane %v3061, 2
      %v3063 = vadd.f32 %v3061, %v3062
      %v3064 = vrot.slane %v3063, 1
      %v3065 = vadd.f32 %v3063, %v3064
      %v3066 = vmul.f32 %v3065, 0.00390625
      %v3067 = vld [vmem:[%s5] sm:$0xff]
      %v3068 = vld [vmem:[%s5 + $0x8] sm:$0xff]
      %v3069 = vld [vmem:[%s5 + $0x10] sm:$0xff]
      %v3070 = vld [vmem:[%s5 + $0x18] sm:$0xff]
      %v3072 = vsel %vm919, %v3066, 0
      %3074 = vmatprep.subr.mxu0 0.0
      %3075 = vmatpush1.msra.mxu0 %v3067
      %3076 = vmatprep.subr.mxu0 0.0
      %3077 = vmatpush1.msra.mxu0 %v3068
      %3078 = vmatprep.subr.mxu0 0.0
      %3079 = vmatpush1.msra.mxu0 %v3069
      %3080 = vmatprep.subr.mxu0 0.0
      %3081 = vmatpush1.msra.mxu0 %v3070
      %3082 = vmatprep.subr.mxu0 0.0
      %3083 = vmatpush1.msra.mxu0 0.0
      %3084 = vmatprep.subr.mxu0 0.0
      %3085 = vmatpush1.msra.mxu0 0.0
      %3086 = vmatprep.subr.mxu0 0.0
      %3087 = vmatpush1.msra.mxu0 0.0
      %3088 = vmatprep.subr.mxu0 0.0
      %3089 = vmatpush1.msra.mxu0 0.0
      %3090 = vmatprep.subr.mxu0 0.0
      %3091 = vmatpush1.msra.mxu0 0.0
      %3092 = vmatprep.subr.mxu0 0.0
      %3093 = vmatpush1.msra.mxu0 0.0
      %3094 = vmatprep.subr.mxu0 0.0
      %3095 = vmatpush1.msra.mxu0 0.0
      %3096 = vmatprep.subr.mxu0 0.0
      %3097 = vmatpush1.msra.mxu0 0.0
      %3098 = vmatprep.subr.mxu0 0.0
      %3099 = vmatpush1.msra.mxu0 0.0
      %3100 = vmatprep.subr.mxu0 0.0
      %3101 = vmatpush1.msra.mxu0 0.0
      %3102 = vmatprep.subr.mxu0 0.0
      %3103 = vmatpush1.msra.mxu0 0.0
      %3104 = vmatprep.subr.mxu0 0.0
      %3105 = vmatpush1.msra.mxu0 0.0
      %3106 = vmatprep.subr.mxu0 0.0
      %3107 = vmatpush1.msra.mxu0 0.0
      %3108 = vmatprep.subr.mxu0 0.0
      %3109 = vmatpush1.msra.mxu0 0.0
      %3110 = vmatprep.subr.mxu0 0.0
      %3111 = vmatpush1.msra.mxu0 0.0
      %3112 = vmatprep.subr.mxu0 0.0
      %3113 = vmatpush1.msra.mxu0 0.0
      %3114 = vmatprep.subr.mxu0 0.0
      %3115 = vmatpush1.msra.mxu0 0.0
      %3116 = vmatprep.subr.mxu0 0.0
      %3117 = vmatpush1.msra.mxu0 0.0
      %3118 = vmatprep.subr.mxu0 0.0
      %3119 = vmatpush1.msra.mxu0 0.0
      %3120 = vmatprep.subr.mxu0 0.0
      %3121 = vmatpush1.msra.mxu0 0.0
      %3122 = vmatprep.subr.mxu0 0.0
      %3123 = vmatpush1.msra.mxu0 0.0
      %3124 = vmatprep.subr.mxu0 0.0
      %3125 = vmatpush1.msra.mxu0 0.0
      %3126 = vmatprep.subr.mxu0 0.0
      %3127 = vmatpush1.msra.mxu0 0.0
      %3128 = vmatprep.subr.mxu0 0.0
      %3129 = vmatpush1.msra.mxu0 0.0
      %3130 = vmatprep.subr.mxu0 0.0
      %3131 = vmatpush1.msra.mxu0 0.0
      %3132 = vmatprep.subr.mxu0 0.0
      %3133 = vmatpush1.msra.mxu0 0.0
      %3134 = vmatprep.subr.mxu0 0.0
      %3135 = vmatpush1.msra.mxu0 0.0
      %3136 = vmatprep.subr.mxu0 0.0
      %3137 = vmatpush1.msra.mxu0 0.0
      %3138 = vmatprep.mubr.f32.mxu0 0.0
      %3139 = vmatmul.mubr.f32.gmra.mrb[0].mxu0 %v3072
      %v3140 = vpop.f32.mrb[0].mxu0
      %v3141 = vadd.f32 0.0, %v3140
      %v3142 = vpop.f32.mrb[0].mxu0
      %3143 = vdwg.mxu0
      %v3144 = vxor.u32 %v3141, 2147483648
      %v3145 = vmul.f32 %v3144, 1.442695
      %v3146 = vpow.pop %v3145
      %v3147 = vadd.f32 %v3146, 1.0
      %v3148 = vrcp.pop %v3147
      %v3149 = vmul.f32 1.0, %v3148
      %v3150 = vmul.f32 %v3141, %v3149
      %v3151 = vld [vmem:[%s6] sm:$0x3]
      %vm3152 = vcmask 15360
      %v3154 = vsel %vm3152, %v3150, 0
      %vm3156 = vcmask 1041408
      %v3158 = vsel %vm3156, %v3151, 0
      %3160 = vmatprep.subr.mxu0 0.0
      %3161 = vmatpush1.msra.mxu0 %v3158
      %3162 = vmatprep.subr.mxu0 0.0
      %3163 = vmatpush1.msra.mxu0 0.0
      %3164 = vmatprep.subr.mxu0 0.0
      %3165 = vmatpush1.msra.mxu0 0.0
      %3166 = vmatprep.subr.mxu0 0.0
      %3167 = vmatpush1.msra.mxu0 0.0
      %3168 = vmatprep.subr.mxu0 0.0
      %3169 = vmatpush1.msra.mxu0 0.0
      %3170 = vmatprep.subr.mxu0 0.0
      %3171 = vmatpush1.msra.mxu0 0.0
      %3172 = vmatprep.subr.mxu0 0.0
      %3173 = vmatpush1.msra.mxu0 0.0
      %3174 = vmatprep.subr.mxu0 0.0
      %3175 = vmatpush1.msra.mxu0 0.0
      %3176 = vmatprep.subr.mxu0 0.0
      %3177 = vmatpush1.msra.mxu0 0.0
      %3178 = vmatprep.subr.mxu0 0.0
      %3179 = vmatpush1.msra.mxu0 0.0
      %3180 = vmatprep.subr.mxu0 0.0
      %3181 = vmatpush1.msra.mxu0 0.0
      %3182 = vmatprep.subr.mxu0 0.0
      %3183 = vmatpush1.msra.mxu0 0.0
      %3184 = vmatprep.subr.mxu0 0.0
      %3185 = vmatpush1.msra.mxu0 0.0
      %3186 = vmatprep.subr.mxu0 0.0
      %3187 = vmatpush1.msra.mxu0 0.0
      %3188 = vmatprep.subr.mxu0 0.0
      %3189 = vmatpush1.msra.mxu0 0.0
      %3190 = vmatprep.subr.mxu0 0.0
      %3191 = vmatpush1.msra.mxu0 0.0
      %3192 = vmatprep.subr.mxu0 0.0
      %3193 = vmatpush1.msra.mxu0 0.0
      %3194 = vmatprep.subr.mxu0 0.0
      %3195 = vmatpush1.msra.mxu0 0.0
      %3196 = vmatprep.subr.mxu0 0.0
      %3197 = vmatpush1.msra.mxu0 0.0
      %3198 = vmatprep.subr.mxu0 0.0
      %3199 = vmatpush1.msra.mxu0 0.0
      %3200 = vmatprep.subr.mxu0 0.0
      %3201 = vmatpush1.msra.mxu0 0.0
      %3202 = vmatprep.subr.mxu0 0.0
      %3203 = vmatpush1.msra.mxu0 0.0
      %3204 = vmatprep.subr.mxu0 0.0
      %3205 = vmatpush1.msra.mxu0 0.0
      %3206 = vmatprep.subr.mxu0 0.0
      %3207 = vmatpush1.msra.mxu0 0.0
      %3208 = vmatprep.subr.mxu0 0.0
      %3209 = vmatpush1.msra.mxu0 0.0
      %3210 = vmatprep.subr.mxu0 0.0
      %3211 = vmatpush1.msra.mxu0 0.0
      %3212 = vmatprep.subr.mxu0 0.0
      %3213 = vmatpush1.msra.mxu0 0.0
      %3214 = vmatprep.subr.mxu0 0.0
      %3215 = vmatpush1.msra.mxu0 0.0
      %3216 = vmatprep.subr.mxu0 0.0
      %3217 = vmatpush1.msra.mxu0 0.0
      %3218 = vmatprep.subr.mxu0 0.0
      %3219 = vmatpush1.msra.mxu0 0.0
      %3220 = vmatprep.subr.mxu0 0.0
      %3221 = vmatpush1.msra.mxu0 0.0
      %3222 = vmatprep.subr.mxu0 0.0
      %3223 = vmatpush1.msra.mxu0 0.0
      %3224 = vmatprep.mubr.f32.mxu0 0.0
      %3225 = vmatmul.mubr.f32.gmra.mrb[0].mxu0 %v3154
      %v3226 = vpop.f32.mrb[0].mxu0
      %v3227 = vadd.f32 0.0, %v3226
      %v3228 = vpop.f32.mrb[0].mxu0
      %3229 = vdwg.mxu0
      %v3230 = vxor.u32 %v3227, 2147483648
      %v3231 = vmul.f32 %v3230, 1.442695
      %v3232 = vpow.pop %v3231
      %v3233 = vadd.f32 %v3232, 1.0
      %v3234 = vrcp.pop %v3233
      %v3235 = vmul.f32 1.0, %v3234
      %v3236 = vlaneseq
      %v3237 = vshrl.u32 %v3236, 7
      %v3238 = vsub.s32 0, %v3237
      %v3239 = vrot.slane %v3235, %v3238
      %v3240 = vmul.f32 %v2965, %v3239
      %v3241 = vmul.f32 %v2966, %v3239
      %v3242 = vmul.f32 %v2967, %v3239
      %v3243 = vmul.f32 %v2968, %v3239
      %v3244 = vmul.f32 %v2969, %v3239
      %v3245 = vmul.f32 %v2970, %v3239
      %v3246 = vmul.f32 %v2971, %v3239
      %v3247 = vmul.f32 %v2972, %v3239
      %v3248 = vmul.f32 %v2973, %v3239
      %v3249 = vmul.f32 %v2974, %v3239
      %v3250 = vmul.f32 %v2975, %v3239
      %v3251 = vmul.f32 %v2976, %v3239
      %v3252 = vmul.f32 %v2977, %v3239
      %v3253 = vmul.f32 %v2978, %v3239
      %v3254 = vmul.f32 %v2979, %v3239
      %v3255 = vmul.f32 %v2980, %v3239
      %v3256 = vmul.f32 %v2981, %v3239
      %v3257 = vmul.f32 %v2982, %v3239
      %v3258 = vmul.f32 %v2983, %v3239
      %v3259 = vmul.f32 %v2984, %v3239
      %v3260 = vmul.f32 %v2985, %v3239
      %v3261 = vmul.f32 %v2986, %v3239
      %v3262 = vmul.f32 %v2987, %v3239
      %v3263 = vmul.f32 %v2988, %v3239
      %v3264 = vmul.f32 %v2989, %v3239
      %v3265 = vmul.f32 %v2990, %v3239
      %v3266 = vmul.f32 %v2991, %v3239
      %v3267 = vmul.f32 %v2992, %v3239
      %v3268 = vmul.f32 %v2993, %v3239
      %v3269 = vmul.f32 %v2994, %v3239
      %v3270 = vmul.f32 %v2995, %v3239
      %v3271 = vmul.f32 %v2996, %v3239
      %v3272 = vld [vmem:[%s7] sm:$0xff]
      %v3273 = vld [vmem:[%s7 + $0x8] sm:$0xff]
      %v3274 = vld [vmem:[%s7 + $0x10] sm:$0xff]
      %v3275 = vld [vmem:[%s7 + $0x18] sm:$0xff]
      %v3276 = vld [vmem:[%s8] sm:$0x1]
      %v3278 = vlaneseq
      %v3279 = vshrl.u32 %v3278, 7
      %v3280 = vsub.s32 0, %v3279
      %v3281 = vrot.slane %v3276, %v3280
      %v3284 = vsel %vm919, %v3240, 0
      %v3287 = vsel %vm919, %v3241, 0
      %v3290 = vsel %vm919, %v3242, 0
      %v3293 = vsel %vm919, %v3243, 0
      %v3296 = vsel %vm919, %v3244, 0
      %v3299 = vsel %vm919, %v3245, 0
      %v3302 = vsel %vm919, %v3246, 0
      %v3305 = vsel %vm919, %v3247, 0
      %v3308 = vsel %vm919, %v3248, 0
      %v3311 = vsel %vm919, %v3249, 0
      %v3314 = vsel %vm919, %v3250, 0
      %v3317 = vsel %vm919, %v3251, 0
      %v3320 = vsel %vm919, %v3252, 0
      %v3323 = vsel %vm919, %v3253, 0
      %v3326 = vsel %vm919, %v3254, 0
      %v3329 = vsel %vm919, %v3255, 0
      %v3332 = vsel %vm919, %v3256, 0
      %v3335 = vsel %vm919, %v3257, 0
      %v3338 = vsel %vm919, %v3258, 0
      %v3341 = vsel %vm919, %v3259, 0
      %v3344 = vsel %vm919, %v3260, 0
      %v3347 = vsel %vm919, %v3261, 0
      %v3350 = vsel %vm919, %v3262, 0
      %v3353 = vsel %vm919, %v3263, 0
      %v3356 = vsel %vm919, %v3264, 0
      %v3359 = vsel %vm919, %v3265, 0
      %v3362 = vsel %vm919, %v3266, 0
      %v3365 = vsel %vm919, %v3267, 0
      %v3368 = vsel %vm919, %v3268, 0
      %v3371 = vsel %vm919, %v3269, 0
      %v3374 = vsel %vm919, %v3270, 0
      %v3377 = vsel %vm919, %v3271, 0
      %3379 = vmatprep.subr.mxu0 0.0
      %3380 = vmatpush1.msra.mxu0 %v3272
      %3381 = vmatprep.subr.mxu0 0.0
      %3382 = vmatpush1.msra.mxu0 %v3273
      %3383 = vmatprep.subr.mxu0 0.0
      %3384 = vmatpush1.msra.mxu0 %v3274
      %3385 = vmatprep.subr.mxu0 0.0
      %3386 = vmatpush1.msra.mxu0 %v3275
      %3387 = vmatprep.subr.mxu0 0.0
      %3388 = vmatpush1.msra.mxu0 0.0
      %3389 = vmatprep.subr.mxu0 0.0
      %3390 = vmatpush1.msra.mxu0 0.0
      %3391 = vmatprep.subr.mxu0 0.0
      %3392 = vmatpush1.msra.mxu0 0.0
      %3393 = vmatprep.subr.mxu0 0.0
      %3394 = vmatpush1.msra.mxu0 0.0
      %3395 = vmatprep.subr.mxu0 0.0
      %3396 = vmatpush1.msra.mxu0 0.0
      %3397 = vmatprep.subr.mxu0 0.0
      %3398 = vmatpush1.msra.mxu0 0.0
      %3399 = vmatprep.subr.mxu0 0.0
      %3400 = vmatpush1.msra.mxu0 0.0
      %3401 = vmatprep.subr.mxu0 0.0
      %3402 = vmatpush1.msra.mxu0 0.0
      %3403 = vmatprep.subr.mxu0 0.0
      %3404 = vmatpush1.msra.mxu0 0.0
      %3405 = vmatprep.subr.mxu0 0.0
      %3406 = vmatpush1.msra.mxu0 0.0
      %3407 = vmatprep.subr.mxu0 0.0
      %3408 = vmatpush1.msra.mxu0 0.0
      %3409 = vmatprep.subr.mxu0 0.0
      %3410 = vmatpush1.msra.mxu0 0.0
      %3411 = vmatprep.subr.mxu0 0.0
      %3412 = vmatpush1.msra.mxu0 0.0
      %3413 = vmatprep.subr.mxu0 0.0
      %3414 = vmatpush1.msra.mxu0 0.0
      %3415 = vmatprep.subr.mxu0 0.0
      %3416 = vmatpush1.msra.mxu0 0.0
      %3417 = vmatprep.subr.mxu0 0.0
      %3418 = vmatpush1.msra.mxu0 0.0
      %3419 = vmatprep.subr.mxu0 0.0
      %3420 = vmatpush1.msra.mxu0 0.0
      %3421 = vmatprep.subr.mxu0 0.0
      %3422 = vmatpush1.msra.mxu0 0.0
      %3423 = vmatprep.subr.mxu0 0.0
      %3424 = vmatpush1.msra.mxu0 0.0
      %3425 = vmatprep.subr.mxu0 0.0
      %3426 = vmatpush1.msra.mxu0 0.0
      %3427 = vmatprep.subr.mxu0 0.0
      %3428 = vmatpush1.msra.mxu0 0.0
      %3429 = vmatprep.subr.mxu0 0.0
      %3430 = vmatpush1.msra.mxu0 0.0
      %3431 = vmatprep.subr.mxu0 0.0
      %3432 = vmatpush1.msra.mxu0 0.0
      %3433 = vmatprep.subr.mxu0 0.0
      %3434 = vmatpush1.msra.mxu0 0.0
      %3435 = vmatprep.subr.mxu0 0.0
      %3436 = vmatpush1.msra.mxu0 0.0
      %3437 = vmatprep.subr.mxu0 0.0
      %3438 = vmatpush1.msra.mxu0 0.0
      %3439 = vmatprep.subr.mxu0 0.0
      %3440 = vmatpush1.msra.mxu0 0.0
      %3441 = vmatprep.subr.mxu0 0.0
      %3442 = vmatpush1.msra.mxu0 0.0
      %3443 = vmatprep.mubr.f32.mxu0 0.0
      %3444 = vmatmul.mubr.f32.gmra.mrb[0].mxu0 %v3284
      %v3445 = vpop.f32.mrb[0].mxu0
      %v3446 = vadd.f32 %v3281, %v3445
      %v3447 = vpop.f32.mrb[0].mxu0
      %3448 = vmatprep.mubr.f32.mxu0 0.0
      %3449 = vmatmul.mubr.f32.gmra.mrb[0].mxu0 %v3287
      %v3450 = vpop.f32.mrb[0].mxu0
      %v3451 = vadd.f32 %v3281, %v3450
      %v3452 = vpop.f32.mrb[0].mxu0
      %3453 = vmatprep.mubr.f32.mxu0 0.0
      %3454 = vmatmul.mubr.f32.gmra.mrb[0].mxu0 %v3290
      %v3455 = vpop.f32.mrb[0].mxu0
      %v3456 = vadd.f32 %v3281, %v3455
      %v3457 = vpop.f32.mrb[0].mxu0
      %3458 = vmatprep.mubr.f32.mxu0 0.0
      %3459 = vmatmul.mubr.f32.gmra.mrb[0].mxu0 %v3293
      %v3460 = vpop.f32.mrb[0].mxu0
      %v3461 = vadd.f32 %v3281, %v3460
      %v3462 = vpop.f32.mrb[0].mxu0
      %3463 = vmatprep.mubr.f32.mxu0 0.0
      %3464 = vmatmul.mubr.f32.gmra.mrb[0].mxu0 %v3296
      %v3465 = vpop.f32.mrb[0].mxu0
      %v3466 = vadd.f32 %v3281, %v3465
      %v3467 = vpop.f32.mrb[0].mxu0
      %3468 = vmatprep.mubr.f32.mxu0 0.0
      %3469 = vmatmul.mubr.f32.gmra.mrb[0].mxu0 %v3299
      %v3470 = vpop.f32.mrb[0].mxu0
      %v3471 = vadd.f32 %v3281, %v3470
      %v3472 = vpop.f32.mrb[0].mxu0
      %3473 = vmatprep.mubr.f32.mxu0 0.0
      %3474 = vmatmul.mubr.f32.gmra.mrb[0].mxu0 %v3302
      %v3475 = vpop.f32.mrb[0].mxu0
      %v3476 = vadd.f32 %v3281, %v3475
      %v3477 = vpop.f32.mrb[0].mxu0
      %3478 = vmatprep.mubr.f32.mxu0 0.0
      %3479 = vmatmul.mubr.f32.gmra.mrb[0].mxu0 %v3305
      %v3480 = vpop.f32.mrb[0].mxu0
      %v3481 = vadd.f32 %v3281, %v3480
      %v3482 = vpop.f32.mrb[0].mxu0
      %3483 = vmatprep.mubr.f32.mxu0 0.0
      %3484 = vmatmul.mubr.f32.gmra.mrb[0].mxu0 %v3308
      %v3485 = vpop.f32.mrb[0].mxu0
      %v3486 = vadd.f32 %v3281, %v3485
      %v3487 = vpop.f32.mrb[0].mxu0
      %3488 = vmatprep.mubr.f32.mxu0 0.0
      %3489 = vmatmul.mubr.f32.gmra.mrb[0].mxu0 %v3311
      %v3490 = vpop.f32.mrb[0].mxu0
      %v3491 = vadd.f32 %v3281, %v3490
      %v3492 = vpop.f32.mrb[0].mxu0
      %3493 = vmatprep.mubr.f32.mxu0 0.0
      %3494 = vmatmul.mubr.f32.gmra.mrb[0].mxu0 %v3314
      %v3495 = vpop.f32.mrb[0].mxu0
      %v3496 = vadd.f32 %v3281, %v3495
      %v3497 = vpop.f32.mrb[0].mxu0
      %3498 = vmatprep.mubr.f32.mxu0 0.0
      %3499 = vmatmul.mubr.f32.gmra.mrb[0].mxu0 %v3317
      %v3500 = vpop.f32.mrb[0].mxu0
      %v3501 = vadd.f32 %v3281, %v3500
      %v3502 = vpop.f32.mrb[0].mxu0
      %3503 = vmatprep.mubr.f32.mxu0 0.0
      %3504 = vmatmul.mubr.f32.gmra.mrb[0].mxu0 %v3320
      %v3505 = vpop.f32.mrb[0].mxu0
      %v3506 = vadd.f32 %v3281, %v3505
      %v3507 = vpop.f32.mrb[0].mxu0
      %3508 = vmatprep.mubr.f32.mxu0 0.0
      %3509 = vmatmul.mubr.f32.gmra.mrb[0].mxu0 %v3323
      %v3510 = vpop.f32.mrb[0].mxu0
      %v3511 = vadd.f32 %v3281, %v3510
      %v3512 = vpop.f32.mrb[0].mxu0
      %3513 = vmatprep.mubr.f32.mxu0 0.0
      %3514 = vmatmul.mubr.f32.gmra.mrb[0].mxu0 %v3326
      %v3515 = vpop.f32.mrb[0].mxu0
      %v3516 = vadd.f32 %v3281, %v3515
      %v3517 = vpop.f32.mrb[0].mxu0
      %3518 = vmatprep.mubr.f32.mxu0 0.0
      %3519 = vmatmul.mubr.f32.gmra.mrb[0].mxu0 %v3329
      %v3520 = vpop.f32.mrb[0].mxu0
      %v3521 = vadd.f32 %v3281, %v3520
      %v3522 = vpop.f32.mrb[0].mxu0
      %3523 = vmatprep.mubr.f32.mxu0 0.0
      %3524 = vmatmul.mubr.f32.gmra.mrb[0].mxu0 %v3332
      %v3525 = vpop.f32.mrb[0].mxu0
      %v3526 = vadd.f32 %v3281, %v3525
      %v3527 = vpop.f32.mrb[0].mxu0
      %3528 = vmatprep.mubr.f32.mxu0 0.0
      %3529 = vmatmul.mubr.f32.gmra.mrb[0].mxu0 %v3335
      %v3530 = vpop.f32.mrb[0].mxu0
      %v3531 = vadd.f32 %v3281, %v3530
      %v3532 = vpop.f32.mrb[0].mxu0
      %3533 = vmatprep.mubr.f32.mxu0 0.0
      %3534 = vmatmul.mubr.f32.gmra.mrb[0].mxu0 %v3338
      %v3535 = vpop.f32.mrb[0].mxu0
      %v3536 = vadd.f32 %v3281, %v3535
      %v3537 = vpop.f32.mrb[0].mxu0
      %3538 = vmatprep.mubr.f32.mxu0 0.0
      %3539 = vmatmul.mubr.f32.gmra.mrb[0].mxu0 %v3341
      %v3540 = vpop.f32.mrb[0].mxu0
      %v3541 = vadd.f32 %v3281, %v3540
      %v3542 = vpop.f32.mrb[0].mxu0
      %3543 = vmatprep.mubr.f32.mxu0 0.0
      %3544 = vmatmul.mubr.f32.gmra.mrb[0].mxu0 %v3344
      %v3545 = vpop.f32.mrb[0].mxu0
      %v3546 = vadd.f32 %v3281, %v3545
      %v3547 = vpop.f32.mrb[0].mxu0
      %3548 = vmatprep.mubr.f32.mxu0 0.0
      %3549 = vmatmul.mubr.f32.gmra.mrb[0].mxu0 %v3347
      %v3550 = vpop.f32.mrb[0].mxu0
      %v3551 = vadd.f32 %v3281, %v3550
      %v3552 = vpop.f32.mrb[0].mxu0
      %3553 = vmatprep.mubr.f32.mxu0 0.0
      %3554 = vmatmul.mubr.f32.gmra.mrb[0].mxu0 %v3350
      %v3555 = vpop.f32.mrb[0].mxu0
      %v3556 = vadd.f32 %v3281, %v3555
      %v3557 = vpop.f32.mrb[0].mxu0
      %3558 = vmatprep.mubr.f32.mxu0 0.0
      %3559 = vmatmul.mubr.f32.gmra.mrb[0].mxu0 %v3353
      %v3560 = vpop.f32.mrb[0].mxu0
      %v3561 = vadd.f32 %v3281, %v3560
      %v3562 = vpop.f32.mrb[0].mxu0
      %3563 = vmatprep.mubr.f32.mxu0 0.0
      %3564 = vmatmul.mubr.f32.gmra.mrb[0].mxu0 %v3356
      %v3565 = vpop.f32.mrb[0].mxu0
      %v3566 = vadd.f32 %v3281, %v3565
      %v3567 = vpop.f32.mrb[0].mxu0
      %3568 = vmatprep.mubr.f32.mxu0 0.0
      %3569 = vmatmul.mubr.f32.gmra.mrb[0].mxu0 %v3359
      %v3570 = vpop.f32.mrb[0].mxu0
      %v3571 = vadd.f32 %v3281, %v3570
      %v3572 = vpop.f32.mrb[0].mxu0
      %3573 = vmatprep.mubr.f32.mxu0 0.0
      %3574 = vmatmul.mubr.f32.gmra.mrb[0].mxu0 %v3362
      %v3575 = vpop.f32.mrb[0].mxu0
      %v3576 = vadd.f32 %v3281, %v3575
      %v3577 = vpop.f32.mrb[0].mxu0
      %3578 = vmatprep.mubr.f32.mxu0 0.0
      %3579 = vmatmul.mubr.f32.gmra.mrb[0].mxu0 %v3365
      %v3580 = vpop.f32.mrb[0].mxu0
      %v3581 = vadd.f32 %v3281, %v3580
      %v3582 = vpop.f32.mrb[0].mxu0
      %3583 = vmatprep.mubr.f32.mxu0 0.0
      %3584 = vmatmul.mubr.f32.gmra.mrb[0].mxu0 %v3368
      %v3585 = vpop.f32.mrb[0].mxu0
      %v3586 = vadd.f32 %v3281, %v3585
      %v3587 = vpop.f32.mrb[0].mxu0
      %3588 = vmatprep.mubr.f32.mxu0 0.0
      %3589 = vmatmul.mubr.f32.gmra.mrb[0].mxu0 %v3371
      %v3590 = vpop.f32.mrb[0].mxu0
      %v3591 = vadd.f32 %v3281, %v3590
      %v3592 = vpop.f32.mrb[0].mxu0
      %3593 = vmatprep.mubr.f32.mxu0 0.0
      %3594 = vmatmul.mubr.f32.gmra.mrb[0].mxu0 %v3374
      %v3595 = vpop.f32.mrb[0].mxu0
      %v3596 = vadd.f32 %v3281, %v3595
      %v3597 = vpop.f32.mrb[0].mxu0
      %3598 = vmatprep.mubr.f32.mxu0 0.0
      %3599 = vmatmul.mubr.f32.gmra.mrb[0].mxu0 %v3377
      %v3600 = vpop.f32.mrb[0].mxu0
      %v3601 = vadd.f32 %v3281, %v3600
      %v3602 = vpop.f32.mrb[0].mxu0
      %3603 = vdwg.mxu0
      %vm3604 = vcmask 130048
      %3605 = vst.msk [vmem:[%s332] sm:$0xff] %vm3604, %v3446
      %3606 = vst.msk [vmem:[%s332 + $0x8] sm:$0xff] %vm3604, %v3451
      %3607 = vst.msk [vmem:[%s332 + $0x10] sm:$0xff] %vm3604, %v3456
      %3608 = vst.msk [vmem:[%s332 + $0x18] sm:$0xff] %vm3604, %v3461
      %3609 = vst.msk [vmem:[%s332 + $0x20] sm:$0xff] %vm3604, %v3466
      %3610 = vst.msk [vmem:[%s332 + $0x28] sm:$0xff] %vm3604, %v3471
      %3611 = vst.msk [vmem:[%s332 + $0x30] sm:$0xff] %vm3604, %v3476
      %3612 = vst.msk [vmem:[%s332 + $0x38] sm:$0xff] %vm3604, %v3481
      %3613 = vst.msk [vmem:[%s332 + $0x40] sm:$0xff] %vm3604, %v3486
      %3614 = vst.msk [vmem:[%s332 + $0x48] sm:$0xff] %vm3604, %v3491
      %3615 = vst.msk [vmem:[%s332 + $0x50] sm:$0xff] %vm3604, %v3496
      %3616 = vst.msk [vmem:[%s332 + $0x58] sm:$0xff] %vm3604, %v3501
      %3617 = vst.msk [vmem:[%s332 + $0x60] sm:$0xff] %vm3604, %v3506
      %3618 = vst.msk [vmem:[%s332 + $0x68] sm:$0xff] %vm3604, %v3511
      %3619 = vst.msk [vmem:[%s332 + $0x70] sm:$0xff] %vm3604, %v3516
      %3620 = vst.msk [vmem:[%s332 + $0x78] sm:$0xff] %vm3604, %v3521
      %3621 = vst.msk [vmem:[%s332 + $0x80] sm:$0xff] %vm3604, %v3526
      %3622 = vst.msk [vmem:[%s332 + $0x88] sm:$0xff] %vm3604, %v3531
      %3623 = vst.msk [vmem:[%s332 + $0x90] sm:$0xff] %vm3604, %v3536
      %3624 = vst.msk [vmem:[%s332 + $0x98] sm:$0xff] %vm3604, %v3541
      %3625 = vst.msk [vmem:[%s332 + $0xa0] sm:$0xff] %vm3604, %v3546
      %3626 = vst.msk [vmem:[%s332 + $0xa8] sm:$0xff] %vm3604, %v3551
      %3627 = vst.msk [vmem:[%s332 + $0xb0] sm:$0xff] %vm3604, %v3556
      %3628 = vst.msk [vmem:[%s332 + $0xb8] sm:$0xff] %vm3604, %v3561
      %3629 = vst.msk [vmem:[%s332 + $0xc0] sm:$0xff] %vm3604, %v3566
      %3630 = vst.msk [vmem:[%s332 + $0xc8] sm:$0xff] %vm3604, %v3571
      %3631 = vst.msk [vmem:[%s332 + $0xd0] sm:$0xff] %vm3604, %v3576
      %3632 = vst.msk [vmem:[%s332 + $0xd8] sm:$0xff] %vm3604, %v3581
      %3633 = vst.msk [vmem:[%s332 + $0xe0] sm:$0xff] %vm3604, %v3586
      %3634 = vst.msk [vmem:[%s332 + $0xe8] sm:$0xff] %vm3604, %v3591
      %3635 = vst.msk [vmem:[%s332 + $0xf0] sm:$0xff] %vm3604, %v3596
      %3636 = vst.msk [vmem:[%s332 + $0xf8] sm:$0xff] %vm3604, %v3601
      %p3637 = scmp.lt.s32.totalorder %s20, 1
      %s3638 = scalar_select %p3637, %s20, 1
      %s3639 = smul.addr %s3638, 32
      %s3640 = smul.addr %s3639, 8
      %s3641 = scalar_lea.vmem %s9, %s3640
      // Predicated region
      $region57: #{tpu_custom_call.1} parent=55 // pred_check
        %p3642 = pneg %p232
      $region58: #{tpu_custom_call.1} parent=55 // pred_check_branch
        %3644 = sbr.rel (%p3642) target = $region60
      $region59: #{tpu_custom_call.1} parent=55 // pred_region
        _
      $region60: #{tpu_custom_call.1} parent=55 // pred_fallthru
        _
    $region56: #{tpu_custom_call.1} parent=5 // pred_fallthru
      _
    %p3645 = scmp.le.s32.totalorder 2, %s15
    // Predicated region
    $region61: #{tpu_custom_call.1} parent=5 // pred_check
      %p3646 = pneg %p3645
    $region62: #{tpu_custom_call.1} parent=5 // pred_check_branch
      %3648 = sbr.rel (%p3646) target = $region64
    $region63: #{tpu_custom_call.1} parent=5 // pred_region
      %s3649 = ssub.s32 %s15, 2
      // Predicated region
      $region65: #{tpu_custom_call.1} parent=63 // pred_check
        %p3650 = pneg %p238
      $region66: #{tpu_custom_call.1} parent=63 // pred_check_branch
        %3652 = sbr.rel (%p3650) target = $region68
      $region67: #{tpu_custom_call.1} parent=63 // pred_region
        %p3653 = scmp.lt.s32.totalorder %s21, 1
        %s3654 = scalar_select %p3653, %s21, 1
        %s3655 = smul.addr %s3654, 32
        %s3656 = smul.addr %s3655, 8
        %s3657 = scalar_lea.vmem %s9, %s3656
      $region68: #{tpu_custom_call.1} parent=63 // pred_fallthru
        _
    $region64: #{tpu_custom_call.1} parent=5 // pred_fallthru
      _
  $region6: #{tpu_custom_call.1} parent=0 // loop_footer
    %s19 = sadd.s32 1, %s15
  $region7: #{tpu_custom_call.1} parent=0 // loop_footer_branch
    %14 = sbr.rel target = $region3
  $region8: #{tpu_custom_call.1} parent=0 // loop_exit
    _

</llo_original>
